<compile_context>
chip_gen: v7x
topology: tpu7x:2x2x1
jax: 0.10.0
libtpu: 0.0.40
codegen_flags: <defaults>
</compile_context>

<pallas_src>
import functools

import jax
import jax.numpy as jnp
from jax.experimental import pallas as pl
from jax.experimental.pallas import tpu as pltpu


_VMEM_LIMIT_BYTES = 32 * 1024 * 1024      # scoped VMEM requested from Mosaic
_BLOCK_BUDGET_BYTES = 20 * 1024 * 1024    # per-step estimate (double-buffered I/O + temps)


def _round_up(x, m):
    return (x + m - 1) // m * m


# --------------------------------------------------------------------------- kernels
def _make_fast_kernel(r):
    """Kernel over a dense (G, TH*r, W*r) input block and (G, r*r, TH, W) output block."""

    def kernel(x_ref, y_ref):
        g, thr, w_in = x_ref.shape
        th, w = thr // r, w_in // r
        xv = x_ref[...]                                        # (G, TH*r, W*r)
        # Move the column sub-pixel j onto its own (second-minor) dim:
        #   (G, TH*r, W*r) -T-> (G, W*r, TH*r) -reshape-> (G, W, r, TH*r)
        xt = jnp.swapaxes(xv, 1, 2).reshape(g, w, r, thr)
        for j in range(r):
            # (G, W, TH*r) -T-> (G, TH*r, W) -reshape-> (G, TH, r, W)
            col = jnp.swapaxes(xt[:, :, j, :], 1, 2).reshape(g, th, r, w)
            for i in range(r):
                y_ref[:, i * r + j, :, :] = col[:, :, i, :]

    return kernel


def _make_safe_kernel(r):
    """Kernel over a (G, TH, r, W, r) input block; plain integer indexing only."""

    def kernel(x_ref, y_ref):
        # y[g, i*r + j, t, x] = x[g, t, i, x, j]
        for i in range(r):
            for j in range(r):
                y_ref[:, i * r + j, :, :] = x_ref[:, :, i, :, j]

    return kernel


# --------------------------------------------------------------------------- tiling
def _choose_tiles(nc, h, subl, block_bytes, budget=_BLOCK_BUDGET_BYTES):
    """Pick (G, TH): fused (n, c) maps and output rows handled per grid step."""
    th_cands = [d for d in range(1, h + 1) if h % d == 0 and (d % subl == 0 or d == h)]
    g_cands = [d for d in range(1, nc + 1) if nc % d == 0]
    best, best_payload = None, -1
    for th in th_cands:
        for g in g_cands:
            if block_bytes(g, th) <= budget and g * th > best_payload:
                best_payload, best = g * th, (g, th)
    if best is None:  # pathological shape: smallest legal tile, rely on vmem_limit
        best = (1, min(th_cands))
    return best


# --------------------------------------------------------------------------- impls
@functools.partial(jax.jit, static_argnums=(1,))
def _pixel_unshuffle_fast(x, r):
    n, c, h_in, w_in = x.shape
    h, w = h_in // r, w_in // r
    nc = n * c
    item = jnp.dtype(x.dtype).itemsize
    subl = max(8, 32 // item)  # native sublane multiple for this dtype

    def block_bytes(g, th):
        in_b = g * _round_up(th * r, subl) * _round_up(w_in, 128) * item
        out_b = g * r * r * _round_up(th, subl) * _round_up(w, 128) * item
        return 2 * (in_b + out_b) + 3 * in_b  # double-buffered I/O + relayout temps

    g, th = _choose_tiles(nc, h, subl, block_bytes)

    x3 = x.reshape(nc, h_in, w_in)  # leading-dim merge only: layout preserving / free
    y = pl.pallas_call(
        _make_fast_kernel(r),
        out_shape=jax.ShapeDtypeStruct((nc, r * r, h, w), x.dtype),
        grid=(nc // g, h // th),
        in_specs=[pl.BlockSpec((g, th * r, w_in), lambda gi, hi: (gi, hi, 0))],
        out_specs=pl.BlockSpec((g, r * r, th, w), lambda gi, hi: (gi, 0, hi, 0)),
        compiler_params=pltpu.CompilerParams(
            dimension_semantics=("parallel", "parallel"),
            vmem_limit_bytes=_VMEM_LIMIT_BYTES,
        ),
    )(x3)
    # (N*C, r*r, H, W) -> (N, C*r*r, H, W): leading-dim split/merge, free.
    return y.reshape(n, c * r * r, h, w)


@functools.partial(jax.jit, static_argnums=(1,))
def _pixel_unshuffle_safe(x, r):
    n, c, h_in, w_in = x.shape
    h, w = h_in // r, w_in // r
    nc = n * c
    item = jnp.dtype(x.dtype).itemsize
    subl = max(8, 32 // item)

    def block_bytes(g, th):
        # input block (G, TH, r, W, r): minor dims (W, r) pad to (round(W), 128)
        in_b = g * th * r * _round_up(w, subl) * _round_up(r, 128) * item
        out_b = g * r * r * _round_up(th, subl) * _round_up(w, 128) * item
        return 2 * (in_b + out_b) + in_b

    g, th = _choose_tiles(nc, h, subl, block_bytes)

    x5 = x.reshape(nc, h, r, w, r)
    y = pl.pallas_call(
        _make_safe_kernel(r),
        out_shape=jax.ShapeDtypeStruct((nc, r * r, h, w), x.dtype),
        grid=(nc // g, h // th),
        in_specs=[pl.BlockSpec((g, th, r, w, r), lambda gi, hi: (gi, hi, 0, 0, 0))],
        out_specs=pl.BlockSpec((g, r * r, th, w), lambda gi, hi: (gi, 0, hi, 0)),
        compiler_params=pltpu.CompilerParams(
            dimension_semantics=("parallel", "parallel"),
            vmem_limit_bytes=_VMEM_LIMIT_BYTES,
        ),
    )(x5)
    return y.reshape(n, c * r * r, h, w)


# --------------------------------------------------------------------------- selection
def _reference_pixel_unshuffle(x, r):
    """Pure-JAX reference mirroring the PyTorch grouped-conv pixel_unshuffle."""
    n, c, h_in, w_in = x.shape
    h, w = h_in // r, w_in // r
    x6 = x.reshape(n, c, h, r, w, r)
    x6 = jnp.transpose(x6, (0, 1, 3, 5, 2, 4))
    return x6.reshape(n, c * r * r, h, w)


def _probe_input(shape, dtype):
    size = 1
    for d in shape:
        size *= d
    vals = (jnp.arange(size, dtype=jnp.float32) % 251.0).astype(dtype)
    return vals.reshape(shape)


def _select_impl(shape, dtype, r):
    """Feature-detect whether the dense-layout kernel lowers (and is bit-exact)."""
    probe = _probe_input(shape, dtype)
    want = _reference_pixel_unshuffle(probe, r)
    try:
        got = jax.block_until_ready(_pixel_unshuffle_fast(probe, r))
        if got.shape == want.shape and bool(jnp.array_equal(got, want)):
            return _pixel_unshuffle_fast
    except Exception:
        # Relayout lowering not supported on this toolchain -> conservative kernel.
        pass
    return _pixel_unshuffle_safe


_IMPL_CACHE = {}


def pixel_unshuffle(x, downscale_factor):
    """JAX/Pallas equivalent of the reference PixelUnshuffle.forward."""
    r = int(downscale_factor)
    n, c, h_in, w_in = x.shape
    assert h_in % r == 0 and w_in % r == 0, "spatial dims must be divisible by r"
    key = (tuple(x.shape), str(jnp.dtype(x.dtype)), r)
    impl = _IMPL_CACHE.get(key)
    if impl is None:
        impl = _select_impl(tuple(x.shape), jnp.dtype(x.dtype), r)
        _IMPL_CACHE[key] = impl
    return impl(x, r)


if __name__ == "__main__":
    key = jax.random.PRNGKey(0)
    k1, k2 = jax.random.split(key)

    # Case 1: small shape consistent with the module (downscale_factor=2).
    n, c, h_in, w_in, r = 2, 4, 16, 16, 2
    x = jax.random.normal(k1, (n, c, h_in, w_in), dtype=jnp.float32)
    out = jax.block_until_ready(pixel_unshuffle(x, r))
    assert out.shape == (n, c * r * r, h_in // r, w_in // r), out.shape
    assert jnp.array_equal(out, _reference_pixel_unshuffle(x, r)), "mismatch (r=2)"

    # Case 2: larger downscale factor to exercise the generic path.
    n, c, h_in, w_in, r = 2, 2, 16, 16, 4
    x2 = jax.random.normal(k2, (n, c, h_in, w_in), dtype=jnp.float32)
    out2 = jax.block_until_ready(pixel_unshuffle(x2, r))
    assert out2.shape == (n, c * r * r, h_in // r, w_in // r), out2.shape
    assert jnp.array_equal(out2, _reference_pixel_unshuffle(x2, r)), "mismatch (r=4)"

    print("KERNEL_OK")
</pallas_src>

<mosaic_0001>
module attributes {stable_mosaic.version = 11 : i64} {
  func.func @kernel(%arg0: i32, %arg1: i32, %arg2: memref<8x16x16xf32, #tpu.memory_space<vmem>>, %arg3: memref<8x4x8x8xf32, #tpu.memory_space<vmem>>) attributes {dimension_semantics = [#tpu.dimension_semantics<parallel>, #tpu.dimension_semantics<parallel>], iteration_bounds = array<i64: 1, 1>, scalar_prefetch = 0 : i64, scratch_operands = 0 : i64, tpu.core_type = #tpu.core_type<tc>, window_params = [{transform_indices = @transform_0, window_bounds = array<i64: 8, 16, 16>}, {transform_indices = @transform_1, window_bounds = array<i64: 8, 4, 8, 8>}]} {
    %c0 = arith.constant 0 : index
    %c0_0 = arith.constant 0 : index
    %c0_1 = arith.constant 0 : index
    %0 = vector.load %arg2[%c0, %c0_0, %c0_1] : memref<8x16x16xf32, #tpu.memory_space<vmem>>, vector<8x16x16xf32>
    %1 = tpu.transpose %0, [0, 2, 1] : vector<8x16x16xf32> -> vector<8x16x16xf32>
    %2 = vector.shape_cast %1 : vector<8x16x16xf32> to vector<8x8x2x16xf32>
    %3 = vector.extract_strided_slice %2 {offsets = [0, 0, 0, 0], sizes = [8, 8, 1, 16], strides = [1, 1, 1, 1]} : vector<8x8x2x16xf32> to vector<8x8x1x16xf32>
    %4 = vector.shape_cast %3 : vector<8x8x1x16xf32> to vector<8x8x16xf32>
    %5 = tpu.transpose %4, [0, 2, 1] : vector<8x8x16xf32> -> vector<8x16x8xf32>
    %6 = vector.shape_cast %5 : vector<8x16x8xf32> to vector<8x8x2x8xf32>
    %7 = vector.extract_strided_slice %6 {offsets = [0, 0, 0, 0], sizes = [8, 8, 1, 8], strides = [1, 1, 1, 1]} : vector<8x8x2x8xf32> to vector<8x8x1x8xf32>
    %8 = vector.shape_cast %7 : vector<8x8x1x8xf32> to vector<8x8x8xf32>
    %c0_2 = arith.constant 0 : index
    %c0_3 = arith.constant 0 : index
    %c0_4 = arith.constant 0 : index
    %c0_5 = arith.constant 0 : index
    %9 = vector.load %arg3[%c0_2, %c0_3, %c0_4, %c0_5] : memref<8x4x8x8xf32, #tpu.memory_space<vmem>>, vector<8x1x8x8xf32>
    %10 = vector.shape_cast %9 : vector<8x1x8x8xf32> to vector<8x8x8xf32>
    %11 = vector.shape_cast %8 : vector<8x8x8xf32> to vector<8x1x8x8xf32>
    tpu.vector_store %arg3[%c0_2, %c0_3, %c0_4, %c0_5], %11 {strides = array<i32>} : memref<8x4x8x8xf32, #tpu.memory_space<vmem>>, vector<8x1x8x8xf32>,
    %12 = vector.extract_strided_slice %6 {offsets = [0, 0, 1, 0], sizes = [8, 8, 1, 8], strides = [1, 1, 1, 1]} : vector<8x8x2x8xf32> to vector<8x8x1x8xf32>
    %13 = vector.shape_cast %12 : vector<8x8x1x8xf32> to vector<8x8x8xf32>
    %c0_6 = arith.constant 0 : index
    %c2 = arith.constant 2 : index
    %c0_7 = arith.constant 0 : index
    %c0_8 = arith.constant 0 : index
    %14 = vector.load %arg3[%c0_6, %c2, %c0_7, %c0_8] : memref<8x4x8x8xf32, #tpu.memory_space<vmem>>, vector<8x1x8x8xf32>
    %15 = vector.shape_cast %14 : vector<8x1x8x8xf32> to vector<8x8x8xf32>
    %16 = vector.shape_cast %13 : vector<8x8x8xf32> to vector<8x1x8x8xf32>
    tpu.vector_store %arg3[%c0_6, %c2, %c0_7, %c0_8], %16 {strides = array<i32>} : memref<8x4x8x8xf32, #tpu.memory_space<vmem>>, vector<8x1x8x8xf32>,
    %17 = vector.extract_strided_slice %2 {offsets = [0, 0, 1, 0], sizes = [8, 8, 1, 16], strides = [1, 1, 1, 1]} : vector<8x8x2x16xf32> to vector<8x8x1x16xf32>
    %18 = vector.shape_cast %17 : vector<8x8x1x16xf32> to vector<8x8x16xf32>
    %19 = tpu.transpose %18, [0, 2, 1] : vector<8x8x16xf32> -> vector<8x16x8xf32>
    %20 = vector.shape_cast %19 : vector<8x16x8xf32> to vector<8x8x2x8xf32>
    %21 = vector.extract_strided_slice %20 {offsets = [0, 0, 0, 0], sizes = [8, 8, 1, 8], strides = [1, 1, 1, 1]} : vector<8x8x2x8xf32> to vector<8x8x1x8xf32>
    %22 = vector.shape_cast %21 : vector<8x8x1x8xf32> to vector<8x8x8xf32>
    %c0_9 = arith.constant 0 : index
    %c1 = arith.constant 1 : index
    %c0_10 = arith.constant 0 : index
    %c0_11 = arith.constant 0 : index
    %23 = vector.load %arg3[%c0_9, %c1, %c0_10, %c0_11] : memref<8x4x8x8xf32, #tpu.memory_space<vmem>>, vector<8x1x8x8xf32>
    %24 = vector.shape_cast %23 : vector<8x1x8x8xf32> to vector<8x8x8xf32>
    %25 = vector.shape_cast %22 : vector<8x8x8xf32> to vector<8x1x8x8xf32>
    tpu.vector_store %arg3[%c0_9, %c1, %c0_10, %c0_11], %25 {strides = array<i32>} : memref<8x4x8x8xf32, #tpu.memory_space<vmem>>, vector<8x1x8x8xf32>,
    %26 = vector.extract_strided_slice %20 {offsets = [0, 0, 1, 0], sizes = [8, 8, 1, 8], strides = [1, 1, 1, 1]} : vector<8x8x2x8xf32> to vector<8x8x1x8xf32>
    %27 = vector.shape_cast %26 : vector<8x8x1x8xf32> to vector<8x8x8xf32>
    %c0_12 = arith.constant 0 : index
    %c3 = arith.constant 3 : index
    %c0_13 = arith.constant 0 : index
    %c0_14 = arith.constant 0 : index
    %28 = vector.load %arg3[%c0_12, %c3, %c0_13, %c0_14] : memref<8x4x8x8xf32, #tpu.memory_space<vmem>>, vector<8x1x8x8xf32>
    %29 = vector.shape_cast %28 : vector<8x1x8x8xf32> to vector<8x8x8xf32>
    %30 = vector.shape_cast %27 : vector<8x8x8xf32> to vector<8x1x8x8xf32>
    tpu.vector_store %arg3[%c0_12, %c3, %c0_13, %c0_14], %30 {strides = array<i32>} : memref<8x4x8x8xf32, #tpu.memory_space<vmem>>, vector<8x1x8x8xf32>,
    return
  }
  func.func @transform_0(%arg0: i32, %arg1: i32) -> (i32, i32, i32) {
    %c0_i32 = arith.constant 0 : i32
    %c0_i32_0 = arith.constant 0 : i32
    return %arg0, %arg1, %c0_i32 : i32, i32, i32
  }
  func.func @transform_1(%arg0: i32, %arg1: i32) -> (i32, i32, i32, i32) {
    %c0_i32 = arith.constant 0 : i32
    %c0_i32_0 = arith.constant 0 : i32
    %c0_i32_1 = arith.constant 0 : i32
    return %arg0, %c0_i32, %arg1, %c0_i32_0 : i32, i32, i32, i32
  }
}

module attributes {stable_mosaic.version = 11 : i64} {
  func.func @kernel(%arg0: i32, %arg1: i32, %arg2: memref<8x8x2x8x2xf32, #tpu.memory_space<vmem>>, %arg3: memref<8x4x8x8xf32, #tpu.memory_space<vmem>>) attributes {dimension_semantics = [#tpu.dimension_semantics<parallel>, #tpu.dimension_semantics<parallel>], iteration_bounds = array<i64: 1, 1>, scalar_prefetch = 0 : i64, scratch_operands = 0 : i64, tpu.core_type = #tpu.core_type<tc>, window_params = [{transform_indices = @transform_0, window_bounds = array<i64: 8, 8, 2, 8, 2>}, {transform_indices = @transform_1, window_bounds = array<i64: 8, 4, 8, 8>}]} {
    %c0 = arith.constant 0 : index
    %c0_0 = arith.constant 0 : index
    %c0_1 = arith.constant 0 : index
    %c0_2 = arith.constant 0 : index
    %c0_3 = arith.constant 0 : index
    %0 = vector.load %arg2[%c0, %c0_0, %c0_1, %c0_2, %c0_3] : memref<8x8x2x8x2xf32, #tpu.memory_space<vmem>>, vector<8x8x1x8x1xf32>
    %1 = vector.shape_cast %0 : vector<8x8x1x8x1xf32> to vector<8x8x8xf32>
    %c0_4 = arith.constant 0 : index
    %c0_5 = arith.constant 0 : index
    %c0_6 = arith.constant 0 : index
    %c0_7 = arith.constant 0 : index
    %2 = vector.load %arg3[%c0_4, %c0_5, %c0_6, %c0_7] : memref<8x4x8x8xf32, #tpu.memory_space<vmem>>, vector<8x1x8x8xf32>
    %3 = vector.shape_cast %2 : vector<8x1x8x8xf32> to vector<8x8x8xf32>
    %4 = vector.shape_cast %1 : vector<8x8x8xf32> to vector<8x1x8x8xf32>
    tpu.vector_store %arg3[%c0_4, %c0_5, %c0_6, %c0_7], %4 {strides = array<i32>} : memref<8x4x8x8xf32, #tpu.memory_space<vmem>>, vector<8x1x8x8xf32>,
    %c0_8 = arith.constant 0 : index
    %c0_9 = arith.constant 0 : index
    %c0_10 = arith.constant 0 : index
    %c0_11 = arith.constant 0 : index
    %c1 = arith.constant 1 : index
    %5 = vector.load %arg2[%c0_8, %c0_9, %c0_10, %c0_11, %c1] : memref<8x8x2x8x2xf32, #tpu.memory_space<vmem>>, vector<8x8x1x8x1xf32>
    %6 = vector.shape_cast %5 : vector<8x8x1x8x1xf32> to vector<8x8x8xf32>
    %c0_12 = arith.constant 0 : index
    %c1_13 = arith.constant 1 : index
    %c0_14 = arith.constant 0 : index
    %c0_15 = arith.constant 0 : index
    %7 = vector.load %arg3[%c0_12, %c1_13, %c0_14, %c0_15] : memref<8x4x8x8xf32, #tpu.memory_space<vmem>>, vector<8x1x8x8xf32>
    %8 = vector.shape_cast %7 : vector<8x1x8x8xf32> to vector<8x8x8xf32>
    %9 = vector.shape_cast %6 : vector<8x8x8xf32> to vector<8x1x8x8xf32>
    tpu.vector_store %arg3[%c0_12, %c1_13, %c0_14, %c0_15], %9 {strides = array<i32>} : memref<8x4x8x8xf32, #tpu.memory_space<vmem>>, vector<8x1x8x8xf32>,
    %c0_16 = arith.constant 0 : index
    %c0_17 = arith.constant 0 : index
    %c1_18 = arith.constant 1 : index
    %c0_19 = arith.constant 0 : index
    %c0_20 = arith.constant 0 : index
    %10 = vector.load %arg2[%c0_16, %c0_17, %c1_18, %c0_19, %c0_20] : memref<8x8x2x8x2xf32, #tpu.memory_space<vmem>>, vector<8x8x1x8x1xf32>
    %11 = vector.shape_cast %10 : vector<8x8x1x8x1xf32> to vector<8x8x8xf32>
    %c0_21 = arith.constant 0 : index
    %c2 = arith.constant 2 : index
    %c0_22 = arith.constant 0 : index
    %c0_23 = arith.constant 0 : index
    %12 = vector.load %arg3[%c0_21, %c2, %c0_22, %c0_23] : memref<8x4x8x8xf32, #tpu.memory_space<vmem>>, vector<8x1x8x8xf32>
    %13 = vector.shape_cast %12 : vector<8x1x8x8xf32> to vector<8x8x8xf32>
    %14 = vector.shape_cast %11 : vector<8x8x8xf32> to vector<8x1x8x8xf32>
    tpu.vector_store %arg3[%c0_21, %c2, %c0_22, %c0_23], %14 {strides = array<i32>} : memref<8x4x8x8xf32, #tpu.memory_space<vmem>>, vector<8x1x8x8xf32>,
    %c0_24 = arith.constant 0 : index
    %c0_25 = arith.constant 0 : index
    %c1_26 = arith.constant 1 : index
    %c0_27 = arith.constant 0 : index
    %c1_28 = arith.constant 1 : index
    %15 = vector.load %arg2[%c0_24, %c0_25, %c1_26, %c0_27, %c1_28] : memref<8x8x2x8x2xf32, #tpu.memory_space<vmem>>, vector<8x8x1x8x1xf32>
    %16 = vector.shape_cast %15 : vector<8x8x1x8x1xf32> to vector<8x8x8xf32>
    %c0_29 = arith.constant 0 : index
    %c3 = arith.constant 3 : index
    %c0_30 = arith.constant 0 : index
    %c0_31 = arith.constant 0 : index
    %17 = vector.load %arg3[%c0_29, %c3, %c0_30, %c0_31] : memref<8x4x8x8xf32, #tpu.memory_space<vmem>>, vector<8x1x8x8xf32>
    %18 = vector.shape_cast %17 : vector<8x1x8x8xf32> to vector<8x8x8xf32>
    %19 = vector.shape_cast %16 : vector<8x8x8xf32> to vector<8x1x8x8xf32>
    tpu.vector_store %arg3[%c0_29, %c3, %c0_30, %c0_31], %19 {strides = array<i32>} : memref<8x4x8x8xf32, #tpu.memory_space<vmem>>, vector<8x1x8x8xf32>,
    return
  }
  func.func @transform_0(%arg0: i32, %arg1: i32) -> (i32, i32, i32, i32, i32) {
    %c0_i32 = arith.constant 0 : i32
    %c0_i32_0 = arith.constant 0 : i32
    %c0_i32_1 = arith.constant 0 : i32
    %c0_i32_2 = arith.constant 0 : i32
    return %arg0, %arg1, %c0_i32, %c0_i32_0, %c0_i32_1 : i32, i32, i32, i32, i32
  }
  func.func @transform_1(%arg0: i32, %arg1: i32) -> (i32, i32, i32, i32) {
    %c0_i32 = arith.constant 0 : i32
    %c0_i32_0 = arith.constant 0 : i32
    %c0_i32_1 = arith.constant 0 : i32
    return %arg0, %c0_i32, %arg1, %c0_i32_0 : i32, i32, i32, i32
  }
}

</mosaic_0001>

<llo_original>
// kernel: _pixel_unshuffle_fast.1
$region0: #{_pixel_unshuffle_fast.1}
  #allocation0 [shape = 'u32[]', space=smem, size = 0x4, offset = 0x4, fixed_abs, tag = 'smem constant byte address 0x4 - core index']
  #allocation1 [shape = 'u32[144,128]{1,0:T(1,128)}', space=vmem, size = 0x12000, scoped, tag = 'internal scratch']
  %s0 = inlined_call_operand.hbm [shape: f32[8,16,16], index: 0, kind: input, shape index: {}]
  %s1 = inlined_call_operand.vmem [shape: f32[8,4,8,8], index: 1, kind: output, shape index: {}]
  %s2 = sld [smem:[#allocation0]]
  $region18: #{_pixel_unshuffle_fast.1} parent=0
    _
  %s4 = ssub.s32 1, %s2
  %s5 = scalar_select 0, %s4, %s2
  $region1: #{_pixel_unshuffle_fast.1} parent=0
    #allocation2 [shape = 'u8[65536]{0}', space=vmem, size = 0x10000, scoped, tag = 'input window, operand 0, single buffered']
    #allocation3 [shape = 's32[1]{0}', space=sflag, size = 0x4, scoped, tag = 'scoped memory for _pixel_unshuffle_fast.1']
    %6 = vsyncpa [#allocation3], 0
    // Predicated region
    $region2: #{_pixel_unshuffle_fast.1} parent=1 // pred_check
      _
    $region3: #{_pixel_unshuffle_fast.1} parent=1 // pred_check_branch
      %8 = sbr.rel (0) target = $region5
    $region4: #{_pixel_unshuffle_fast.1} parent=1 // pred_region
      %s10 = ssub.s32 2048, 2048
      %11 = vsyncadd [#allocation3], %s10
      %s12 = sshll.u32 [#allocation2], 4
      %s13 = int_to_ptr.vmem [resolvable:$true] %s12
      %18 = dma.hbm_to_vmem [thread:$0]  %s0, 2048, %s13, [#allocation3], 128, 128, 8
    $region5: #{_pixel_unshuffle_fast.1} parent=1 // pred_fallthru
      _
    // Predicated region
    $region6: #{_pixel_unshuffle_fast.1} parent=1 // pred_check
      _
    $region7: #{_pixel_unshuffle_fast.1} parent=1 // pred_check_branch
      %20 = sbr.rel (0) target = $region9
    $region8: #{_pixel_unshuffle_fast.1} parent=1 // pred_region
      %21 = dma.done [#allocation3], 2048
    $region9: #{_pixel_unshuffle_fast.1} parent=1 // pred_fallthru
      _
    %v22 = vld [vmem:[#allocation2] sm:$0xff]
    %v23 = vld [vmem:[#allocation2 + $0x8] sm:$0xff]
    %v24 = vld [vmem:[#allocation2 + $0x10] sm:$0xff]
    %v25 = vld [vmem:[#allocation2 + $0x18] sm:$0xff]
    %v26 = vld [vmem:[#allocation2 + $0x20] sm:$0xff]
    %v27 = vld [vmem:[#allocation2 + $0x28] sm:$0xff]
    %v28 = vld [vmem:[#allocation2 + $0x30] sm:$0xff]
    %v29 = vld [vmem:[#allocation2 + $0x38] sm:$0xff]
    %v30 = vld [vmem:[#allocation2 + $0x40] sm:$0xff]
    %v31 = vld [vmem:[#allocation2 + $0x48] sm:$0xff]
    %v32 = vld [vmem:[#allocation2 + $0x50] sm:$0xff]
    %v33 = vld [vmem:[#allocation2 + $0x58] sm:$0xff]
    %v34 = vld [vmem:[#allocation2 + $0x60] sm:$0xff]
    %v35 = vld [vmem:[#allocation2 + $0x68] sm:$0xff]
    %v36 = vld [vmem:[#allocation2 + $0x70] sm:$0xff]
    %v37 = vld [vmem:[#allocation2 + $0x78] sm:$0xff]
    %38 = vxpose.xlu0.b32.start [1/16] %v22, 128
    %39 = vxpose.xlu0.b32.cont [2/16] %v23, 128
    %40 = vxpose.xlu0.b32.cont [3/16] 0.0, 128
    %41 = vxpose.xlu0.b32.cont [4/16] 0.0, 128
    %42 = vxpose.xlu0.b32.cont [5/16] 0.0, 128
    %43 = vxpose.xlu0.b32.cont [6/16] 0.0, 128
    %44 = vxpose.xlu0.b32.cont [7/16] 0.0, 128
    %45 = vxpose.xlu0.b32.cont [8/16] 0.0, 128
    %46 = vxpose.xlu0.b32.cont [9/16] 0.0, 128
    %47 = vxpose.xlu0.b32.cont [10/16] 0.0, 128
    %48 = vxpose.xlu0.b32.cont [11/16] 0.0, 128
    %49 = vxpose.xlu0.b32.cont [12/16] 0.0, 128
    %50 = vxpose.xlu0.b32.cont [13/16] 0.0, 128
    %51 = vxpose.xlu0.b32.cont [14/16] 0.0, 128
    %52 = vxpose.xlu0.b32.cont [15/16] 0.0, 128
    %53 = vxpose.xlu0.b32.end [16/16] 0.0, 128
    %v54 = vpop.trf.xlu0
    %v55 = vpop.trf.xlu0
    %v56 = vpop.trf.xlu0
    %v57 = vpop.trf.xlu0
    %v58 = vpop.trf.xlu0
    %v59 = vpop.trf.xlu0
    %v60 = vpop.trf.xlu0
    %v61 = vpop.trf.xlu0
    %v62 = vpop.trf.xlu0
    %v63 = vpop.trf.xlu0
    %v64 = vpop.trf.xlu0
    %v65 = vpop.trf.xlu0
    %v66 = vpop.trf.xlu0
    %v67 = vpop.trf.xlu0
    %v68 = vpop.trf.xlu0
    %v69 = vpop.trf.xlu0
    %70 = vxpose.xlu0.b32.start [1/16] %v24, 128
    %71 = vxpose.xlu0.b32.cont [2/16] %v25, 128
    %72 = vxpose.xlu0.b32.cont [3/16] 0.0, 128
    %73 = vxpose.xlu0.b32.cont [4/16] 0.0, 128
    %74 = vxpose.xlu0.b32.cont [5/16] 0.0, 128
    %75 = vxpose.xlu0.b32.cont [6/16] 0.0, 128
    %76 = vxpose.xlu0.b32.cont [7/16] 0.0, 128
    %77 = vxpose.xlu0.b32.cont [8/16] 0.0, 128
    %78 = vxpose.xlu0.b32.cont [9/16] 0.0, 128
    %79 = vxpose.xlu0.b32.cont [10/16] 0.0, 128
    %80 = vxpose.xlu0.b32.cont [11/16] 0.0, 128
    %81 = vxpose.xlu0.b32.cont [12/16] 0.0, 128
    %82 = vxpose.xlu0.b32.cont [13/16] 0.0, 128
    %83 = vxpose.xlu0.b32.cont [14/16] 0.0, 128
    %84 = vxpose.xlu0.b32.cont [15/16] 0.0, 128
    %85 = vxpose.xlu0.b32.end [16/16] 0.0, 128
    %v86 = vpop.trf.xlu0
    %v87 = vpop.trf.xlu0
    %v88 = vpop.trf.xlu0
    %v89 = vpop.trf.xlu0
    %v90 = vpop.trf.xlu0
    %v91 = vpop.trf.xlu0
    %v92 = vpop.trf.xlu0
    %v93 = vpop.trf.xlu0
    %v94 = vpop.trf.xlu0
    %v95 = vpop.trf.xlu0
    %v96 = vpop.trf.xlu0
    %v97 = vpop.trf.xlu0
    %v98 = vpop.trf.xlu0
    %v99 = vpop.trf.xlu0
    %v100 = vpop.trf.xlu0
    %v101 = vpop.trf.xlu0
    %102 = vxpose.xlu0.b32.start [1/16] %v26, 128
    %103 = vxpose.xlu0.b32.cont [2/16] %v27, 128
    %104 = vxpose.xlu0.b32.cont [3/16] 0.0, 128
    %105 = vxpose.xlu0.b32.cont [4/16] 0.0, 128
    %106 = vxpose.xlu0.b32.cont [5/16] 0.0, 128
    %107 = vxpose.xlu0.b32.cont [6/16] 0.0, 128
    %108 = vxpose.xlu0.b32.cont [7/16] 0.0, 128
    %109 = vxpose.xlu0.b32.cont [8/16] 0.0, 128
    %110 = vxpose.xlu0.b32.cont [9/16] 0.0, 128
    %111 = vxpose.xlu0.b32.cont [10/16] 0.0, 128
    %112 = vxpose.xlu0.b32.cont [11/16] 0.0, 128
    %113 = vxpose.xlu0.b32.cont [12/16] 0.0, 128
    %114 = vxpose.xlu0.b32.cont [13/16] 0.0, 128
    %115 = vxpose.xlu0.b32.cont [14/16] 0.0, 128
    %116 = vxpose.xlu0.b32.cont [15/16] 0.0, 128
    %117 = vxpose.xlu0.b32.end [16/16] 0.0, 128
    %v118 = vpop.trf.xlu0
    %v119 = vpop.trf.xlu0
    %v120 = vpop.trf.xlu0
    %v121 = vpop.trf.xlu0
    %v122 = vpop.trf.xlu0
    %v123 = vpop.trf.xlu0
    %v124 = vpop.trf.xlu0
    %v125 = vpop.trf.xlu0
    %v126 = vpop.trf.xlu0
    %v127 = vpop.trf.xlu0
    %v128 = vpop.trf.xlu0
    %v129 = vpop.trf.xlu0
    %v130 = vpop.trf.xlu0
    %v131 = vpop.trf.xlu0
    %v132 = vpop.trf.xlu0
    %v133 = vpop.trf.xlu0
    %134 = vxpose.xlu0.b32.start [1/16] %v28, 128
    %135 = vxpose.xlu0.b32.cont [2/16] %v29, 128
    %136 = vxpose.xlu0.b32.cont [3/16] 0.0, 128
    %137 = vxpose.xlu0.b32.cont [4/16] 0.0, 128
    %138 = vxpose.xlu0.b32.cont [5/16] 0.0, 128
    %139 = vxpose.xlu0.b32.cont [6/16] 0.0, 128
    %140 = vxpose.xlu0.b32.cont [7/16] 0.0, 128
    %141 = vxpose.xlu0.b32.cont [8/16] 0.0, 128
    %142 = vxpose.xlu0.b32.cont [9/16] 0.0, 128
    %143 = vxpose.xlu0.b32.cont [10/16] 0.0, 128
    %144 = vxpose.xlu0.b32.cont [11/16] 0.0, 128
    %145 = vxpose.xlu0.b32.cont [12/16] 0.0, 128
    %146 = vxpose.xlu0.b32.cont [13/16] 0.0, 128
    %147 = vxpose.xlu0.b32.cont [14/16] 0.0, 128
    %148 = vxpose.xlu0.b32.cont [15/16] 0.0, 128
    %149 = vxpose.xlu0.b32.end [16/16] 0.0, 128
    %v150 = vpop.trf.xlu0
    %v151 = vpop.trf.xlu0
    %v152 = vpop.trf.xlu0
    %v153 = vpop.trf.xlu0
    %v154 = vpop.trf.xlu0
    %v155 = vpop.trf.xlu0
    %v156 = vpop.trf.xlu0
    %v157 = vpop.trf.xlu0
    %v158 = vpop.trf.xlu0
    %v159 = vpop.trf.xlu0
    %v160 = vpop.trf.xlu0
    %v161 = vpop.trf.xlu0
    %v162 = vpop.trf.xlu0
    %v163 = vpop.trf.xlu0
    %v164 = vpop.trf.xlu0
    %v165 = vpop.trf.xlu0
    %166 = vxpose.xlu0.b32.start [1/16] %v30, 128
    %167 = vxpose.xlu0.b32.cont [2/16] %v31, 128
    %168 = vxpose.xlu0.b32.cont [3/16] 0.0, 128
    %169 = vxpose.xlu0.b32.cont [4/16] 0.0, 128
    %170 = vxpose.xlu0.b32.cont [5/16] 0.0, 128
    %171 = vxpose.xlu0.b32.cont [6/16] 0.0, 128
    %172 = vxpose.xlu0.b32.cont [7/16] 0.0, 128
    %173 = vxpose.xlu0.b32.cont [8/16] 0.0, 128
    %174 = vxpose.xlu0.b32.cont [9/16] 0.0, 128
    %175 = vxpose.xlu0.b32.cont [10/16] 0.0, 128
    %176 = vxpose.xlu0.b32.cont [11/16] 0.0, 128
    %177 = vxpose.xlu0.b32.cont [12/16] 0.0, 128
    %178 = vxpose.xlu0.b32.cont [13/16] 0.0, 128
    %179 = vxpose.xlu0.b32.cont [14/16] 0.0, 128
    %180 = vxpose.xlu0.b32.cont [15/16] 0.0, 128
    %181 = vxpose.xlu0.b32.end [16/16] 0.0, 128
    %v182 = vpop.trf.xlu0
    %v183 = vpop.trf.xlu0
    %v184 = vpop.trf.xlu0
    %v185 = vpop.trf.xlu0
    %v186 = vpop.trf.xlu0
    %v187 = vpop.trf.xlu0
    %v188 = vpop.trf.xlu0
    %v189 = vpop.trf.xlu0
    %v190 = vpop.trf.xlu0
    %v191 = vpop.trf.xlu0
    %v192 = vpop.trf.xlu0
    %v193 = vpop.trf.xlu0
    %v194 = vpop.trf.xlu0
    %v195 = vpop.trf.xlu0
    %v196 = vpop.trf.xlu0
    %v197 = vpop.trf.xlu0
    %198 = vxpose.xlu0.b32.start [1/16] %v32, 128
    %199 = vxpose.xlu0.b32.cont [2/16] %v33, 128
    %200 = vxpose.xlu0.b32.cont [3/16] 0.0, 128
    %201 = vxpose.xlu0.b32.cont [4/16] 0.0, 128
    %202 = vxpose.xlu0.b32.cont [5/16] 0.0, 128
    %203 = vxpose.xlu0.b32.cont [6/16] 0.0, 128
    %204 = vxpose.xlu0.b32.cont [7/16] 0.0, 128
    %205 = vxpose.xlu0.b32.cont [8/16] 0.0, 128
    %206 = vxpose.xlu0.b32.cont [9/16] 0.0, 128
    %207 = vxpose.xlu0.b32.cont [10/16] 0.0, 128
    %208 = vxpose.xlu0.b32.cont [11/16] 0.0, 128
    %209 = vxpose.xlu0.b32.cont [12/16] 0.0, 128
    %210 = vxpose.xlu0.b32.cont [13/16] 0.0, 128
    %211 = vxpose.xlu0.b32.cont [14/16] 0.0, 128
    %212 = vxpose.xlu0.b32.cont [15/16] 0.0, 128
    %213 = vxpose.xlu0.b32.end [16/16] 0.0, 128
    %v214 = vpop.trf.xlu0
    %v215 = vpop.trf.xlu0
    %v216 = vpop.trf.xlu0
    %v217 = vpop.trf.xlu0
    %v218 = vpop.trf.xlu0
    %v219 = vpop.trf.xlu0
    %v220 = vpop.trf.xlu0
    %v221 = vpop.trf.xlu0
    %v222 = vpop.trf.xlu0
    %v223 = vpop.trf.xlu0
    %v224 = vpop.trf.xlu0
    %v225 = vpop.trf.xlu0
    %v226 = vpop.trf.xlu0
    %v227 = vpop.trf.xlu0
    %v228 = vpop.trf.xlu0
    %v229 = vpop.trf.xlu0
    %230 = vxpose.xlu0.b32.start [1/16] %v34, 128
    %231 = vxpose.xlu0.b32.cont [2/16] %v35, 128
    %232 = vxpose.xlu0.b32.cont [3/16] 0.0, 128
    %233 = vxpose.xlu0.b32.cont [4/16] 0.0, 128
    %234 = vxpose.xlu0.b32.cont [5/16] 0.0, 128
    %235 = vxpose.xlu0.b32.cont [6/16] 0.0, 128
    %236 = vxpose.xlu0.b32.cont [7/16] 0.0, 128
    %237 = vxpose.xlu0.b32.cont [8/16] 0.0, 128
    %238 = vxpose.xlu0.b32.cont [9/16] 0.0, 128
    %239 = vxpose.xlu0.b32.cont [10/16] 0.0, 128
    %240 = vxpose.xlu0.b32.cont [11/16] 0.0, 128
    %241 = vxpose.xlu0.b32.cont [12/16] 0.0, 128
    %242 = vxpose.xlu0.b32.cont [13/16] 0.0, 128
    %243 = vxpose.xlu0.b32.cont [14/16] 0.0, 128
    %244 = vxpose.xlu0.b32.cont [15/16] 0.0, 128
    %245 = vxpose.xlu0.b32.end [16/16] 0.0, 128
    %v246 = vpop.trf.xlu0
    %v247 = vpop.trf.xlu0
    %v248 = vpop.trf.xlu0
    %v249 = vpop.trf.xlu0
    %v250 = vpop.trf.xlu0
    %v251 = vpop.trf.xlu0
    %v252 = vpop.trf.xlu0
    %v253 = vpop.trf.xlu0
    %v254 = vpop.trf.xlu0
    %v255 = vpop.trf.xlu0
    %v256 = vpop.trf.xlu0
    %v257 = vpop.trf.xlu0
    %v258 = vpop.trf.xlu0
    %v259 = vpop.trf.xlu0
    %v260 = vpop.trf.xlu0
    %v261 = vpop.trf.xlu0
    %262 = vxpose.xlu0.b32.start [1/16] %v36, 128
    %263 = vxpose.xlu0.b32.cont [2/16] %v37, 128
    %264 = vxpose.xlu0.b32.cont [3/16] 0.0, 128
    %265 = vxpose.xlu0.b32.cont [4/16] 0.0, 128
    %266 = vxpose.xlu0.b32.cont [5/16] 0.0, 128
    %267 = vxpose.xlu0.b32.cont [6/16] 0.0, 128
    %268 = vxpose.xlu0.b32.cont [7/16] 0.0, 128
    %269 = vxpose.xlu0.b32.cont [8/16] 0.0, 128
    %270 = vxpose.xlu0.b32.cont [9/16] 0.0, 128
    %271 = vxpose.xlu0.b32.cont [10/16] 0.0, 128
    %272 = vxpose.xlu0.b32.cont [11/16] 0.0, 128
    %273 = vxpose.xlu0.b32.cont [12/16] 0.0, 128
    %274 = vxpose.xlu0.b32.cont [13/16] 0.0, 128
    %275 = vxpose.xlu0.b32.cont [14/16] 0.0, 128
    %276 = vxpose.xlu0.b32.cont [15/16] 0.0, 128
    %277 = vxpose.xlu0.b32.end [16/16] 0.0, 128
    %v278 = vpop.trf.xlu0
    %v279 = vpop.trf.xlu0
    %v280 = vpop.trf.xlu0
    %v281 = vpop.trf.xlu0
    %v282 = vpop.trf.xlu0
    %v283 = vpop.trf.xlu0
    %v284 = vpop.trf.xlu0
    %v285 = vpop.trf.xlu0
    %v286 = vpop.trf.xlu0
    %v287 = vpop.trf.xlu0
    %v288 = vpop.trf.xlu0
    %v289 = vpop.trf.xlu0
    %v290 = vpop.trf.xlu0
    %v291 = vpop.trf.xlu0
    %v292 = vpop.trf.xlu0
    %v293 = vpop.trf.xlu0
    %v310 = vcombine.high %v54, %v54
    %v312 = vunpack.c.l.s4 1983009808
    %v313 = vunpack.c.0.s8 %v312
    %v314 = vlaneseq
    %v315 = vshrl.u32 %v314, 7
    %v316 = vsub.s32 %v313, %v315
    %v317 = vrot.slane %v54, %v316
    %v319 = vunpack.c.l.s4 1983009808
    %v320 = vunpack.c.0.s8 %v319
    %v321 = vlaneseq
    %v322 = vshrl.u32 %v321, 7
    %v323 = vsub.s32 %v320, %v322
    %v324 = vrot.slane %v310, %v323
    %v325 = vcombine.high %v317, %v317
    %v326 = vcombine.high %v324, %v324
    %v327 = vcombine.high %v55, %v55
    %v329 = vunpack.c.l.s4 1983009808
    %v330 = vunpack.c.0.s8 %v329
    %v331 = vlaneseq
    %v332 = vshrl.u32 %v331, 7
    %v333 = vsub.s32 %v330, %v332
    %v334 = vrot.slane %v55, %v333
    %v336 = vunpack.c.l.s4 1983009808
    %v337 = vunpack.c.0.s8 %v336
    %v338 = vlaneseq
    %v339 = vshrl.u32 %v338, 7
    %v340 = vsub.s32 %v337, %v339
    %v341 = vrot.slane %v327, %v340
    %v342 = vcombine.high %v334, %v334
    %v343 = vcombine.high %v341, %v341
    %v344 = vcombine.high %v86, %v86
    %v346 = vunpack.c.l.s4 1983009808
    %v347 = vunpack.c.0.s8 %v346
    %v348 = vlaneseq
    %v349 = vshrl.u32 %v348, 7
    %v350 = vsub.s32 %v347, %v349
    %v351 = vrot.slane %v86, %v350
    %v353 = vunpack.c.l.s4 1983009808
    %v354 = vunpack.c.0.s8 %v353
    %v355 = vlaneseq
    %v356 = vshrl.u32 %v355, 7
    %v357 = vsub.s32 %v354, %v356
    %v358 = vrot.slane %v344, %v357
    %v359 = vcombine.high %v351, %v351
    %v360 = vcombine.high %v358, %v358
    %v361 = vcombine.high %v87, %v87
    %v363 = vunpack.c.l.s4 1983009808
    %v364 = vunpack.c.0.s8 %v363
    %v365 = vlaneseq
    %v366 = vshrl.u32 %v365, 7
    %v367 = vsub.s32 %v364, %v366
    %v368 = vrot.slane %v87, %v367
    %v370 = vunpack.c.l.s4 1983009808
    %v371 = vunpack.c.0.s8 %v370
    %v372 = vlaneseq
    %v373 = vshrl.u32 %v372, 7
    %v374 = vsub.s32 %v371, %v373
    %v375 = vrot.slane %v361, %v374
    %v376 = vcombine.high %v368, %v368
    %v377 = vcombine.high %v375, %v375
    %v378 = vcombine.high %v118, %v118
    %v380 = vunpack.c.l.s4 1983009808
    %v381 = vunpack.c.0.s8 %v380
    %v382 = vlaneseq
    %v383 = vshrl.u32 %v382, 7
    %v384 = vsub.s32 %v381, %v383
    %v385 = vrot.slane %v118, %v384
    %v387 = vunpack.c.l.s4 1983009808
    %v388 = vunpack.c.0.s8 %v387
    %v389 = vlaneseq
    %v390 = vshrl.u32 %v389, 7
    %v391 = vsub.s32 %v388, %v390
    %v392 = vrot.slane %v378, %v391
    %v393 = vcombine.high %v385, %v385
    %v394 = vcombine.high %v392, %v392
    %v395 = vcombine.high %v119, %v119
    %v397 = vunpack.c.l.s4 1983009808
    %v398 = vunpack.c.0.s8 %v397
    %v399 = vlaneseq
    %v400 = vshrl.u32 %v399, 7
    %v401 = vsub.s32 %v398, %v400
    %v402 = vrot.slane %v119, %v401
    %v404 = vunpack.c.l.s4 1983009808
    %v405 = vunpack.c.0.s8 %v404
    %v406 = vlaneseq
    %v407 = vshrl.u32 %v406, 7
    %v408 = vsub.s32 %v405, %v407
    %v409 = vrot.slane %v395, %v408
    %v410 = vcombine.high %v402, %v402
    %v411 = vcombine.high %v409, %v409
    %v412 = vcombine.high %v150, %v150
    %v414 = vunpack.c.l.s4 1983009808
    %v415 = vunpack.c.0.s8 %v414
    %v416 = vlaneseq
    %v417 = vshrl.u32 %v416, 7
    %v418 = vsub.s32 %v415, %v417
    %v419 = vrot.slane %v150, %v418
    %v421 = vunpack.c.l.s4 1983009808
    %v422 = vunpack.c.0.s8 %v421
    %v423 = vlaneseq
    %v424 = vshrl.u32 %v423, 7
    %v425 = vsub.s32 %v422, %v424
    %v426 = vrot.slane %v412, %v425
    %v427 = vcombine.high %v419, %v419
    %v428 = vcombine.high %v426, %v426
    %v429 = vcombine.high %v151, %v151
    %v431 = vunpack.c.l.s4 1983009808
    %v432 = vunpack.c.0.s8 %v431
    %v433 = vlaneseq
    %v434 = vshrl.u32 %v433, 7
    %v435 = vsub.s32 %v432, %v434
    %v436 = vrot.slane %v151, %v435
    %v438 = vunpack.c.l.s4 1983009808
    %v439 = vunpack.c.0.s8 %v438
    %v440 = vlaneseq
    %v441 = vshrl.u32 %v440, 7
    %v442 = vsub.s32 %v439, %v441
    %v443 = vrot.slane %v429, %v442
    %v444 = vcombine.high %v436, %v436
    %v445 = vcombine.high %v443, %v443
    %v446 = vcombine.high %v182, %v182
    %v448 = vunpack.c.l.s4 1983009808
    %v449 = vunpack.c.0.s8 %v448
    %v450 = vlaneseq
    %v451 = vshrl.u32 %v450, 7
    %v452 = vsub.s32 %v449, %v451
    %v453 = vrot.slane %v182, %v452
    %v455 = vunpack.c.l.s4 1983009808
    %v456 = vunpack.c.0.s8 %v455
    %v457 = vlaneseq
    %v458 = vshrl.u32 %v457, 7
    %v459 = vsub.s32 %v456, %v458
    %v460 = vrot.slane %v446, %v459
    %v461 = vcombine.high %v453, %v453
    %v462 = vcombine.high %v460, %v460
    %v463 = vcombine.high %v183, %v183
    %v465 = vunpack.c.l.s4 1983009808
    %v466 = vunpack.c.0.s8 %v465
    %v467 = vlaneseq
    %v468 = vshrl.u32 %v467, 7
    %v469 = vsub.s32 %v466, %v468
    %v470 = vrot.slane %v183, %v469
    %v472 = vunpack.c.l.s4 1983009808
    %v473 = vunpack.c.0.s8 %v472
    %v474 = vlaneseq
    %v475 = vshrl.u32 %v474, 7
    %v476 = vsub.s32 %v473, %v475
    %v477 = vrot.slane %v463, %v476
    %v478 = vcombine.high %v470, %v470
    %v479 = vcombine.high %v477, %v477
    %v480 = vcombine.high %v214, %v214
    %v482 = vunpack.c.l.s4 1983009808
    %v483 = vunpack.c.0.s8 %v482
    %v484 = vlaneseq
    %v485 = vshrl.u32 %v484, 7
    %v486 = vsub.s32 %v483, %v485
    %v487 = vrot.slane %v214, %v486
    %v489 = vunpack.c.l.s4 1983009808
    %v490 = vunpack.c.0.s8 %v489
    %v491 = vlaneseq
    %v492 = vshrl.u32 %v491, 7
    %v493 = vsub.s32 %v490, %v492
    %v494 = vrot.slane %v480, %v493
    %v495 = vcombine.high %v487, %v487
    %v496 = vcombine.high %v494, %v494
    %v497 = vcombine.high %v215, %v215
    %v499 = vunpack.c.l.s4 1983009808
    %v500 = vunpack.c.0.s8 %v499
    %v501 = vlaneseq
    %v502 = vshrl.u32 %v501, 7
    %v503 = vsub.s32 %v500, %v502
    %v504 = vrot.slane %v215, %v503
    %v506 = vunpack.c.l.s4 1983009808
    %v507 = vunpack.c.0.s8 %v506
    %v508 = vlaneseq
    %v509 = vshrl.u32 %v508, 7
    %v510 = vsub.s32 %v507, %v509
    %v511 = vrot.slane %v497, %v510
    %v512 = vcombine.high %v504, %v504
    %v513 = vcombine.high %v511, %v511
    %v514 = vcombine.high %v246, %v246
    %v516 = vunpack.c.l.s4 1983009808
    %v517 = vunpack.c.0.s8 %v516
    %v518 = vlaneseq
    %v519 = vshrl.u32 %v518, 7
    %v520 = vsub.s32 %v517, %v519
    %v521 = vrot.slane %v246, %v520
    %v523 = vunpack.c.l.s4 1983009808
    %v524 = vunpack.c.0.s8 %v523
    %v525 = vlaneseq
    %v526 = vshrl.u32 %v525, 7
    %v527 = vsub.s32 %v524, %v526
    %v528 = vrot.slane %v514, %v527
    %v529 = vcombine.high %v521, %v521
    %v530 = vcombine.high %v528, %v528
    %v531 = vcombine.high %v247, %v247
    %v533 = vunpack.c.l.s4 1983009808
    %v534 = vunpack.c.0.s8 %v533
    %v535 = vlaneseq
    %v536 = vshrl.u32 %v535, 7
    %v537 = vsub.s32 %v534, %v536
    %v538 = vrot.slane %v247, %v537
    %v540 = vunpack.c.l.s4 1983009808
    %v541 = vunpack.c.0.s8 %v540
    %v542 = vlaneseq
    %v543 = vshrl.u32 %v542, 7
    %v544 = vsub.s32 %v541, %v543
    %v545 = vrot.slane %v531, %v544
    %v546 = vcombine.high %v538, %v538
    %v547 = vcombine.high %v545, %v545
    %v548 = vcombine.high %v278, %v278
    %v550 = vunpack.c.l.s4 1983009808
    %v551 = vunpack.c.0.s8 %v550
    %v552 = vlaneseq
    %v553 = vshrl.u32 %v552, 7
    %v554 = vsub.s32 %v551, %v553
    %v555 = vrot.slane %v278, %v554
    %v557 = vunpack.c.l.s4 1983009808
    %v558 = vunpack.c.0.s8 %v557
    %v559 = vlaneseq
    %v560 = vshrl.u32 %v559, 7
    %v561 = vsub.s32 %v558, %v560
    %v562 = vrot.slane %v548, %v561
    %v563 = vcombine.high %v555, %v555
    %v564 = vcombine.high %v562, %v562
    %v565 = vcombine.high %v279, %v279
    %v567 = vunpack.c.l.s4 1983009808
    %v568 = vunpack.c.0.s8 %v567
    %v569 = vlaneseq
    %v570 = vshrl.u32 %v569, 7
    %v571 = vsub.s32 %v568, %v570
    %v572 = vrot.slane %v279, %v571
    %v574 = vunpack.c.l.s4 1983009808
    %v575 = vunpack.c.0.s8 %v574
    %v576 = vlaneseq
    %v577 = vshrl.u32 %v576, 7
    %v578 = vsub.s32 %v575, %v577
    %v579 = vrot.slane %v565, %v578
    %v580 = vcombine.high %v572, %v572
    %v581 = vcombine.high %v579, %v579
    %v582 = vlaneseq
    %v583 = vshrl.u32 %v582, 7
    %v584 = vsub.s32 0, %v583
    %v585 = vrot.slane %v317, %v584
    %v586 = vlaneseq
    %v587 = vshrl.u32 %v586, 7
    %v588 = vsub.s32 0, %v587
    %v589 = vrot.slane %v325, %v588
    %v590 = vlaneseq
    %v591 = vshrl.u32 %v590, 7
    %v592 = vsub.s32 0, %v591
    %v593 = vrot.slane %v324, %v592
    %v594 = vlaneseq
    %v595 = vshrl.u32 %v594, 7
    %v596 = vsub.s32 0, %v595
    %v597 = vrot.slane %v326, %v596
    %v598 = vlaneseq
    %v599 = vshrl.u32 %v598, 7
    %v600 = vsub.s32 0, %v599
    %v601 = vrot.slane %v334, %v600
    %v602 = vlaneseq
    %v603 = vshrl.u32 %v602, 7
    %v604 = vsub.s32 0, %v603
    %v605 = vrot.slane %v342, %v604
    %v606 = vlaneseq
    %v607 = vshrl.u32 %v606, 7
    %v608 = vsub.s32 0, %v607
    %v609 = vrot.slane %v341, %v608
    %v610 = vlaneseq
    %v611 = vshrl.u32 %v610, 7
    %v612 = vsub.s32 0, %v611
    %v613 = vrot.slane %v343, %v612
    %v614 = vlaneseq
    %v615 = vshrl.u32 %v614, 7
    %v616 = vsub.s32 0, %v615
    %v617 = vrot.slane %v351, %v616
    %v618 = vlaneseq
    %v619 = vshrl.u32 %v618, 7
    %v620 = vsub.s32 0, %v619
    %v621 = vrot.slane %v359, %v620
    %v622 = vlaneseq
    %v623 = vshrl.u32 %v622, 7
    %v624 = vsub.s32 0, %v623
    %v625 = vrot.slane %v358, %v624
    %v626 = vlaneseq
    %v627 = vshrl.u32 %v626, 7
    %v628 = vsub.s32 0, %v627
    %v629 = vrot.slane %v360, %v628
    %v630 = vlaneseq
    %v631 = vshrl.u32 %v630, 7
    %v632 = vsub.s32 0, %v631
    %v633 = vrot.slane %v368, %v632
    %v634 = vlaneseq
    %v635 = vshrl.u32 %v634, 7
    %v636 = vsub.s32 0, %v635
    %v637 = vrot.slane %v376, %v636
    %v638 = vlaneseq
    %v639 = vshrl.u32 %v638, 7
    %v640 = vsub.s32 0, %v639
    %v641 = vrot.slane %v375, %v640
    %v642 = vlaneseq
    %v643 = vshrl.u32 %v642, 7
    %v644 = vsub.s32 0, %v643
    %v645 = vrot.slane %v377, %v644
    %v646 = vlaneseq
    %v647 = vshrl.u32 %v646, 7
    %v648 = vsub.s32 0, %v647
    %v649 = vrot.slane %v385, %v648
    %v650 = vlaneseq
    %v651 = vshrl.u32 %v650, 7
    %v652 = vsub.s32 0, %v651
    %v653 = vrot.slane %v393, %v652
    %v654 = vlaneseq
    %v655 = vshrl.u32 %v654, 7
    %v656 = vsub.s32 0, %v655
    %v657 = vrot.slane %v392, %v656
    %v658 = vlaneseq
    %v659 = vshrl.u32 %v658, 7
    %v660 = vsub.s32 0, %v659
    %v661 = vrot.slane %v394, %v660
    %v662 = vlaneseq
    %v663 = vshrl.u32 %v662, 7
    %v664 = vsub.s32 0, %v663
    %v665 = vrot.slane %v402, %v664
    %v666 = vlaneseq
    %v667 = vshrl.u32 %v666, 7
    %v668 = vsub.s32 0, %v667
    %v669 = vrot.slane %v410, %v668
    %v670 = vlaneseq
    %v671 = vshrl.u32 %v670, 7
    %v672 = vsub.s32 0, %v671
    %v673 = vrot.slane %v409, %v672
    %v674 = vlaneseq
    %v675 = vshrl.u32 %v674, 7
    %v676 = vsub.s32 0, %v675
    %v677 = vrot.slane %v411, %v676
    %v678 = vlaneseq
    %v679 = vshrl.u32 %v678, 7
    %v680 = vsub.s32 0, %v679
    %v681 = vrot.slane %v419, %v680
    %v682 = vlaneseq
    %v683 = vshrl.u32 %v682, 7
    %v684 = vsub.s32 0, %v683
    %v685 = vrot.slane %v427, %v684
    %v686 = vlaneseq
    %v687 = vshrl.u32 %v686, 7
    %v688 = vsub.s32 0, %v687
    %v689 = vrot.slane %v426, %v688
    %v690 = vlaneseq
    %v691 = vshrl.u32 %v690, 7
    %v692 = vsub.s32 0, %v691
    %v693 = vrot.slane %v428, %v692
    %v694 = vlaneseq
    %v695 = vshrl.u32 %v694, 7
    %v696 = vsub.s32 0, %v695
    %v697 = vrot.slane %v436, %v696
    %v698 = vlaneseq
    %v699 = vshrl.u32 %v698, 7
    %v700 = vsub.s32 0, %v699
    %v701 = vrot.slane %v444, %v700
    %v702 = vlaneseq
    %v703 = vshrl.u32 %v702, 7
    %v704 = vsub.s32 0, %v703
    %v705 = vrot.slane %v443, %v704
    %v706 = vlaneseq
    %v707 = vshrl.u32 %v706, 7
    %v708 = vsub.s32 0, %v707
    %v709 = vrot.slane %v445, %v708
    %v710 = vlaneseq
    %v711 = vshrl.u32 %v710, 7
    %v712 = vsub.s32 0, %v711
    %v713 = vrot.slane %v453, %v712
    %v714 = vlaneseq
    %v715 = vshrl.u32 %v714, 7
    %v716 = vsub.s32 0, %v715
    %v717 = vrot.slane %v461, %v716
    %v718 = vlaneseq
    %v719 = vshrl.u32 %v718, 7
    %v720 = vsub.s32 0, %v719
    %v721 = vrot.slane %v460, %v720
    %v722 = vlaneseq
    %v723 = vshrl.u32 %v722, 7
    %v724 = vsub.s32 0, %v723
    %v725 = vrot.slane %v462, %v724
    %v726 = vlaneseq
    %v727 = vshrl.u32 %v726, 7
    %v728 = vsub.s32 0, %v727
    %v729 = vrot.slane %v470, %v728
    %v730 = vlaneseq
    %v731 = vshrl.u32 %v730, 7
    %v732 = vsub.s32 0, %v731
    %v733 = vrot.slane %v478, %v732
    %v734 = vlaneseq
    %v735 = vshrl.u32 %v734, 7
    %v736 = vsub.s32 0, %v735
    %v737 = vrot.slane %v477, %v736
    %v738 = vlaneseq
    %v739 = vshrl.u32 %v738, 7
    %v740 = vsub.s32 0, %v739
    %v741 = vrot.slane %v479, %v740
    %v742 = vlaneseq
    %v743 = vshrl.u32 %v742, 7
    %v744 = vsub.s32 0, %v743
    %v745 = vrot.slane %v487, %v744
    %v746 = vlaneseq
    %v747 = vshrl.u32 %v746, 7
    %v748 = vsub.s32 0, %v747
    %v749 = vrot.slane %v495, %v748
    %v750 = vlaneseq
    %v751 = vshrl.u32 %v750, 7
    %v752 = vsub.s32 0, %v751
    %v753 = vrot.slane %v494, %v752
    %v754 = vlaneseq
    %v755 = vshrl.u32 %v754, 7
    %v756 = vsub.s32 0, %v755
    %v757 = vrot.slane %v496, %v756
    %v758 = vlaneseq
    %v759 = vshrl.u32 %v758, 7
    %v760 = vsub.s32 0, %v759
    %v761 = vrot.slane %v504, %v760
    %v762 = vlaneseq
    %v763 = vshrl.u32 %v762, 7
    %v764 = vsub.s32 0, %v763
    %v765 = vrot.slane %v512, %v764
    %v766 = vlaneseq
    %v767 = vshrl.u32 %v766, 7
    %v768 = vsub.s32 0, %v767
    %v769 = vrot.slane %v511, %v768
    %v770 = vlaneseq
    %v771 = vshrl.u32 %v770, 7
    %v772 = vsub.s32 0, %v771
    %v773 = vrot.slane %v513, %v772
    %v774 = vlaneseq
    %v775 = vshrl.u32 %v774, 7
    %v776 = vsub.s32 0, %v775
    %v777 = vrot.slane %v521, %v776
    %v778 = vlaneseq
    %v779 = vshrl.u32 %v778, 7
    %v780 = vsub.s32 0, %v779
    %v781 = vrot.slane %v529, %v780
    %v782 = vlaneseq
    %v783 = vshrl.u32 %v782, 7
    %v784 = vsub.s32 0, %v783
    %v785 = vrot.slane %v528, %v784
    %v786 = vlaneseq
    %v787 = vshrl.u32 %v786, 7
    %v788 = vsub.s32 0, %v787
    %v789 = vrot.slane %v530, %v788
    %v790 = vlaneseq
    %v791 = vshrl.u32 %v790, 7
    %v792 = vsub.s32 0, %v791
    %v793 = vrot.slane %v538, %v792
    %v794 = vlaneseq
    %v795 = vshrl.u32 %v794, 7
    %v796 = vsub.s32 0, %v795
    %v797 = vrot.slane %v546, %v796
    %v798 = vlaneseq
    %v799 = vshrl.u32 %v798, 7
    %v800 = vsub.s32 0, %v799
    %v801 = vrot.slane %v545, %v800
    %v802 = vlaneseq
    %v803 = vshrl.u32 %v802, 7
    %v804 = vsub.s32 0, %v803
    %v805 = vrot.slane %v547, %v804
    %v806 = vlaneseq
    %v807 = vshrl.u32 %v806, 7
    %v808 = vsub.s32 0, %v807
    %v809 = vrot.slane %v555, %v808
    %v810 = vlaneseq
    %v811 = vshrl.u32 %v810, 7
    %v812 = vsub.s32 0, %v811
    %v813 = vrot.slane %v563, %v812
    %v814 = vlaneseq
    %v815 = vshrl.u32 %v814, 7
    %v816 = vsub.s32 0, %v815
    %v817 = vrot.slane %v562, %v816
    %v818 = vlaneseq
    %v819 = vshrl.u32 %v818, 7
    %v820 = vsub.s32 0, %v819
    %v821 = vrot.slane %v564, %v820
    %v822 = vlaneseq
    %v823 = vshrl.u32 %v822, 7
    %v824 = vsub.s32 0, %v823
    %v825 = vrot.slane %v572, %v824
    %v826 = vlaneseq
    %v827 = vshrl.u32 %v826, 7
    %v828 = vsub.s32 0, %v827
    %v829 = vrot.slane %v580, %v828
    %v830 = vlaneseq
    %v831 = vshrl.u32 %v830, 7
    %v832 = vsub.s32 0, %v831
    %v833 = vrot.slane %v579, %v832
    %v834 = vlaneseq
    %v835 = vshrl.u32 %v834, 7
    %v836 = vsub.s32 0, %v835
    %v837 = vrot.slane %v581, %v836
    %vm838 = vcmask 1041409
    %v839 = vsel %vm838, %v589, %v585
    %vm840 = vcmask 1042434
    %v841 = vsel %vm840, %v593, %v839
    %vm842 = vcmask 1043459
    %v843 = vsel %vm842, %v597, %v841
    %vm844 = vcmask 1044484
    %v845 = vsel %vm844, %v601, %v843
    %vm846 = vcmask 1045509
    %v847 = vsel %vm846, %v605, %v845
    %vm848 = vcmask 1046534
    %v849 = vsel %vm848, %v609, %v847
    %vm850 = vcmask 1047559
    %v851 = vsel %vm850, %v613, %v849
    %v852 = vsel %vm838, %v621, %v617
    %v853 = vsel %vm840, %v625, %v852
    %v854 = vsel %vm842, %v629, %v853
    %v855 = vsel %vm844, %v633, %v854
    %v856 = vsel %vm846, %v637, %v855
    %v857 = vsel %vm848, %v641, %v856
    %v858 = vsel %vm850, %v645, %v857
    %v859 = vsel %vm838, %v653, %v649
    %v860 = vsel %vm840, %v657, %v859
    %v861 = vsel %vm842, %v661, %v860
    %v862 = vsel %vm844, %v665, %v861
    %v863 = vsel %vm846, %v669, %v862
    %v864 = vsel %vm848, %v673, %v863
    %v865 = vsel %vm850, %v677, %v864
    %v866 = vsel %vm838, %v685, %v681
    %v867 = vsel %vm840, %v689, %v866
    %v868 = vsel %vm842, %v693, %v867
    %v869 = vsel %vm844, %v697, %v868
    %v870 = vsel %vm846, %v701, %v869
    %v871 = vsel %vm848, %v705, %v870
    %v872 = vsel %vm850, %v709, %v871
    %v873 = vsel %vm838, %v717, %v713
    %v874 = vsel %vm840, %v721, %v873
    %v875 = vsel %vm842, %v725, %v874
    %v876 = vsel %vm844, %v729, %v875
    %v877 = vsel %vm846, %v733, %v876
    %v878 = vsel %vm848, %v737, %v877
    %v879 = vsel %vm850, %v741, %v878
    %v880 = vsel %vm838, %v749, %v745
    %v881 = vsel %vm840, %v753, %v880
    %v882 = vsel %vm842, %v757, %v881
    %v883 = vsel %vm844, %v761, %v882
    %v884 = vsel %vm846, %v765, %v883
    %v885 = vsel %vm848, %v769, %v884
    %v886 = vsel %vm850, %v773, %v885
    %v887 = vsel %vm838, %v781, %v777
    %v888 = vsel %vm840, %v785, %v887
    %v889 = vsel %vm842, %v789, %v888
    %v890 = vsel %vm844, %v793, %v889
    %v891 = vsel %vm846, %v797, %v890
    %v892 = vsel %vm848, %v801, %v891
    %v893 = vsel %vm850, %v805, %v892
    %v894 = vsel %vm838, %v813, %v809
    %v895 = vsel %vm840, %v817, %v894
    %v896 = vsel %vm842, %v821, %v895
    %v897 = vsel %vm844, %v825, %v896
    %v898 = vsel %vm846, %v829, %v897
    %v899 = vsel %vm848, %v833, %v898
    %v900 = vsel %vm850, %v837, %v899
    %909 = vxpose.xlu0.b32.start [1/16] %v851, 128
    %910 = vxpose.xlu0.b32.cont [2/16] 0.0, 128
    %911 = vxpose.xlu0.b32.cont [3/16] 0.0, 128
    %912 = vxpose.xlu0.b32.cont [4/16] 0.0, 128
    %913 = vxpose.xlu0.b32.cont [5/16] 0.0, 128
    %914 = vxpose.xlu0.b32.cont [6/16] 0.0, 128
    %915 = vxpose.xlu0.b32.cont [7/16] 0.0, 128
    %916 = vxpose.xlu0.b32.cont [8/16] 0.0, 128
    %917 = vxpose.xlu0.b32.cont [9/16] 0.0, 128
    %918 = vxpose.xlu0.b32.cont [10/16] 0.0, 128
    %919 = vxpose.xlu0.b32.cont [11/16] 0.0, 128
    %920 = vxpose.xlu0.b32.cont [12/16] 0.0, 128
    %921 = vxpose.xlu0.b32.cont [13/16] 0.0, 128
    %922 = vxpose.xlu0.b32.cont [14/16] 0.0, 128
    %923 = vxpose.xlu0.b32.cont [15/16] 0.0, 128
    %924 = vxpose.xlu0.b32.end [16/16] 0.0, 128
    %v925 = vpop.trf.xlu0
    %v926 = vpop.trf.xlu0
    %v927 = vpop.trf.xlu0
    %v928 = vpop.trf.xlu0
    %v929 = vpop.trf.xlu0
    %v930 = vpop.trf.xlu0
    %v931 = vpop.trf.xlu0
    %v932 = vpop.trf.xlu0
    %v933 = vpop.trf.xlu0
    %v934 = vpop.trf.xlu0
    %v935 = vpop.trf.xlu0
    %v936 = vpop.trf.xlu0
    %v937 = vpop.trf.xlu0
    %v938 = vpop.trf.xlu0
    %v939 = vpop.trf.xlu0
    %v940 = vpop.trf.xlu0
    %941 = vxpose.xlu0.b32.start [1/16] %v858, 128
    %942 = vxpose.xlu0.b32.cont [2/16] 0.0, 128
    %943 = vxpose.xlu0.b32.cont [3/16] 0.0, 128
    %944 = vxpose.xlu0.b32.cont [4/16] 0.0, 128
    %945 = vxpose.xlu0.b32.cont [5/16] 0.0, 128
    %946 = vxpose.xlu0.b32.cont [6/16] 0.0, 128
    %947 = vxpose.xlu0.b32.cont [7/16] 0.0, 128
    %948 = vxpose.xlu0.b32.cont [8/16] 0.0, 128
    %949 = vxpose.xlu0.b32.cont [9/16] 0.0, 128
    %950 = vxpose.xlu0.b32.cont [10/16] 0.0, 128
    %951 = vxpose.xlu0.b32.cont [11/16] 0.0, 128
    %952 = vxpose.xlu0.b32.cont [12/16] 0.0, 128
    %953 = vxpose.xlu0.b32.cont [13/16] 0.0, 128
    %954 = vxpose.xlu0.b32.cont [14/16] 0.0, 128
    %955 = vxpose.xlu0.b32.cont [15/16] 0.0, 128
    %956 = vxpose.xlu0.b32.end [16/16] 0.0, 128
    %v957 = vpop.trf.xlu0
    %v958 = vpop.trf.xlu0
    %v959 = vpop.trf.xlu0
    %v960 = vpop.trf.xlu0
    %v961 = vpop.trf.xlu0
    %v962 = vpop.trf.xlu0
    %v963 = vpop.trf.xlu0
    %v964 = vpop.trf.xlu0
    %v965 = vpop.trf.xlu0
    %v966 = vpop.trf.xlu0
    %v967 = vpop.trf.xlu0
    %v968 = vpop.trf.xlu0
    %v969 = vpop.trf.xlu0
    %v970 = vpop.trf.xlu0
    %v971 = vpop.trf.xlu0
    %v972 = vpop.trf.xlu0
    %973 = vxpose.xlu0.b32.start [1/16] %v865, 128
    %974 = vxpose.xlu0.b32.cont [2/16] 0.0, 128
    %975 = vxpose.xlu0.b32.cont [3/16] 0.0, 128
    %976 = vxpose.xlu0.b32.cont [4/16] 0.0, 128
    %977 = vxpose.xlu0.b32.cont [5/16] 0.0, 128
    %978 = vxpose.xlu0.b32.cont [6/16] 0.0, 128
    %979 = vxpose.xlu0.b32.cont [7/16] 0.0, 128
    %980 = vxpose.xlu0.b32.cont [8/16] 0.0, 128
    %981 = vxpose.xlu0.b32.cont [9/16] 0.0, 128
    %982 = vxpose.xlu0.b32.cont [10/16] 0.0, 128
    %983 = vxpose.xlu0.b32.cont [11/16] 0.0, 128
    %984 = vxpose.xlu0.b32.cont [12/16] 0.0, 128
    %985 = vxpose.xlu0.b32.cont [13/16] 0.0, 128
    %986 = vxpose.xlu0.b32.cont [14/16] 0.0, 128
    %987 = vxpose.xlu0.b32.cont [15/16] 0.0, 128
    %988 = vxpose.xlu0.b32.end [16/16] 0.0, 128
    %v989 = vpop.trf.xlu0
    %v990 = vpop.trf.xlu0
    %v991 = vpop.trf.xlu0
    %v992 = vpop.trf.xlu0
    %v993 = vpop.trf.xlu0
    %v994 = vpop.trf.xlu0
    %v995 = vpop.trf.xlu0
    %v996 = vpop.trf.xlu0
    %v997 = vpop.trf.xlu0
    %v998 = vpop.trf.xlu0
    %v999 = vpop.trf.xlu0
    %v1000 = vpop.trf.xlu0
    %v1001 = vpop.trf.xlu0
    %v1002 = vpop.trf.xlu0
    %v1003 = vpop.trf.xlu0
    %v1004 = vpop.trf.xlu0
    %1005 = vxpose.xlu0.b32.start [1/16] %v872, 128
    %1006 = vxpose.xlu0.b32.cont [2/16] 0.0, 128
    %1007 = vxpose.xlu0.b32.cont [3/16] 0.0, 128
    %1008 = vxpose.xlu0.b32.cont [4/16] 0.0, 128
    %1009 = vxpose.xlu0.b32.cont [5/16] 0.0, 128
    %1010 = vxpose.xlu0.b32.cont [6/16] 0.0, 128
    %1011 = vxpose.xlu0.b32.cont [7/16] 0.0, 128
    %1012 = vxpose.xlu0.b32.cont [8/16] 0.0, 128
    %1013 = vxpose.xlu0.b32.cont [9/16] 0.0, 128
    %1014 = vxpose.xlu0.b32.cont [10/16] 0.0, 128
    %1015 = vxpose.xlu0.b32.cont [11/16] 0.0, 128
    %1016 = vxpose.xlu0.b32.cont [12/16] 0.0, 128
    %1017 = vxpose.xlu0.b32.cont [13/16] 0.0, 128
    %1018 = vxpose.xlu0.b32.cont [14/16] 0.0, 128
    %1019 = vxpose.xlu0.b32.cont [15/16] 0.0, 128
    %1020 = vxpose.xlu0.b32.end [16/16] 0.0, 128
    %v1021 = vpop.trf.xlu0
    %v1022 = vpop.trf.xlu0
    %v1023 = vpop.trf.xlu0
    %v1024 = vpop.trf.xlu0
    %v1025 = vpop.trf.xlu0
    %v1026 = vpop.trf.xlu0
    %v1027 = vpop.trf.xlu0
    %v1028 = vpop.trf.xlu0
    %v1029 = vpop.trf.xlu0
    %v1030 = vpop.trf.xlu0
    %v1031 = vpop.trf.xlu0
    %v1032 = vpop.trf.xlu0
    %v1033 = vpop.trf.xlu0
    %v1034 = vpop.trf.xlu0
    %v1035 = vpop.trf.xlu0
    %v1036 = vpop.trf.xlu0
    %1037 = vxpose.xlu0.b32.start [1/16] %v879, 128
    %1038 = vxpose.xlu0.b32.cont [2/16] 0.0, 128
    %1039 = vxpose.xlu0.b32.cont [3/16] 0.0, 128
    %1040 = vxpose.xlu0.b32.cont [4/16] 0.0, 128
    %1041 = vxpose.xlu0.b32.cont [5/16] 0.0, 128
    %1042 = vxpose.xlu0.b32.cont [6/16] 0.0, 128
    %1043 = vxpose.xlu0.b32.cont [7/16] 0.0, 128
    %1044 = vxpose.xlu0.b32.cont [8/16] 0.0, 128
    %1045 = vxpose.xlu0.b32.cont [9/16] 0.0, 128
    %1046 = vxpose.xlu0.b32.cont [10/16] 0.0, 128
    %1047 = vxpose.xlu0.b32.cont [11/16] 0.0, 128
    %1048 = vxpose.xlu0.b32.cont [12/16] 0.0, 128
    %1049 = vxpose.xlu0.b32.cont [13/16] 0.0, 128
    %1050 = vxpose.xlu0.b32.cont [14/16] 0.0, 128
    %1051 = vxpose.xlu0.b32.cont [15/16] 0.0, 128
    %1052 = vxpose.xlu0.b32.end [16/16] 0.0, 128
    %v1053 = vpop.trf.xlu0
    %v1054 = vpop.trf.xlu0
    %v1055 = vpop.trf.xlu0
    %v1056 = vpop.trf.xlu0
    %v1057 = vpop.trf.xlu0
    %v1058 = vpop.trf.xlu0
    %v1059 = vpop.trf.xlu0
    %v1060 = vpop.trf.xlu0
    %v1061 = vpop.trf.xlu0
    %v1062 = vpop.trf.xlu0
    %v1063 = vpop.trf.xlu0
    %v1064 = vpop.trf.xlu0
    %v1065 = vpop.trf.xlu0
    %v1066 = vpop.trf.xlu0
    %v1067 = vpop.trf.xlu0
    %v1068 = vpop.trf.xlu0
    %1069 = vxpose.xlu0.b32.start [1/16] %v886, 128
    %1070 = vxpose.xlu0.b32.cont [2/16] 0.0, 128
    %1071 = vxpose.xlu0.b32.cont [3/16] 0.0, 128
    %1072 = vxpose.xlu0.b32.cont [4/16] 0.0, 128
    %1073 = vxpose.xlu0.b32.cont [5/16] 0.0, 128
    %1074 = vxpose.xlu0.b32.cont [6/16] 0.0, 128
    %1075 = vxpose.xlu0.b32.cont [7/16] 0.0, 128
    %1076 = vxpose.xlu0.b32.cont [8/16] 0.0, 128
    %1077 = vxpose.xlu0.b32.cont [9/16] 0.0, 128
    %1078 = vxpose.xlu0.b32.cont [10/16] 0.0, 128
    %1079 = vxpose.xlu0.b32.cont [11/16] 0.0, 128
    %1080 = vxpose.xlu0.b32.cont [12/16] 0.0, 128
    %1081 = vxpose.xlu0.b32.cont [13/16] 0.0, 128
    %1082 = vxpose.xlu0.b32.cont [14/16] 0.0, 128
    %1083 = vxpose.xlu0.b32.cont [15/16] 0.0, 128
    %1084 = vxpose.xlu0.b32.end [16/16] 0.0, 128
    %v1085 = vpop.trf.xlu0
    %v1086 = vpop.trf.xlu0
    %v1087 = vpop.trf.xlu0
    %v1088 = vpop.trf.xlu0
    %v1089 = vpop.trf.xlu0
    %v1090 = vpop.trf.xlu0
    %v1091 = vpop.trf.xlu0
    %v1092 = vpop.trf.xlu0
    %v1093 = vpop.trf.xlu0
    %v1094 = vpop.trf.xlu0
    %v1095 = vpop.trf.xlu0
    %v1096 = vpop.trf.xlu0
    %v1097 = vpop.trf.xlu0
    %v1098 = vpop.trf.xlu0
    %v1099 = vpop.trf.xlu0
    %v1100 = vpop.trf.xlu0
    %1101 = vxpose.xlu0.b32.start [1/16] %v893, 128
    %1102 = vxpose.xlu0.b32.cont [2/16] 0.0, 128
    %1103 = vxpose.xlu0.b32.cont [3/16] 0.0, 128
    %1104 = vxpose.xlu0.b32.cont [4/16] 0.0, 128
    %1105 = vxpose.xlu0.b32.cont [5/16] 0.0, 128
    %1106 = vxpose.xlu0.b32.cont [6/16] 0.0, 128
    %1107 = vxpose.xlu0.b32.cont [7/16] 0.0, 128
    %1108 = vxpose.xlu0.b32.cont [8/16] 0.0, 128
    %1109 = vxpose.xlu0.b32.cont [9/16] 0.0, 128
    %1110 = vxpose.xlu0.b32.cont [10/16] 0.0, 128
    %1111 = vxpose.xlu0.b32.cont [11/16] 0.0, 128
    %1112 = vxpose.xlu0.b32.cont [12/16] 0.0, 128
    %1113 = vxpose.xlu0.b32.cont [13/16] 0.0, 128
    %1114 = vxpose.xlu0.b32.cont [14/16] 0.0, 128
    %1115 = vxpose.xlu0.b32.cont [15/16] 0.0, 128
    %1116 = vxpose.xlu0.b32.end [16/16] 0.0, 128
    %v1117 = vpop.trf.xlu0
    %v1118 = vpop.trf.xlu0
    %v1119 = vpop.trf.xlu0
    %v1120 = vpop.trf.xlu0
    %v1121 = vpop.trf.xlu0
    %v1122 = vpop.trf.xlu0
    %v1123 = vpop.trf.xlu0
    %v1124 = vpop.trf.xlu0
    %v1125 = vpop.trf.xlu0
    %v1126 = vpop.trf.xlu0
    %v1127 = vpop.trf.xlu0
    %v1128 = vpop.trf.xlu0
    %v1129 = vpop.trf.xlu0
    %v1130 = vpop.trf.xlu0
    %v1131 = vpop.trf.xlu0
    %v1132 = vpop.trf.xlu0
    %1133 = vxpose.xlu0.b32.start [1/16] %v900, 128
    %1134 = vxpose.xlu0.b32.cont [2/16] 0.0, 128
    %1135 = vxpose.xlu0.b32.cont [3/16] 0.0, 128
    %1136 = vxpose.xlu0.b32.cont [4/16] 0.0, 128
    %1137 = vxpose.xlu0.b32.cont [5/16] 0.0, 128
    %1138 = vxpose.xlu0.b32.cont [6/16] 0.0, 128
    %1139 = vxpose.xlu0.b32.cont [7/16] 0.0, 128
    %1140 = vxpose.xlu0.b32.cont [8/16] 0.0, 128
    %1141 = vxpose.xlu0.b32.cont [9/16] 0.0, 128
    %1142 = vxpose.xlu0.b32.cont [10/16] 0.0, 128
    %1143 = vxpose.xlu0.b32.cont [11/16] 0.0, 128
    %1144 = vxpose.xlu0.b32.cont [12/16] 0.0, 128
    %1145 = vxpose.xlu0.b32.cont [13/16] 0.0, 128
    %1146 = vxpose.xlu0.b32.cont [14/16] 0.0, 128
    %1147 = vxpose.xlu0.b32.cont [15/16] 0.0, 128
    %1148 = vxpose.xlu0.b32.end [16/16] 0.0, 128
    %v1149 = vpop.trf.xlu0
    %v1150 = vpop.trf.xlu0
    %v1151 = vpop.trf.xlu0
    %v1152 = vpop.trf.xlu0
    %v1153 = vpop.trf.xlu0
    %v1154 = vpop.trf.xlu0
    %v1155 = vpop.trf.xlu0
    %v1156 = vpop.trf.xlu0
    %v1157 = vpop.trf.xlu0
    %v1158 = vpop.trf.xlu0
    %v1159 = vpop.trf.xlu0
    %v1160 = vpop.trf.xlu0
    %v1161 = vpop.trf.xlu0
    %v1162 = vpop.trf.xlu0
    %v1163 = vpop.trf.xlu0
    %v1164 = vpop.trf.xlu0
    %v1181 = vcombine.high %v925, %v925
    %v1183 = vunpack.c.l.s4 1983009808
    %v1184 = vunpack.c.0.s8 %v1183
    %v1185 = vlaneseq
    %v1186 = vshrl.u32 %v1185, 7
    %v1187 = vsub.s32 %v1184, %v1186
    %v1188 = vrot.slane %v925, %v1187
    %v1190 = vunpack.c.l.s4 1983009808
    %v1191 = vunpack.c.0.s8 %v1190
    %v1192 = vlaneseq
    %v1193 = vshrl.u32 %v1192, 7
    %v1194 = vsub.s32 %v1191, %v1193
    %v1195 = vrot.slane %v1181, %v1194
    %v1196 = vcombine.high %v1188, %v1188
    %v1197 = vcombine.high %v1195, %v1195
    %v1198 = vcombine.high %v926, %v926
    %v1200 = vunpack.c.l.s4 1983009808
    %v1201 = vunpack.c.0.s8 %v1200
    %v1202 = vlaneseq
    %v1203 = vshrl.u32 %v1202, 7
    %v1204 = vsub.s32 %v1201, %v1203
    %v1205 = vrot.slane %v926, %v1204
    %v1207 = vunpack.c.l.s4 1983009808
    %v1208 = vunpack.c.0.s8 %v1207
    %v1209 = vlaneseq
    %v1210 = vshrl.u32 %v1209, 7
    %v1211 = vsub.s32 %v1208, %v1210
    %v1212 = vrot.slane %v1198, %v1211
    %v1213 = vcombine.high %v1205, %v1205
    %v1214 = vcombine.high %v1212, %v1212
    %v1215 = vcombine.high %v957, %v957
    %v1217 = vunpack.c.l.s4 1983009808
    %v1218 = vunpack.c.0.s8 %v1217
    %v1219 = vlaneseq
    %v1220 = vshrl.u32 %v1219, 7
    %v1221 = vsub.s32 %v1218, %v1220
    %v1222 = vrot.slane %v957, %v1221
    %v1224 = vunpack.c.l.s4 1983009808
    %v1225 = vunpack.c.0.s8 %v1224
    %v1226 = vlaneseq
    %v1227 = vshrl.u32 %v1226, 7
    %v1228 = vsub.s32 %v1225, %v1227
    %v1229 = vrot.slane %v1215, %v1228
    %v1230 = vcombine.high %v1222, %v1222
    %v1231 = vcombine.high %v1229, %v1229
    %v1232 = vcombine.high %v958, %v958
    %v1234 = vunpack.c.l.s4 1983009808
    %v1235 = vunpack.c.0.s8 %v1234
    %v1236 = vlaneseq
    %v1237 = vshrl.u32 %v1236, 7
    %v1238 = vsub.s32 %v1235, %v1237
    %v1239 = vrot.slane %v958, %v1238
    %v1241 = vunpack.c.l.s4 1983009808
    %v1242 = vunpack.c.0.s8 %v1241
    %v1243 = vlaneseq
    %v1244 = vshrl.u32 %v1243, 7
    %v1245 = vsub.s32 %v1242, %v1244
    %v1246 = vrot.slane %v1232, %v1245
    %v1247 = vcombine.high %v1239, %v1239
    %v1248 = vcombine.high %v1246, %v1246
    %v1249 = vcombine.high %v989, %v989
    %v1251 = vunpack.c.l.s4 1983009808
    %v1252 = vunpack.c.0.s8 %v1251
    %v1253 = vlaneseq
    %v1254 = vshrl.u32 %v1253, 7
    %v1255 = vsub.s32 %v1252, %v1254
    %v1256 = vrot.slane %v989, %v1255
    %v1258 = vunpack.c.l.s4 1983009808
    %v1259 = vunpack.c.0.s8 %v1258
    %v1260 = vlaneseq
    %v1261 = vshrl.u32 %v1260, 7
    %v1262 = vsub.s32 %v1259, %v1261
    %v1263 = vrot.slane %v1249, %v1262
    %v1264 = vcombine.high %v1256, %v1256
    %v1265 = vcombine.high %v1263, %v1263
    %v1266 = vcombine.high %v990, %v990
    %v1268 = vunpack.c.l.s4 1983009808
    %v1269 = vunpack.c.0.s8 %v1268
    %v1270 = vlaneseq
    %v1271 = vshrl.u32 %v1270, 7
    %v1272 = vsub.s32 %v1269, %v1271
    %v1273 = vrot.slane %v990, %v1272
    %v1275 = vunpack.c.l.s4 1983009808
    %v1276 = vunpack.c.0.s8 %v1275
    %v1277 = vlaneseq
    %v1278 = vshrl.u32 %v1277, 7
    %v1279 = vsub.s32 %v1276, %v1278
    %v1280 = vrot.slane %v1266, %v1279
    %v1281 = vcombine.high %v1273, %v1273
    %v1282 = vcombine.high %v1280, %v1280
    %v1283 = vcombine.high %v1021, %v1021
    %v1285 = vunpack.c.l.s4 1983009808
    %v1286 = vunpack.c.0.s8 %v1285
    %v1287 = vlaneseq
    %v1288 = vshrl.u32 %v1287, 7
    %v1289 = vsub.s32 %v1286, %v1288
    %v1290 = vrot.slane %v1021, %v1289
    %v1292 = vunpack.c.l.s4 1983009808
    %v1293 = vunpack.c.0.s8 %v1292
    %v1294 = vlaneseq
    %v1295 = vshrl.u32 %v1294, 7
    %v1296 = vsub.s32 %v1293, %v1295
    %v1297 = vrot.slane %v1283, %v1296
    %v1298 = vcombine.high %v1290, %v1290
    %v1299 = vcombine.high %v1297, %v1297
    %v1300 = vcombine.high %v1022, %v1022
    %v1302 = vunpack.c.l.s4 1983009808
    %v1303 = vunpack.c.0.s8 %v1302
    %v1304 = vlaneseq
    %v1305 = vshrl.u32 %v1304, 7
    %v1306 = vsub.s32 %v1303, %v1305
    %v1307 = vrot.slane %v1022, %v1306
    %v1309 = vunpack.c.l.s4 1983009808
    %v1310 = vunpack.c.0.s8 %v1309
    %v1311 = vlaneseq
    %v1312 = vshrl.u32 %v1311, 7
    %v1313 = vsub.s32 %v1310, %v1312
    %v1314 = vrot.slane %v1300, %v1313
    %v1315 = vcombine.high %v1307, %v1307
    %v1316 = vcombine.high %v1314, %v1314
    %v1317 = vcombine.high %v1053, %v1053
    %v1319 = vunpack.c.l.s4 1983009808
    %v1320 = vunpack.c.0.s8 %v1319
    %v1321 = vlaneseq
    %v1322 = vshrl.u32 %v1321, 7
    %v1323 = vsub.s32 %v1320, %v1322
    %v1324 = vrot.slane %v1053, %v1323
    %v1326 = vunpack.c.l.s4 1983009808
    %v1327 = vunpack.c.0.s8 %v1326
    %v1328 = vlaneseq
    %v1329 = vshrl.u32 %v1328, 7
    %v1330 = vsub.s32 %v1327, %v1329
    %v1331 = vrot.slane %v1317, %v1330
    %v1332 = vcombine.high %v1324, %v1324
    %v1333 = vcombine.high %v1331, %v1331
    %v1334 = vcombine.high %v1054, %v1054
    %v1336 = vunpack.c.l.s4 1983009808
    %v1337 = vunpack.c.0.s8 %v1336
    %v1338 = vlaneseq
    %v1339 = vshrl.u32 %v1338, 7
    %v1340 = vsub.s32 %v1337, %v1339
    %v1341 = vrot.slane %v1054, %v1340
    %v1343 = vunpack.c.l.s4 1983009808
    %v1344 = vunpack.c.0.s8 %v1343
    %v1345 = vlaneseq
    %v1346 = vshrl.u32 %v1345, 7
    %v1347 = vsub.s32 %v1344, %v1346
    %v1348 = vrot.slane %v1334, %v1347
    %v1349 = vcombine.high %v1341, %v1341
    %v1350 = vcombine.high %v1348, %v1348
    %v1351 = vcombine.high %v1085, %v1085
    %v1353 = vunpack.c.l.s4 1983009808
    %v1354 = vunpack.c.0.s8 %v1353
    %v1355 = vlaneseq
    %v1356 = vshrl.u32 %v1355, 7
    %v1357 = vsub.s32 %v1354, %v1356
    %v1358 = vrot.slane %v1085, %v1357
    %v1360 = vunpack.c.l.s4 1983009808
    %v1361 = vunpack.c.0.s8 %v1360
    %v1362 = vlaneseq
    %v1363 = vshrl.u32 %v1362, 7
    %v1364 = vsub.s32 %v1361, %v1363
    %v1365 = vrot.slane %v1351, %v1364
    %v1366 = vcombine.high %v1358, %v1358
    %v1367 = vcombine.high %v1365, %v1365
    %v1368 = vcombine.high %v1086, %v1086
    %v1370 = vunpack.c.l.s4 1983009808
    %v1371 = vunpack.c.0.s8 %v1370
    %v1372 = vlaneseq
    %v1373 = vshrl.u32 %v1372, 7
    %v1374 = vsub.s32 %v1371, %v1373
    %v1375 = vrot.slane %v1086, %v1374
    %v1377 = vunpack.c.l.s4 1983009808
    %v1378 = vunpack.c.0.s8 %v1377
    %v1379 = vlaneseq
    %v1380 = vshrl.u32 %v1379, 7
    %v1381 = vsub.s32 %v1378, %v1380
    %v1382 = vrot.slane %v1368, %v1381
    %v1383 = vcombine.high %v1375, %v1375
    %v1384 = vcombine.high %v1382, %v1382
    %v1385 = vcombine.high %v1117, %v1117
    %v1387 = vunpack.c.l.s4 1983009808
    %v1388 = vunpack.c.0.s8 %v1387
    %v1389 = vlaneseq
    %v1390 = vshrl.u32 %v1389, 7
    %v1391 = vsub.s32 %v1388, %v1390
    %v1392 = vrot.slane %v1117, %v1391
    %v1394 = vunpack.c.l.s4 1983009808
    %v1395 = vunpack.c.0.s8 %v1394
    %v1396 = vlaneseq
    %v1397 = vshrl.u32 %v1396, 7
    %v1398 = vsub.s32 %v1395, %v1397
    %v1399 = vrot.slane %v1385, %v1398
    %v1400 = vcombine.high %v1392, %v1392
    %v1401 = vcombine.high %v1399, %v1399
    %v1402 = vcombine.high %v1118, %v1118
    %v1404 = vunpack.c.l.s4 1983009808
    %v1405 = vunpack.c.0.s8 %v1404
    %v1406 = vlaneseq
    %v1407 = vshrl.u32 %v1406, 7
    %v1408 = vsub.s32 %v1405, %v1407
    %v1409 = vrot.slane %v1118, %v1408
    %v1411 = vunpack.c.l.s4 1983009808
    %v1412 = vunpack.c.0.s8 %v1411
    %v1413 = vlaneseq
    %v1414 = vshrl.u32 %v1413, 7
    %v1415 = vsub.s32 %v1412, %v1414
    %v1416 = vrot.slane %v1402, %v1415
    %v1417 = vcombine.high %v1409, %v1409
    %v1418 = vcombine.high %v1416, %v1416
    %v1419 = vcombine.high %v1149, %v1149
    %v1421 = vunpack.c.l.s4 1983009808
    %v1422 = vunpack.c.0.s8 %v1421
    %v1423 = vlaneseq
    %v1424 = vshrl.u32 %v1423, 7
    %v1425 = vsub.s32 %v1422, %v1424
    %v1426 = vrot.slane %v1149, %v1425
    %v1428 = vunpack.c.l.s4 1983009808
    %v1429 = vunpack.c.0.s8 %v1428
    %v1430 = vlaneseq
    %v1431 = vshrl.u32 %v1430, 7
    %v1432 = vsub.s32 %v1429, %v1431
    %v1433 = vrot.slane %v1419, %v1432
    %v1434 = vcombine.high %v1426, %v1426
    %v1435 = vcombine.high %v1433, %v1433
    %v1436 = vcombine.high %v1150, %v1150
    %v1438 = vunpack.c.l.s4 1983009808
    %v1439 = vunpack.c.0.s8 %v1438
    %v1440 = vlaneseq
    %v1441 = vshrl.u32 %v1440, 7
    %v1442 = vsub.s32 %v1439, %v1441
    %v1443 = vrot.slane %v1150, %v1442
    %v1445 = vunpack.c.l.s4 1983009808
    %v1446 = vunpack.c.0.s8 %v1445
    %v1447 = vlaneseq
    %v1448 = vshrl.u32 %v1447, 7
    %v1449 = vsub.s32 %v1446, %v1448
    %v1450 = vrot.slane %v1436, %v1449
    %v1451 = vcombine.high %v1443, %v1443
    %v1452 = vcombine.high %v1450, %v1450
    %v1453 = vlaneseq
    %v1454 = vshrl.u32 %v1453, 7
    %v1455 = vsub.s32 0, %v1454
    %v1456 = vrot.slane %v1188, %v1455
    %v1457 = vlaneseq
    %v1458 = vshrl.u32 %v1457, 7
    %v1459 = vsub.s32 0, %v1458
    %v1460 = vrot.slane %v1196, %v1459
    %v1461 = vlaneseq
    %v1462 = vshrl.u32 %v1461, 7
    %v1463 = vsub.s32 0, %v1462
    %v1464 = vrot.slane %v1195, %v1463
    %v1465 = vlaneseq
    %v1466 = vshrl.u32 %v1465, 7
    %v1467 = vsub.s32 0, %v1466
    %v1468 = vrot.slane %v1197, %v1467
    %v1469 = vlaneseq
    %v1470 = vshrl.u32 %v1469, 7
    %v1471 = vsub.s32 0, %v1470
    %v1472 = vrot.slane %v1205, %v1471
    %v1473 = vlaneseq
    %v1474 = vshrl.u32 %v1473, 7
    %v1475 = vsub.s32 0, %v1474
    %v1476 = vrot.slane %v1213, %v1475
    %v1477 = vlaneseq
    %v1478 = vshrl.u32 %v1477, 7
    %v1479 = vsub.s32 0, %v1478
    %v1480 = vrot.slane %v1212, %v1479
    %v1481 = vlaneseq
    %v1482 = vshrl.u32 %v1481, 7
    %v1483 = vsub.s32 0, %v1482
    %v1484 = vrot.slane %v1214, %v1483
    %v1485 = vlaneseq
    %v1486 = vshrl.u32 %v1485, 7
    %v1487 = vsub.s32 0, %v1486
    %v1488 = vrot.slane %v1222, %v1487
    %v1489 = vlaneseq
    %v1490 = vshrl.u32 %v1489, 7
    %v1491 = vsub.s32 0, %v1490
    %v1492 = vrot.slane %v1230, %v1491
    %v1493 = vlaneseq
    %v1494 = vshrl.u32 %v1493, 7
    %v1495 = vsub.s32 0, %v1494
    %v1496 = vrot.slane %v1229, %v1495
    %v1497 = vlaneseq
    %v1498 = vshrl.u32 %v1497, 7
    %v1499 = vsub.s32 0, %v1498
    %v1500 = vrot.slane %v1231, %v1499
    %v1501 = vlaneseq
    %v1502 = vshrl.u32 %v1501, 7
    %v1503 = vsub.s32 0, %v1502
    %v1504 = vrot.slane %v1239, %v1503
    %v1505 = vlaneseq
    %v1506 = vshrl.u32 %v1505, 7
    %v1507 = vsub.s32 0, %v1506
    %v1508 = vrot.slane %v1247, %v1507
    %v1509 = vlaneseq
    %v1510 = vshrl.u32 %v1509, 7
    %v1511 = vsub.s32 0, %v1510
    %v1512 = vrot.slane %v1246, %v1511
    %v1513 = vlaneseq
    %v1514 = vshrl.u32 %v1513, 7
    %v1515 = vsub.s32 0, %v1514
    %v1516 = vrot.slane %v1248, %v1515
    %v1517 = vlaneseq
    %v1518 = vshrl.u32 %v1517, 7
    %v1519 = vsub.s32 0, %v1518
    %v1520 = vrot.slane %v1256, %v1519
    %v1521 = vlaneseq
    %v1522 = vshrl.u32 %v1521, 7
    %v1523 = vsub.s32 0, %v1522
    %v1524 = vrot.slane %v1264, %v1523
    %v1525 = vlaneseq
    %v1526 = vshrl.u32 %v1525, 7
    %v1527 = vsub.s32 0, %v1526
    %v1528 = vrot.slane %v1263, %v1527
    %v1529 = vlaneseq
    %v1530 = vshrl.u32 %v1529, 7
    %v1531 = vsub.s32 0, %v1530
    %v1532 = vrot.slane %v1265, %v1531
    %v1533 = vlaneseq
    %v1534 = vshrl.u32 %v1533, 7
    %v1535 = vsub.s32 0, %v1534
    %v1536 = vrot.slane %v1273, %v1535
    %v1537 = vlaneseq
    %v1538 = vshrl.u32 %v1537, 7
    %v1539 = vsub.s32 0, %v1538
    %v1540 = vrot.slane %v1281, %v1539
    %v1541 = vlaneseq
    %v1542 = vshrl.u32 %v1541, 7
    %v1543 = vsub.s32 0, %v1542
    %v1544 = vrot.slane %v1280, %v1543
    %v1545 = vlaneseq
    %v1546 = vshrl.u32 %v1545, 7
    %v1547 = vsub.s32 0, %v1546
    %v1548 = vrot.slane %v1282, %v1547
    %v1549 = vlaneseq
    %v1550 = vshrl.u32 %v1549, 7
    %v1551 = vsub.s32 0, %v1550
    %v1552 = vrot.slane %v1290, %v1551
    %v1553 = vlaneseq
    %v1554 = vshrl.u32 %v1553, 7
    %v1555 = vsub.s32 0, %v1554
    %v1556 = vrot.slane %v1298, %v1555
    %v1557 = vlaneseq
    %v1558 = vshrl.u32 %v1557, 7
    %v1559 = vsub.s32 0, %v1558
    %v1560 = vrot.slane %v1297, %v1559
    %v1561 = vlaneseq
    %v1562 = vshrl.u32 %v1561, 7
    %v1563 = vsub.s32 0, %v1562
    %v1564 = vrot.slane %v1299, %v1563
    %v1565 = vlaneseq
    %v1566 = vshrl.u32 %v1565, 7
    %v1567 = vsub.s32 0, %v1566
    %v1568 = vrot.slane %v1307, %v1567
    %v1569 = vlaneseq
    %v1570 = vshrl.u32 %v1569, 7
    %v1571 = vsub.s32 0, %v1570
    %v1572 = vrot.slane %v1315, %v1571
    %v1573 = vlaneseq
    %v1574 = vshrl.u32 %v1573, 7
    %v1575 = vsub.s32 0, %v1574
    %v1576 = vrot.slane %v1314, %v1575
    %v1577 = vlaneseq
    %v1578 = vshrl.u32 %v1577, 7
    %v1579 = vsub.s32 0, %v1578
    %v1580 = vrot.slane %v1316, %v1579
    %v1581 = vlaneseq
    %v1582 = vshrl.u32 %v1581, 7
    %v1583 = vsub.s32 0, %v1582
    %v1584 = vrot.slane %v1324, %v1583
    %v1585 = vlaneseq
    %v1586 = vshrl.u32 %v1585, 7
    %v1587 = vsub.s32 0, %v1586
    %v1588 = vrot.slane %v1332, %v1587
    %v1589 = vlaneseq
    %v1590 = vshrl.u32 %v1589, 7
    %v1591 = vsub.s32 0, %v1590
    %v1592 = vrot.slane %v1331, %v1591
    %v1593 = vlaneseq
    %v1594 = vshrl.u32 %v1593, 7
    %v1595 = vsub.s32 0, %v1594
    %v1596 = vrot.slane %v1333, %v1595
    %v1597 = vlaneseq
    %v1598 = vshrl.u32 %v1597, 7
    %v1599 = vsub.s32 0, %v1598
    %v1600 = vrot.slane %v1341, %v1599
    %v1601 = vlaneseq
    %v1602 = vshrl.u32 %v1601, 7
    %v1603 = vsub.s32 0, %v1602
    %v1604 = vrot.slane %v1349, %v1603
    %v1605 = vlaneseq
    %v1606 = vshrl.u32 %v1605, 7
    %v1607 = vsub.s32 0, %v1606
    %v1608 = vrot.slane %v1348, %v1607
    %v1609 = vlaneseq
    %v1610 = vshrl.u32 %v1609, 7
    %v1611 = vsub.s32 0, %v1610
    %v1612 = vrot.slane %v1350, %v1611
    %v1613 = vlaneseq
    %v1614 = vshrl.u32 %v1613, 7
    %v1615 = vsub.s32 0, %v1614
    %v1616 = vrot.slane %v1358, %v1615
    %v1617 = vlaneseq
    %v1618 = vshrl.u32 %v1617, 7
    %v1619 = vsub.s32 0, %v1618
    %v1620 = vrot.slane %v1366, %v1619
    %v1621 = vlaneseq
    %v1622 = vshrl.u32 %v1621, 7
    %v1623 = vsub.s32 0, %v1622
    %v1624 = vrot.slane %v1365, %v1623
    %v1625 = vlaneseq
    %v1626 = vshrl.u32 %v1625, 7
    %v1627 = vsub.s32 0, %v1626
    %v1628 = vrot.slane %v1367, %v1627
    %v1629 = vlaneseq
    %v1630 = vshrl.u32 %v1629, 7
    %v1631 = vsub.s32 0, %v1630
    %v1632 = vrot.slane %v1375, %v1631
    %v1633 = vlaneseq
    %v1634 = vshrl.u32 %v1633, 7
    %v1635 = vsub.s32 0, %v1634
    %v1636 = vrot.slane %v1383, %v1635
    %v1637 = vlaneseq
    %v1638 = vshrl.u32 %v1637, 7
    %v1639 = vsub.s32 0, %v1638
    %v1640 = vrot.slane %v1382, %v1639
    %v1641 = vlaneseq
    %v1642 = vshrl.u32 %v1641, 7
    %v1643 = vsub.s32 0, %v1642
    %v1644 = vrot.slane %v1384, %v1643
    %v1645 = vlaneseq
    %v1646 = vshrl.u32 %v1645, 7
    %v1647 = vsub.s32 0, %v1646
    %v1648 = vrot.slane %v1392, %v1647
    %v1649 = vlaneseq
    %v1650 = vshrl.u32 %v1649, 7
    %v1651 = vsub.s32 0, %v1650
    %v1652 = vrot.slane %v1400, %v1651
    %v1653 = vlaneseq
    %v1654 = vshrl.u32 %v1653, 7
    %v1655 = vsub.s32 0, %v1654
    %v1656 = vrot.slane %v1399, %v1655
    %v1657 = vlaneseq
    %v1658 = vshrl.u32 %v1657, 7
    %v1659 = vsub.s32 0, %v1658
    %v1660 = vrot.slane %v1401, %v1659
    %v1661 = vlaneseq
    %v1662 = vshrl.u32 %v1661, 7
    %v1663 = vsub.s32 0, %v1662
    %v1664 = vrot.slane %v1409, %v1663
    %v1665 = vlaneseq
    %v1666 = vshrl.u32 %v1665, 7
    %v1667 = vsub.s32 0, %v1666
    %v1668 = vrot.slane %v1417, %v1667
    %v1669 = vlaneseq
    %v1670 = vshrl.u32 %v1669, 7
    %v1671 = vsub.s32 0, %v1670
    %v1672 = vrot.slane %v1416, %v1671
    %v1673 = vlaneseq
    %v1674 = vshrl.u32 %v1673, 7
    %v1675 = vsub.s32 0, %v1674
    %v1676 = vrot.slane %v1418, %v1675
    %v1677 = vlaneseq
    %v1678 = vshrl.u32 %v1677, 7
    %v1679 = vsub.s32 0, %v1678
    %v1680 = vrot.slane %v1426, %v1679
    %v1681 = vlaneseq
    %v1682 = vshrl.u32 %v1681, 7
    %v1683 = vsub.s32 0, %v1682
    %v1684 = vrot.slane %v1434, %v1683
    %v1685 = vlaneseq
    %v1686 = vshrl.u32 %v1685, 7
    %v1687 = vsub.s32 0, %v1686
    %v1688 = vrot.slane %v1433, %v1687
    %v1689 = vlaneseq
    %v1690 = vshrl.u32 %v1689, 7
    %v1691 = vsub.s32 0, %v1690
    %v1692 = vrot.slane %v1435, %v1691
    %v1693 = vlaneseq
    %v1694 = vshrl.u32 %v1693, 7
    %v1695 = vsub.s32 0, %v1694
    %v1696 = vrot.slane %v1443, %v1695
    %v1697 = vlaneseq
    %v1698 = vshrl.u32 %v1697, 7
    %v1699 = vsub.s32 0, %v1698
    %v1700 = vrot.slane %v1451, %v1699
    %v1701 = vlaneseq
    %v1702 = vshrl.u32 %v1701, 7
    %v1703 = vsub.s32 0, %v1702
    %v1704 = vrot.slane %v1450, %v1703
    %v1705 = vlaneseq
    %v1706 = vshrl.u32 %v1705, 7
    %v1707 = vsub.s32 0, %v1706
    %v1708 = vrot.slane %v1452, %v1707
    %v1709 = vsel %vm838, %v1460, %v1456
    %v1710 = vsel %vm840, %v1464, %v1709
    %v1711 = vsel %vm842, %v1468, %v1710
    %v1712 = vsel %vm844, %v1472, %v1711
    %v1713 = vsel %vm846, %v1476, %v1712
    %v1714 = vsel %vm848, %v1480, %v1713
    %v1715 = vsel %vm850, %v1484, %v1714
    %v1716 = vsel %vm838, %v1492, %v1488
    %v1717 = vsel %vm840, %v1496, %v1716
    %v1718 = vsel %vm842, %v1500, %v1717
    %v1719 = vsel %vm844, %v1504, %v1718
    %v1720 = vsel %vm846, %v1508, %v1719
    %v1721 = vsel %vm848, %v1512, %v1720
    %v1722 = vsel %vm850, %v1516, %v1721
    %v1723 = vsel %vm838, %v1524, %v1520
    %v1724 = vsel %vm840, %v1528, %v1723
    %v1725 = vsel %vm842, %v1532, %v1724
    %v1726 = vsel %vm844, %v1536, %v1725
    %v1727 = vsel %vm846, %v1540, %v1726
    %v1728 = vsel %vm848, %v1544, %v1727
    %v1729 = vsel %vm850, %v1548, %v1728
    %v1730 = vsel %vm838, %v1556, %v1552
    %v1731 = vsel %vm840, %v1560, %v1730
    %v1732 = vsel %vm842, %v1564, %v1731
    %v1733 = vsel %vm844, %v1568, %v1732
    %v1734 = vsel %vm846, %v1572, %v1733
    %v1735 = vsel %vm848, %v1576, %v1734
    %v1736 = vsel %vm850, %v1580, %v1735
    %v1737 = vsel %vm838, %v1588, %v1584
    %v1738 = vsel %vm840, %v1592, %v1737
    %v1739 = vsel %vm842, %v1596, %v1738
    %v1740 = vsel %vm844, %v1600, %v1739
    %v1741 = vsel %vm846, %v1604, %v1740
    %v1742 = vsel %vm848, %v1608, %v1741
    %v1743 = vsel %vm850, %v1612, %v1742
    %v1744 = vsel %vm838, %v1620, %v1616
    %v1745 = vsel %vm840, %v1624, %v1744
    %v1746 = vsel %vm842, %v1628, %v1745
    %v1747 = vsel %vm844, %v1632, %v1746
    %v1748 = vsel %vm846, %v1636, %v1747
    %v1749 = vsel %vm848, %v1640, %v1748
    %v1750 = vsel %vm850, %v1644, %v1749
    %v1751 = vsel %vm838, %v1652, %v1648
    %v1752 = vsel %vm840, %v1656, %v1751
    %v1753 = vsel %vm842, %v1660, %v1752
    %v1754 = vsel %vm844, %v1664, %v1753
    %v1755 = vsel %vm846, %v1668, %v1754
    %v1756 = vsel %vm848, %v1672, %v1755
    %v1757 = vsel %vm850, %v1676, %v1756
    %v1758 = vsel %vm838, %v1684, %v1680
    %v1759 = vsel %vm840, %v1688, %v1758
    %v1760 = vsel %vm842, %v1692, %v1759
    %v1761 = vsel %vm844, %v1696, %v1760
    %v1762 = vsel %vm846, %v1700, %v1761
    %v1763 = vsel %vm848, %v1704, %v1762
    %v1764 = vsel %vm850, %v1708, %v1763
    %vm1773 = vcmask 64512
    %1774 = vst.msk [vmem:[%s1] sm:$0xff] %vm1773, %v1715
    %1775 = vst.msk [vmem:[%s1 + $0x20] sm:$0xff] %vm1773, %v1722
    %1776 = vst.msk [vmem:[%s1 + $0x40] sm:$0xff] %vm1773, %v1729
    %1777 = vst.msk [vmem:[%s1 + $0x60] sm:$0xff] %vm1773, %v1736
    %1778 = vst.msk [vmem:[%s1 + $0x80] sm:$0xff] %vm1773, %v1743
    %1779 = vst.msk [vmem:[%s1 + $0xa0] sm:$0xff] %vm1773, %v1750
    %1780 = vst.msk [vmem:[%s1 + $0xc0] sm:$0xff] %vm1773, %v1757
    %1781 = vst.msk [vmem:[%s1 + $0xe0] sm:$0xff] %vm1773, %v1764
    %v1782 = vlaneseq
    %v1783 = vshrl.u32 %v1782, 7
    %v1784 = vsub.s32 1, %v1783
    %v1785 = vrot.slane %v1188, %v1784
    %v1786 = vlaneseq
    %v1787 = vshrl.u32 %v1786, 7
    %v1788 = vsub.s32 1, %v1787
    %v1789 = vrot.slane %v1196, %v1788
    %v1790 = vlaneseq
    %v1791 = vshrl.u32 %v1790, 7
    %v1792 = vsub.s32 1, %v1791
    %v1793 = vrot.slane %v1195, %v1792
    %v1794 = vlaneseq
    %v1795 = vshrl.u32 %v1794, 7
    %v1796 = vsub.s32 1, %v1795
    %v1797 = vrot.slane %v1197, %v1796
    %v1798 = vlaneseq
    %v1799 = vshrl.u32 %v1798, 7
    %v1800 = vsub.s32 1, %v1799
    %v1801 = vrot.slane %v1205, %v1800
    %v1802 = vlaneseq
    %v1803 = vshrl.u32 %v1802, 7
    %v1804 = vsub.s32 1, %v1803
    %v1805 = vrot.slane %v1213, %v1804
    %v1806 = vlaneseq
    %v1807 = vshrl.u32 %v1806, 7
    %v1808 = vsub.s32 1, %v1807
    %v1809 = vrot.slane %v1212, %v1808
    %v1810 = vlaneseq
    %v1811 = vshrl.u32 %v1810, 7
    %v1812 = vsub.s32 1, %v1811
    %v1813 = vrot.slane %v1214, %v1812
    %v1814 = vlaneseq
    %v1815 = vshrl.u32 %v1814, 7
    %v1816 = vsub.s32 1, %v1815
    %v1817 = vrot.slane %v1222, %v1816
    %v1818 = vlaneseq
    %v1819 = vshrl.u32 %v1818, 7
    %v1820 = vsub.s32 1, %v1819
    %v1821 = vrot.slane %v1230, %v1820
    %v1822 = vlaneseq
    %v1823 = vshrl.u32 %v1822, 7
    %v1824 = vsub.s32 1, %v1823
    %v1825 = vrot.slane %v1229, %v1824
    %v1826 = vlaneseq
    %v1827 = vshrl.u32 %v1826, 7
    %v1828 = vsub.s32 1, %v1827
    %v1829 = vrot.slane %v1231, %v1828
    %v1830 = vlaneseq
    %v1831 = vshrl.u32 %v1830, 7
    %v1832 = vsub.s32 1, %v1831
    %v1833 = vrot.slane %v1239, %v1832
    %v1834 = vlaneseq
    %v1835 = vshrl.u32 %v1834, 7
    %v1836 = vsub.s32 1, %v1835
    %v1837 = vrot.slane %v1247, %v1836
    %v1838 = vlaneseq
    %v1839 = vshrl.u32 %v1838, 7
    %v1840 = vsub.s32 1, %v1839
    %v1841 = vrot.slane %v1246, %v1840
    %v1842 = vlaneseq
    %v1843 = vshrl.u32 %v1842, 7
    %v1844 = vsub.s32 1, %v1843
    %v1845 = vrot.slane %v1248, %v1844
    %v1846 = vlaneseq
    %v1847 = vshrl.u32 %v1846, 7
    %v1848 = vsub.s32 1, %v1847
    %v1849 = vrot.slane %v1256, %v1848
    %v1850 = vlaneseq
    %v1851 = vshrl.u32 %v1850, 7
    %v1852 = vsub.s32 1, %v1851
    %v1853 = vrot.slane %v1264, %v1852
    %v1854 = vlaneseq
    %v1855 = vshrl.u32 %v1854, 7
    %v1856 = vsub.s32 1, %v1855
    %v1857 = vrot.slane %v1263, %v1856
    %v1858 = vlaneseq
    %v1859 = vshrl.u32 %v1858, 7
    %v1860 = vsub.s32 1, %v1859
    %v1861 = vrot.slane %v1265, %v1860
    %v1862 = vlaneseq
    %v1863 = vshrl.u32 %v1862, 7
    %v1864 = vsub.s32 1, %v1863
    %v1865 = vrot.slane %v1273, %v1864
    %v1866 = vlaneseq
    %v1867 = vshrl.u32 %v1866, 7
    %v1868 = vsub.s32 1, %v1867
    %v1869 = vrot.slane %v1281, %v1868
    %v1870 = vlaneseq
    %v1871 = vshrl.u32 %v1870, 7
    %v1872 = vsub.s32 1, %v1871
    %v1873 = vrot.slane %v1280, %v1872
    %v1874 = vlaneseq
    %v1875 = vshrl.u32 %v1874, 7
    %v1876 = vsub.s32 1, %v1875
    %v1877 = vrot.slane %v1282, %v1876
    %v1878 = vlaneseq
    %v1879 = vshrl.u32 %v1878, 7
    %v1880 = vsub.s32 1, %v1879
    %v1881 = vrot.slane %v1290, %v1880
    %v1882 = vlaneseq
    %v1883 = vshrl.u32 %v1882, 7
    %v1884 = vsub.s32 1, %v1883
    %v1885 = vrot.slane %v1298, %v1884
    %v1886 = vlaneseq
    %v1887 = vshrl.u32 %v1886, 7
    %v1888 = vsub.s32 1, %v1887
    %v1889 = vrot.slane %v1297, %v1888
    %v1890 = vlaneseq
    %v1891 = vshrl.u32 %v1890, 7
    %v1892 = vsub.s32 1, %v1891
    %v1893 = vrot.slane %v1299, %v1892
    %v1894 = vlaneseq
    %v1895 = vshrl.u32 %v1894, 7
    %v1896 = vsub.s32 1, %v1895
    %v1897 = vrot.slane %v1307, %v1896
    %v1898 = vlaneseq
    %v1899 = vshrl.u32 %v1898, 7
    %v1900 = vsub.s32 1, %v1899
    %v1901 = vrot.slane %v1315, %v1900
    %v1902 = vlaneseq
    %v1903 = vshrl.u32 %v1902, 7
    %v1904 = vsub.s32 1, %v1903
    %v1905 = vrot.slane %v1314, %v1904
    %v1906 = vlaneseq
    %v1907 = vshrl.u32 %v1906, 7
    %v1908 = vsub.s32 1, %v1907
    %v1909 = vrot.slane %v1316, %v1908
    %v1910 = vlaneseq
    %v1911 = vshrl.u32 %v1910, 7
    %v1912 = vsub.s32 1, %v1911
    %v1913 = vrot.slane %v1324, %v1912
    %v1914 = vlaneseq
    %v1915 = vshrl.u32 %v1914, 7
    %v1916 = vsub.s32 1, %v1915
    %v1917 = vrot.slane %v1332, %v1916
    %v1918 = vlaneseq
    %v1919 = vshrl.u32 %v1918, 7
    %v1920 = vsub.s32 1, %v1919
    %v1921 = vrot.slane %v1331, %v1920
    %v1922 = vlaneseq
    %v1923 = vshrl.u32 %v1922, 7
    %v1924 = vsub.s32 1, %v1923
    %v1925 = vrot.slane %v1333, %v1924
    %v1926 = vlaneseq
    %v1927 = vshrl.u32 %v1926, 7
    %v1928 = vsub.s32 1, %v1927
    %v1929 = vrot.slane %v1341, %v1928
    %v1930 = vlaneseq
    %v1931 = vshrl.u32 %v1930, 7
    %v1932 = vsub.s32 1, %v1931
    %v1933 = vrot.slane %v1349, %v1932
    %v1934 = vlaneseq
    %v1935 = vshrl.u32 %v1934, 7
    %v1936 = vsub.s32 1, %v1935
    %v1937 = vrot.slane %v1348, %v1936
    %v1938 = vlaneseq
    %v1939 = vshrl.u32 %v1938, 7
    %v1940 = vsub.s32 1, %v1939
    %v1941 = vrot.slane %v1350, %v1940
    %v1942 = vlaneseq
    %v1943 = vshrl.u32 %v1942, 7
    %v1944 = vsub.s32 1, %v1943
    %v1945 = vrot.slane %v1358, %v1944
    %v1946 = vlaneseq
    %v1947 = vshrl.u32 %v1946, 7
    %v1948 = vsub.s32 1, %v1947
    %v1949 = vrot.slane %v1366, %v1948
    %v1950 = vlaneseq
    %v1951 = vshrl.u32 %v1950, 7
    %v1952 = vsub.s32 1, %v1951
    %v1953 = vrot.slane %v1365, %v1952
    %v1954 = vlaneseq
    %v1955 = vshrl.u32 %v1954, 7
    %v1956 = vsub.s32 1, %v1955
    %v1957 = vrot.slane %v1367, %v1956
    %v1958 = vlaneseq
    %v1959 = vshrl.u32 %v1958, 7
    %v1960 = vsub.s32 1, %v1959
    %v1961 = vrot.slane %v1375, %v1960
    %v1962 = vlaneseq
    %v1963 = vshrl.u32 %v1962, 7
    %v1964 = vsub.s32 1, %v1963
    %v1965 = vrot.slane %v1383, %v1964
    %v1966 = vlaneseq
    %v1967 = vshrl.u32 %v1966, 7
    %v1968 = vsub.s32 1, %v1967
    %v1969 = vrot.slane %v1382, %v1968
    %v1970 = vlaneseq
    %v1971 = vshrl.u32 %v1970, 7
    %v1972 = vsub.s32 1, %v1971
    %v1973 = vrot.slane %v1384, %v1972
    %v1974 = vlaneseq
    %v1975 = vshrl.u32 %v1974, 7
    %v1976 = vsub.s32 1, %v1975
    %v1977 = vrot.slane %v1392, %v1976
    %v1978 = vlaneseq
    %v1979 = vshrl.u32 %v1978, 7
    %v1980 = vsub.s32 1, %v1979
    %v1981 = vrot.slane %v1400, %v1980
    %v1982 = vlaneseq
    %v1983 = vshrl.u32 %v1982, 7
    %v1984 = vsub.s32 1, %v1983
    %v1985 = vrot.slane %v1399, %v1984
    %v1986 = vlaneseq
    %v1987 = vshrl.u32 %v1986, 7
    %v1988 = vsub.s32 1, %v1987
    %v1989 = vrot.slane %v1401, %v1988
    %v1990 = vlaneseq
    %v1991 = vshrl.u32 %v1990, 7
    %v1992 = vsub.s32 1, %v1991
    %v1993 = vrot.slane %v1409, %v1992
    %v1994 = vlaneseq
    %v1995 = vshrl.u32 %v1994, 7
    %v1996 = vsub.s32 1, %v1995
    %v1997 = vrot.slane %v1417, %v1996
    %v1998 = vlaneseq
    %v1999 = vshrl.u32 %v1998, 7
    %v2000 = vsub.s32 1, %v1999
    %v2001 = vrot.slane %v1416, %v2000
    %v2002 = vlaneseq
    %v2003 = vshrl.u32 %v2002, 7
    %v2004 = vsub.s32 1, %v2003
    %v2005 = vrot.slane %v1418, %v2004
    %v2006 = vlaneseq
    %v2007 = vshrl.u32 %v2006, 7
    %v2008 = vsub.s32 1, %v2007
    %v2009 = vrot.slane %v1426, %v2008
    %v2010 = vlaneseq
    %v2011 = vshrl.u32 %v2010, 7
    %v2012 = vsub.s32 1, %v2011
    %v2013 = vrot.slane %v1434, %v2012
    %v2014 = vlaneseq
    %v2015 = vshrl.u32 %v2014, 7
    %v2016 = vsub.s32 1, %v2015
    %v2017 = vrot.slane %v1433, %v2016
    %v2018 = vlaneseq
    %v2019 = vshrl.u32 %v2018, 7
    %v2020 = vsub.s32 1, %v2019
    %v2021 = vrot.slane %v1435, %v2020
    %v2022 = vlaneseq
    %v2023 = vshrl.u32 %v2022, 7
    %v2024 = vsub.s32 1, %v2023
    %v2025 = vrot.slane %v1443, %v2024
    %v2026 = vlaneseq
    %v2027 = vshrl.u32 %v2026, 7
    %v2028 = vsub.s32 1, %v2027
    %v2029 = vrot.slane %v1451, %v2028
    %v2030 = vlaneseq
    %v2031 = vshrl.u32 %v2030, 7
    %v2032 = vsub.s32 1, %v2031
    %v2033 = vrot.slane %v1450, %v2032
    %v2034 = vlaneseq
    %v2035 = vshrl.u32 %v2034, 7
    %v2036 = vsub.s32 1, %v2035
    %v2037 = vrot.slane %v1452, %v2036
    %v2038 = vsel %vm840, %v1789, %v1785
    %v2039 = vsel %vm842, %v1793, %v2038
    %v2040 = vsel %vm844, %v1797, %v2039
    %v2041 = vsel %vm846, %v1801, %v2040
    %v2042 = vsel %vm848, %v1805, %v2041
    %v2043 = vsel %vm850, %v1809, %v2042
    %v2044 = vsel %vm840, %v1821, %v1817
    %v2045 = vsel %vm842, %v1825, %v2044
    %v2046 = vsel %vm844, %v1829, %v2045
    %v2047 = vsel %vm846, %v1833, %v2046
    %v2048 = vsel %vm848, %v1837, %v2047
    %v2049 = vsel %vm850, %v1841, %v2048
    %v2050 = vsel %vm840, %v1853, %v1849
    %v2051 = vsel %vm842, %v1857, %v2050
    %v2052 = vsel %vm844, %v1861, %v2051
    %v2053 = vsel %vm846, %v1865, %v2052
    %v2054 = vsel %vm848, %v1869, %v2053
    %v2055 = vsel %vm850, %v1873, %v2054
    %v2056 = vsel %vm840, %v1885, %v1881
    %v2057 = vsel %vm842, %v1889, %v2056
    %v2058 = vsel %vm844, %v1893, %v2057
    %v2059 = vsel %vm846, %v1897, %v2058
    %v2060 = vsel %vm848, %v1901, %v2059
    %v2061 = vsel %vm850, %v1905, %v2060
    %v2062 = vsel %vm840, %v1917, %v1913
    %v2063 = vsel %vm842, %v1921, %v2062
    %v2064 = vsel %vm844, %v1925, %v2063
    %v2065 = vsel %vm846, %v1929, %v2064
    %v2066 = vsel %vm848, %v1933, %v2065
    %v2067 = vsel %vm850, %v1937, %v2066
    %v2068 = vsel %vm840, %v1949, %v1945
    %v2069 = vsel %vm842, %v1953, %v2068
    %v2070 = vsel %vm844, %v1957, %v2069
    %v2071 = vsel %vm846, %v1961, %v2070
    %v2072 = vsel %vm848, %v1965, %v2071
    %v2073 = vsel %vm850, %v1969, %v2072
    %v2074 = vsel %vm840, %v1981, %v1977
    %v2075 = vsel %vm842, %v1985, %v2074
    %v2076 = vsel %vm844, %v1989, %v2075
    %v2077 = vsel %vm846, %v1993, %v2076
    %v2078 = vsel %vm848, %v1997, %v2077
    %v2079 = vsel %vm850, %v2001, %v2078
    %v2080 = vsel %vm840, %v2013, %v2009
    %v2081 = vsel %vm842, %v2017, %v2080
    %v2082 = vsel %vm844, %v2021, %v2081
    %v2083 = vsel %vm846, %v2025, %v2082
    %v2084 = vsel %vm848, %v2029, %v2083
    %v2085 = vsel %vm850, %v2033, %v2084
    %s2102 = scalar_lea.vmem %s1, 16
    %vm2103 = vcmask 64513
    %2104 = vst.msk [vmem:[%s2102 - $0x1] sm:$0xfe] %vm2103, %v2043
    %vm2105 = vcmask 57344
    %2106 = vst.msk [vmem:[%s2102 + $0x7] sm:$0x1] %vm2105, %v1813
    %2107 = vst.msk [vmem:[%s2102 + $0x1f] sm:$0xfe] %vm2103, %v2049
    %2108 = vst.msk [vmem:[%s2102 + $0x27] sm:$0x1] %vm2105, %v1845
    %2109 = vst.msk [vmem:[%s2102 + $0x3f] sm:$0xfe] %vm2103, %v2055
    %2110 = vst.msk [vmem:[%s2102 + $0x47] sm:$0x1] %vm2105, %v1877
    %2111 = vst.msk [vmem:[%s2102 + $0x5f] sm:$0xfe] %vm2103, %v2061
    %2112 = vst.msk [vmem:[%s2102 + $0x67] sm:$0x1] %vm2105, %v1909
    %2113 = vst.msk [vmem:[%s2102 + $0x7f] sm:$0xfe] %vm2103, %v2067
    %2114 = vst.msk [vmem:[%s2102 + $0x87] sm:$0x1] %vm2105, %v1941
    %2115 = vst.msk [vmem:[%s2102 + $0x9f] sm:$0xfe] %vm2103, %v2073
    %2116 = vst.msk [vmem:[%s2102 + $0xa7] sm:$0x1] %vm2105, %v1973
    %2117 = vst.msk [vmem:[%s2102 + $0xbf] sm:$0xfe] %vm2103, %v2079
    %2118 = vst.msk [vmem:[%s2102 + $0xc7] sm:$0x1] %vm2105, %v2005
    %2119 = vst.msk [vmem:[%s2102 + $0xdf] sm:$0xfe] %vm2103, %v2085
    %2120 = vst.msk [vmem:[%s2102 + $0xe7] sm:$0x1] %vm2105, %v2037
    %v2121 = vlaneseq
    %v2122 = vshrl.u32 %v2121, 7
    %v2123 = vsub.s32 1, %v2122
    %v2124 = vrot.slane %v317, %v2123
    %v2125 = vlaneseq
    %v2126 = vshrl.u32 %v2125, 7
    %v2127 = vsub.s32 1, %v2126
    %v2128 = vrot.slane %v325, %v2127
    %v2129 = vlaneseq
    %v2130 = vshrl.u32 %v2129, 7
    %v2131 = vsub.s32 1, %v2130
    %v2132 = vrot.slane %v324, %v2131
    %v2133 = vlaneseq
    %v2134 = vshrl.u32 %v2133, 7
    %v2135 = vsub.s32 1, %v2134
    %v2136 = vrot.slane %v326, %v2135
    %v2137 = vlaneseq
    %v2138 = vshrl.u32 %v2137, 7
    %v2139 = vsub.s32 1, %v2138
    %v2140 = vrot.slane %v334, %v2139
    %v2141 = vlaneseq
    %v2142 = vshrl.u32 %v2141, 7
    %v2143 = vsub.s32 1, %v2142
    %v2144 = vrot.slane %v342, %v2143
    %v2145 = vlaneseq
    %v2146 = vshrl.u32 %v2145, 7
    %v2147 = vsub.s32 1, %v2146
    %v2148 = vrot.slane %v341, %v2147
    %v2149 = vlaneseq
    %v2150 = vshrl.u32 %v2149, 7
    %v2151 = vsub.s32 1, %v2150
    %v2152 = vrot.slane %v343, %v2151
    %v2153 = vlaneseq
    %v2154 = vshrl.u32 %v2153, 7
    %v2155 = vsub.s32 1, %v2154
    %v2156 = vrot.slane %v351, %v2155
    %v2157 = vlaneseq
    %v2158 = vshrl.u32 %v2157, 7
    %v2159 = vsub.s32 1, %v2158
    %v2160 = vrot.slane %v359, %v2159
    %v2161 = vlaneseq
    %v2162 = vshrl.u32 %v2161, 7
    %v2163 = vsub.s32 1, %v2162
    %v2164 = vrot.slane %v358, %v2163
    %v2165 = vlaneseq
    %v2166 = vshrl.u32 %v2165, 7
    %v2167 = vsub.s32 1, %v2166
    %v2168 = vrot.slane %v360, %v2167
    %v2169 = vlaneseq
    %v2170 = vshrl.u32 %v2169, 7
    %v2171 = vsub.s32 1, %v2170
    %v2172 = vrot.slane %v368, %v2171
    %v2173 = vlaneseq
    %v2174 = vshrl.u32 %v2173, 7
    %v2175 = vsub.s32 1, %v2174
    %v2176 = vrot.slane %v376, %v2175
    %v2177 = vlaneseq
    %v2178 = vshrl.u32 %v2177, 7
    %v2179 = vsub.s32 1, %v2178
    %v2180 = vrot.slane %v375, %v2179
    %v2181 = vlaneseq
    %v2182 = vshrl.u32 %v2181, 7
    %v2183 = vsub.s32 1, %v2182
    %v2184 = vrot.slane %v377, %v2183
    %v2185 = vlaneseq
    %v2186 = vshrl.u32 %v2185, 7
    %v2187 = vsub.s32 1, %v2186
    %v2188 = vrot.slane %v385, %v2187
    %v2189 = vlaneseq
    %v2190 = vshrl.u32 %v2189, 7
    %v2191 = vsub.s32 1, %v2190
    %v2192 = vrot.slane %v393, %v2191
    %v2193 = vlaneseq
    %v2194 = vshrl.u32 %v2193, 7
    %v2195 = vsub.s32 1, %v2194
    %v2196 = vrot.slane %v392, %v2195
    %v2197 = vlaneseq
    %v2198 = vshrl.u32 %v2197, 7
    %v2199 = vsub.s32 1, %v2198
    %v2200 = vrot.slane %v394, %v2199
    %v2201 = vlaneseq
    %v2202 = vshrl.u32 %v2201, 7
    %v2203 = vsub.s32 1, %v2202
    %v2204 = vrot.slane %v402, %v2203
    %v2205 = vlaneseq
    %v2206 = vshrl.u32 %v2205, 7
    %v2207 = vsub.s32 1, %v2206
    %v2208 = vrot.slane %v410, %v2207
    %v2209 = vlaneseq
    %v2210 = vshrl.u32 %v2209, 7
    %v2211 = vsub.s32 1, %v2210
    %v2212 = vrot.slane %v409, %v2211
    %v2213 = vlaneseq
    %v2214 = vshrl.u32 %v2213, 7
    %v2215 = vsub.s32 1, %v2214
    %v2216 = vrot.slane %v411, %v2215
    %v2217 = vlaneseq
    %v2218 = vshrl.u32 %v2217, 7
    %v2219 = vsub.s32 1, %v2218
    %v2220 = vrot.slane %v419, %v2219
    %v2221 = vlaneseq
    %v2222 = vshrl.u32 %v2221, 7
    %v2223 = vsub.s32 1, %v2222
    %v2224 = vrot.slane %v427, %v2223
    %v2225 = vlaneseq
    %v2226 = vshrl.u32 %v2225, 7
    %v2227 = vsub.s32 1, %v2226
    %v2228 = vrot.slane %v426, %v2227
    %v2229 = vlaneseq
    %v2230 = vshrl.u32 %v2229, 7
    %v2231 = vsub.s32 1, %v2230
    %v2232 = vrot.slane %v428, %v2231
    %v2233 = vlaneseq
    %v2234 = vshrl.u32 %v2233, 7
    %v2235 = vsub.s32 1, %v2234
    %v2236 = vrot.slane %v436, %v2235
    %v2237 = vlaneseq
    %v2238 = vshrl.u32 %v2237, 7
    %v2239 = vsub.s32 1, %v2238
    %v2240 = vrot.slane %v444, %v2239
    %v2241 = vlaneseq
    %v2242 = vshrl.u32 %v2241, 7
    %v2243 = vsub.s32 1, %v2242
    %v2244 = vrot.slane %v443, %v2243
    %v2245 = vlaneseq
    %v2246 = vshrl.u32 %v2245, 7
    %v2247 = vsub.s32 1, %v2246
    %v2248 = vrot.slane %v445, %v2247
    %v2249 = vlaneseq
    %v2250 = vshrl.u32 %v2249, 7
    %v2251 = vsub.s32 1, %v2250
    %v2252 = vrot.slane %v453, %v2251
    %v2253 = vlaneseq
    %v2254 = vshrl.u32 %v2253, 7
    %v2255 = vsub.s32 1, %v2254
    %v2256 = vrot.slane %v461, %v2255
    %v2257 = vlaneseq
    %v2258 = vshrl.u32 %v2257, 7
    %v2259 = vsub.s32 1, %v2258
    %v2260 = vrot.slane %v460, %v2259
    %v2261 = vlaneseq
    %v2262 = vshrl.u32 %v2261, 7
    %v2263 = vsub.s32 1, %v2262
    %v2264 = vrot.slane %v462, %v2263
    %v2265 = vlaneseq
    %v2266 = vshrl.u32 %v2265, 7
    %v2267 = vsub.s32 1, %v2266
    %v2268 = vrot.slane %v470, %v2267
    %v2269 = vlaneseq
    %v2270 = vshrl.u32 %v2269, 7
    %v2271 = vsub.s32 1, %v2270
    %v2272 = vrot.slane %v478, %v2271
    %v2273 = vlaneseq
    %v2274 = vshrl.u32 %v2273, 7
    %v2275 = vsub.s32 1, %v2274
    %v2276 = vrot.slane %v477, %v2275
    %v2277 = vlaneseq
    %v2278 = vshrl.u32 %v2277, 7
    %v2279 = vsub.s32 1, %v2278
    %v2280 = vrot.slane %v479, %v2279
    %v2281 = vlaneseq
    %v2282 = vshrl.u32 %v2281, 7
    %v2283 = vsub.s32 1, %v2282
    %v2284 = vrot.slane %v487, %v2283
    %v2285 = vlaneseq
    %v2286 = vshrl.u32 %v2285, 7
    %v2287 = vsub.s32 1, %v2286
    %v2288 = vrot.slane %v495, %v2287
    %v2289 = vlaneseq
    %v2290 = vshrl.u32 %v2289, 7
    %v2291 = vsub.s32 1, %v2290
    %v2292 = vrot.slane %v494, %v2291
    %v2293 = vlaneseq
    %v2294 = vshrl.u32 %v2293, 7
    %v2295 = vsub.s32 1, %v2294
    %v2296 = vrot.slane %v496, %v2295
    %v2297 = vlaneseq
    %v2298 = vshrl.u32 %v2297, 7
    %v2299 = vsub.s32 1, %v2298
    %v2300 = vrot.slane %v504, %v2299
    %v2301 = vlaneseq
    %v2302 = vshrl.u32 %v2301, 7
    %v2303 = vsub.s32 1, %v2302
    %v2304 = vrot.slane %v512, %v2303
    %v2305 = vlaneseq
    %v2306 = vshrl.u32 %v2305, 7
    %v2307 = vsub.s32 1, %v2306
    %v2308 = vrot.slane %v511, %v2307
    %v2309 = vlaneseq
    %v2310 = vshrl.u32 %v2309, 7
    %v2311 = vsub.s32 1, %v2310
    %v2312 = vrot.slane %v513, %v2311
    %v2313 = vlaneseq
    %v2314 = vshrl.u32 %v2313, 7
    %v2315 = vsub.s32 1, %v2314
    %v2316 = vrot.slane %v521, %v2315
    %v2317 = vlaneseq
    %v2318 = vshrl.u32 %v2317, 7
    %v2319 = vsub.s32 1, %v2318
    %v2320 = vrot.slane %v529, %v2319
    %v2321 = vlaneseq
    %v2322 = vshrl.u32 %v2321, 7
    %v2323 = vsub.s32 1, %v2322
    %v2324 = vrot.slane %v528, %v2323
    %v2325 = vlaneseq
    %v2326 = vshrl.u32 %v2325, 7
    %v2327 = vsub.s32 1, %v2326
    %v2328 = vrot.slane %v530, %v2327
    %v2329 = vlaneseq
    %v2330 = vshrl.u32 %v2329, 7
    %v2331 = vsub.s32 1, %v2330
    %v2332 = vrot.slane %v538, %v2331
    %v2333 = vlaneseq
    %v2334 = vshrl.u32 %v2333, 7
    %v2335 = vsub.s32 1, %v2334
    %v2336 = vrot.slane %v546, %v2335
    %v2337 = vlaneseq
    %v2338 = vshrl.u32 %v2337, 7
    %v2339 = vsub.s32 1, %v2338
    %v2340 = vrot.slane %v545, %v2339
    %v2341 = vlaneseq
    %v2342 = vshrl.u32 %v2341, 7
    %v2343 = vsub.s32 1, %v2342
    %v2344 = vrot.slane %v547, %v2343
    %v2345 = vlaneseq
    %v2346 = vshrl.u32 %v2345, 7
    %v2347 = vsub.s32 1, %v2346
    %v2348 = vrot.slane %v555, %v2347
    %v2349 = vlaneseq
    %v2350 = vshrl.u32 %v2349, 7
    %v2351 = vsub.s32 1, %v2350
    %v2352 = vrot.slane %v563, %v2351
    %v2353 = vlaneseq
    %v2354 = vshrl.u32 %v2353, 7
    %v2355 = vsub.s32 1, %v2354
    %v2356 = vrot.slane %v562, %v2355
    %v2357 = vlaneseq
    %v2358 = vshrl.u32 %v2357, 7
    %v2359 = vsub.s32 1, %v2358
    %v2360 = vrot.slane %v564, %v2359
    %v2361 = vlaneseq
    %v2362 = vshrl.u32 %v2361, 7
    %v2363 = vsub.s32 1, %v2362
    %v2364 = vrot.slane %v572, %v2363
    %v2365 = vlaneseq
    %v2366 = vshrl.u32 %v2365, 7
    %v2367 = vsub.s32 1, %v2366
    %v2368 = vrot.slane %v580, %v2367
    %v2369 = vlaneseq
    %v2370 = vshrl.u32 %v2369, 7
    %v2371 = vsub.s32 1, %v2370
    %v2372 = vrot.slane %v579, %v2371
    %v2373 = vlaneseq
    %v2374 = vshrl.u32 %v2373, 7
    %v2375 = vsub.s32 1, %v2374
    %v2376 = vrot.slane %v581, %v2375
    %v2377 = vsel %vm838, %v2128, %v2124
    %v2378 = vsel %vm840, %v2132, %v2377
    %v2379 = vsel %vm842, %v2136, %v2378
    %v2380 = vsel %vm844, %v2140, %v2379
    %v2381 = vsel %vm846, %v2144, %v2380
    %v2382 = vsel %vm848, %v2148, %v2381
    %v2383 = vsel %vm850, %v2152, %v2382
    %v2384 = vsel %vm838, %v2160, %v2156
    %v2385 = vsel %vm840, %v2164, %v2384
    %v2386 = vsel %vm842, %v2168, %v2385
    %v2387 = vsel %vm844, %v2172, %v2386
    %v2388 = vsel %vm846, %v2176, %v2387
    %v2389 = vsel %vm848, %v2180, %v2388
    %v2390 = vsel %vm850, %v2184, %v2389
    %v2391 = vsel %vm838, %v2192, %v2188
    %v2392 = vsel %vm840, %v2196, %v2391
    %v2393 = vsel %vm842, %v2200, %v2392
    %v2394 = vsel %vm844, %v2204, %v2393
    %v2395 = vsel %vm846, %v2208, %v2394
    %v2396 = vsel %vm848, %v2212, %v2395
    %v2397 = vsel %vm850, %v2216, %v2396
    %v2398 = vsel %vm838, %v2224, %v2220
    %v2399 = vsel %vm840, %v2228, %v2398
    %v2400 = vsel %vm842, %v2232, %v2399
    %v2401 = vsel %vm844, %v2236, %v2400
    %v2402 = vsel %vm846, %v2240, %v2401
    %v2403 = vsel %vm848, %v2244, %v2402
    %v2404 = vsel %vm850, %v2248, %v2403
    %v2405 = vsel %vm838, %v2256, %v2252
    %v2406 = vsel %vm840, %v2260, %v2405
    %v2407 = vsel %vm842, %v2264, %v2406
    %v2408 = vsel %vm844, %v2268, %v2407
    %v2409 = vsel %vm846, %v2272, %v2408
    %v2410 = vsel %vm848, %v2276, %v2409
    %v2411 = vsel %vm850, %v2280, %v2410
    %v2412 = vsel %vm838, %v2288, %v2284
    %v2413 = vsel %vm840, %v2292, %v2412
    %v2414 = vsel %vm842, %v2296, %v2413
    %v2415 = vsel %vm844, %v2300, %v2414
    %v2416 = vsel %vm846, %v2304, %v2415
    %v2417 = vsel %vm848, %v2308, %v2416
    %v2418 = vsel %vm850, %v2312, %v2417
    %v2419 = vsel %vm838, %v2320, %v2316
    %v2420 = vsel %vm840, %v2324, %v2419
    %v2421 = vsel %vm842, %v2328, %v2420
    %v2422 = vsel %vm844, %v2332, %v2421
    %v2423 = vsel %vm846, %v2336, %v2422
    %v2424 = vsel %vm848, %v2340, %v2423
    %v2425 = vsel %vm850, %v2344, %v2424
    %v2426 = vsel %vm838, %v2352, %v2348
    %v2427 = vsel %vm840, %v2356, %v2426
    %v2428 = vsel %vm842, %v2360, %v2427
    %v2429 = vsel %vm844, %v2364, %v2428
    %v2430 = vsel %vm846, %v2368, %v2429
    %v2431 = vsel %vm848, %v2372, %v2430
    %v2432 = vsel %vm850, %v2376, %v2431
    %2441 = vxpose.xlu0.b32.start [1/16] %v2383, 128
    %2442 = vxpose.xlu0.b32.cont [2/16] 0.0, 128
    %2443 = vxpose.xlu0.b32.cont [3/16] 0.0, 128
    %2444 = vxpose.xlu0.b32.cont [4/16] 0.0, 128
    %2445 = vxpose.xlu0.b32.cont [5/16] 0.0, 128
    %2446 = vxpose.xlu0.b32.cont [6/16] 0.0, 128
    %2447 = vxpose.xlu0.b32.cont [7/16] 0.0, 128
    %2448 = vxpose.xlu0.b32.cont [8/16] 0.0, 128
    %2449 = vxpose.xlu0.b32.cont [9/16] 0.0, 128
    %2450 = vxpose.xlu0.b32.cont [10/16] 0.0, 128
    %2451 = vxpose.xlu0.b32.cont [11/16] 0.0, 128
    %2452 = vxpose.xlu0.b32.cont [12/16] 0.0, 128
    %2453 = vxpose.xlu0.b32.cont [13/16] 0.0, 128
    %2454 = vxpose.xlu0.b32.cont [14/16] 0.0, 128
    %2455 = vxpose.xlu0.b32.cont [15/16] 0.0, 128
    %2456 = vxpose.xlu0.b32.end [16/16] 0.0, 128
    %v2457 = vpop.trf.xlu0
    %v2458 = vpop.trf.xlu0
    %v2459 = vpop.trf.xlu0
    %v2460 = vpop.trf.xlu0
    %v2461 = vpop.trf.xlu0
    %v2462 = vpop.trf.xlu0
    %v2463 = vpop.trf.xlu0
    %v2464 = vpop.trf.xlu0
    %v2465 = vpop.trf.xlu0
    %v2466 = vpop.trf.xlu0
    %v2467 = vpop.trf.xlu0
    %v2468 = vpop.trf.xlu0
    %v2469 = vpop.trf.xlu0
    %v2470 = vpop.trf.xlu0
    %v2471 = vpop.trf.xlu0
    %v2472 = vpop.trf.xlu0
    %2473 = vxpose.xlu0.b32.start [1/16] %v2390, 128
    %2474 = vxpose.xlu0.b32.cont [2/16] 0.0, 128
    %2475 = vxpose.xlu0.b32.cont [3/16] 0.0, 128
    %2476 = vxpose.xlu0.b32.cont [4/16] 0.0, 128
    %2477 = vxpose.xlu0.b32.cont [5/16] 0.0, 128
    %2478 = vxpose.xlu0.b32.cont [6/16] 0.0, 128
    %2479 = vxpose.xlu0.b32.cont [7/16] 0.0, 128
    %2480 = vxpose.xlu0.b32.cont [8/16] 0.0, 128
    %2481 = vxpose.xlu0.b32.cont [9/16] 0.0, 128
    %2482 = vxpose.xlu0.b32.cont [10/16] 0.0, 128
    %2483 = vxpose.xlu0.b32.cont [11/16] 0.0, 128
    %2484 = vxpose.xlu0.b32.cont [12/16] 0.0, 128
    %2485 = vxpose.xlu0.b32.cont [13/16] 0.0, 128
    %2486 = vxpose.xlu0.b32.cont [14/16] 0.0, 128
    %2487 = vxpose.xlu0.b32.cont [15/16] 0.0, 128
    %2488 = vxpose.xlu0.b32.end [16/16] 0.0, 128
    %v2489 = vpop.trf.xlu0
    %v2490 = vpop.trf.xlu0
    %v2491 = vpop.trf.xlu0
    %v2492 = vpop.trf.xlu0
    %v2493 = vpop.trf.xlu0
    %v2494 = vpop.trf.xlu0
    %v2495 = vpop.trf.xlu0
    %v2496 = vpop.trf.xlu0
    %v2497 = vpop.trf.xlu0
    %v2498 = vpop.trf.xlu0
    %v2499 = vpop.trf.xlu0
    %v2500 = vpop.trf.xlu0
    %v2501 = vpop.trf.xlu0
    %v2502 = vpop.trf.xlu0
    %v2503 = vpop.trf.xlu0
    %v2504 = vpop.trf.xlu0
    %2505 = vxpose.xlu0.b32.start [1/16] %v2397, 128
    %2506 = vxpose.xlu0.b32.cont [2/16] 0.0, 128
    %2507 = vxpose.xlu0.b32.cont [3/16] 0.0, 128
    %2508 = vxpose.xlu0.b32.cont [4/16] 0.0, 128
    %2509 = vxpose.xlu0.b32.cont [5/16] 0.0, 128
    %2510 = vxpose.xlu0.b32.cont [6/16] 0.0, 128
    %2511 = vxpose.xlu0.b32.cont [7/16] 0.0, 128
    %2512 = vxpose.xlu0.b32.cont [8/16] 0.0, 128
    %2513 = vxpose.xlu0.b32.cont [9/16] 0.0, 128
    %2514 = vxpose.xlu0.b32.cont [10/16] 0.0, 128
    %2515 = vxpose.xlu0.b32.cont [11/16] 0.0, 128
    %2516 = vxpose.xlu0.b32.cont [12/16] 0.0, 128
    %2517 = vxpose.xlu0.b32.cont [13/16] 0.0, 128
    %2518 = vxpose.xlu0.b32.cont [14/16] 0.0, 128
    %2519 = vxpose.xlu0.b32.cont [15/16] 0.0, 128
    %2520 = vxpose.xlu0.b32.end [16/16] 0.0, 128
    %v2521 = vpop.trf.xlu0
    %v2522 = vpop.trf.xlu0
    %v2523 = vpop.trf.xlu0
    %v2524 = vpop.trf.xlu0
    %v2525 = vpop.trf.xlu0
    %v2526 = vpop.trf.xlu0
    %v2527 = vpop.trf.xlu0
    %v2528 = vpop.trf.xlu0
    %v2529 = vpop.trf.xlu0
    %v2530 = vpop.trf.xlu0
    %v2531 = vpop.trf.xlu0
    %v2532 = vpop.trf.xlu0
    %v2533 = vpop.trf.xlu0
    %v2534 = vpop.trf.xlu0
    %v2535 = vpop.trf.xlu0
    %v2536 = vpop.trf.xlu0
    %2537 = vxpose.xlu0.b32.start [1/16] %v2404, 128
    %2538 = vxpose.xlu0.b32.cont [2/16] 0.0, 128
    %2539 = vxpose.xlu0.b32.cont [3/16] 0.0, 128
    %2540 = vxpose.xlu0.b32.cont [4/16] 0.0, 128
    %2541 = vxpose.xlu0.b32.cont [5/16] 0.0, 128
    %2542 = vxpose.xlu0.b32.cont [6/16] 0.0, 128
    %2543 = vxpose.xlu0.b32.cont [7/16] 0.0, 128
    %2544 = vxpose.xlu0.b32.cont [8/16] 0.0, 128
    %2545 = vxpose.xlu0.b32.cont [9/16] 0.0, 128
    %2546 = vxpose.xlu0.b32.cont [10/16] 0.0, 128
    %2547 = vxpose.xlu0.b32.cont [11/16] 0.0, 128
    %2548 = vxpose.xlu0.b32.cont [12/16] 0.0, 128
    %2549 = vxpose.xlu0.b32.cont [13/16] 0.0, 128
    %2550 = vxpose.xlu0.b32.cont [14/16] 0.0, 128
    %2551 = vxpose.xlu0.b32.cont [15/16] 0.0, 128
    %2552 = vxpose.xlu0.b32.end [16/16] 0.0, 128
    %v2553 = vpop.trf.xlu0
    %v2554 = vpop.trf.xlu0
    %v2555 = vpop.trf.xlu0
    %v2556 = vpop.trf.xlu0
    %v2557 = vpop.trf.xlu0
    %v2558 = vpop.trf.xlu0
    %v2559 = vpop.trf.xlu0
    %v2560 = vpop.trf.xlu0
    %v2561 = vpop.trf.xlu0
    %v2562 = vpop.trf.xlu0
    %v2563 = vpop.trf.xlu0
    %v2564 = vpop.trf.xlu0
    %v2565 = vpop.trf.xlu0
    %v2566 = vpop.trf.xlu0
    %v2567 = vpop.trf.xlu0
    %v2568 = vpop.trf.xlu0
    %2569 = vxpose.xlu0.b32.start [1/16] %v2411, 128
    %2570 = vxpose.xlu0.b32.cont [2/16] 0.0, 128
    %2571 = vxpose.xlu0.b32.cont [3/16] 0.0, 128
    %2572 = vxpose.xlu0.b32.cont [4/16] 0.0, 128
    %2573 = vxpose.xlu0.b32.cont [5/16] 0.0, 128
    %2574 = vxpose.xlu0.b32.cont [6/16] 0.0, 128
    %2575 = vxpose.xlu0.b32.cont [7/16] 0.0, 128
    %2576 = vxpose.xlu0.b32.cont [8/16] 0.0, 128
    %2577 = vxpose.xlu0.b32.cont [9/16] 0.0, 128
    %2578 = vxpose.xlu0.b32.cont [10/16] 0.0, 128
    %2579 = vxpose.xlu0.b32.cont [11/16] 0.0, 128
    %2580 = vxpose.xlu0.b32.cont [12/16] 0.0, 128
    %2581 = vxpose.xlu0.b32.cont [13/16] 0.0, 128
    %2582 = vxpose.xlu0.b32.cont [14/16] 0.0, 128
    %2583 = vxpose.xlu0.b32.cont [15/16] 0.0, 128
    %2584 = vxpose.xlu0.b32.end [16/16] 0.0, 128
    %v2585 = vpop.trf.xlu0
    %v2586 = vpop.trf.xlu0
    %v2587 = vpop.trf.xlu0
    %v2588 = vpop.trf.xlu0
    %v2589 = vpop.trf.xlu0
    %v2590 = vpop.trf.xlu0
    %v2591 = vpop.trf.xlu0
    %v2592 = vpop.trf.xlu0
    %v2593 = vpop.trf.xlu0
    %v2594 = vpop.trf.xlu0
    %v2595 = vpop.trf.xlu0
    %v2596 = vpop.trf.xlu0
    %v2597 = vpop.trf.xlu0
    %v2598 = vpop.trf.xlu0
    %v2599 = vpop.trf.xlu0
    %v2600 = vpop.trf.xlu0
    %2601 = vxpose.xlu0.b32.start [1/16] %v2418, 128
    %2602 = vxpose.xlu0.b32.cont [2/16] 0.0, 128
    %2603 = vxpose.xlu0.b32.cont [3/16] 0.0, 128
    %2604 = vxpose.xlu0.b32.cont [4/16] 0.0, 128
    %2605 = vxpose.xlu0.b32.cont [5/16] 0.0, 128
    %2606 = vxpose.xlu0.b32.cont [6/16] 0.0, 128
    %2607 = vxpose.xlu0.b32.cont [7/16] 0.0, 128
    %2608 = vxpose.xlu0.b32.cont [8/16] 0.0, 128
    %2609 = vxpose.xlu0.b32.cont [9/16] 0.0, 128
    %2610 = vxpose.xlu0.b32.cont [10/16] 0.0, 128
    %2611 = vxpose.xlu0.b32.cont [11/16] 0.0, 128
    %2612 = vxpose.xlu0.b32.cont [12/16] 0.0, 128
    %2613 = vxpose.xlu0.b32.cont [13/16] 0.0, 128
    %2614 = vxpose.xlu0.b32.cont [14/16] 0.0, 128
    %2615 = vxpose.xlu0.b32.cont [15/16] 0.0, 128
    %2616 = vxpose.xlu0.b32.end [16/16] 0.0, 128
    %v2617 = vpop.trf.xlu0
    %v2618 = vpop.trf.xlu0
    %v2619 = vpop.trf.xlu0
    %v2620 = vpop.trf.xlu0
    %v2621 = vpop.trf.xlu0
    %v2622 = vpop.trf.xlu0
    %v2623 = vpop.trf.xlu0
    %v2624 = vpop.trf.xlu0
    %v2625 = vpop.trf.xlu0
    %v2626 = vpop.trf.xlu0
    %v2627 = vpop.trf.xlu0
    %v2628 = vpop.trf.xlu0
    %v2629 = vpop.trf.xlu0
    %v2630 = vpop.trf.xlu0
    %v2631 = vpop.trf.xlu0
    %v2632 = vpop.trf.xlu0
    %2633 = vxpose.xlu0.b32.start [1/16] %v2425, 128
    %2634 = vxpose.xlu0.b32.cont [2/16] 0.0, 128
    %2635 = vxpose.xlu0.b32.cont [3/16] 0.0, 128
    %2636 = vxpose.xlu0.b32.cont [4/16] 0.0, 128
    %2637 = vxpose.xlu0.b32.cont [5/16] 0.0, 128
    %2638 = vxpose.xlu0.b32.cont [6/16] 0.0, 128
    %2639 = vxpose.xlu0.b32.cont [7/16] 0.0, 128
    %2640 = vxpose.xlu0.b32.cont [8/16] 0.0, 128
    %2641 = vxpose.xlu0.b32.cont [9/16] 0.0, 128
    %2642 = vxpose.xlu0.b32.cont [10/16] 0.0, 128
    %2643 = vxpose.xlu0.b32.cont [11/16] 0.0, 128
    %2644 = vxpose.xlu0.b32.cont [12/16] 0.0, 128
    %2645 = vxpose.xlu0.b32.cont [13/16] 0.0, 128
    %2646 = vxpose.xlu0.b32.cont [14/16] 0.0, 128
    %2647 = vxpose.xlu0.b32.cont [15/16] 0.0, 128
    %2648 = vxpose.xlu0.b32.end [16/16] 0.0, 128
    %v2649 = vpop.trf.xlu0
    %v2650 = vpop.trf.xlu0
    %v2651 = vpop.trf.xlu0
    %v2652 = vpop.trf.xlu0
    %v2653 = vpop.trf.xlu0
    %v2654 = vpop.trf.xlu0
    %v2655 = vpop.trf.xlu0
    %v2656 = vpop.trf.xlu0
    %v2657 = vpop.trf.xlu0
    %v2658 = vpop.trf.xlu0
    %v2659 = vpop.trf.xlu0
    %v2660 = vpop.trf.xlu0
    %v2661 = vpop.trf.xlu0
    %v2662 = vpop.trf.xlu0
    %v2663 = vpop.trf.xlu0
    %v2664 = vpop.trf.xlu0
    %2665 = vxpose.xlu0.b32.start [1/16] %v2432, 128
    %2666 = vxpose.xlu0.b32.cont [2/16] 0.0, 128
    %2667 = vxpose.xlu0.b32.cont [3/16] 0.0, 128
    %2668 = vxpose.xlu0.b32.cont [4/16] 0.0, 128
    %2669 = vxpose.xlu0.b32.cont [5/16] 0.0, 128
    %2670 = vxpose.xlu0.b32.cont [6/16] 0.0, 128
    %2671 = vxpose.xlu0.b32.cont [7/16] 0.0, 128
    %2672 = vxpose.xlu0.b32.cont [8/16] 0.0, 128
    %2673 = vxpose.xlu0.b32.cont [9/16] 0.0, 128
    %2674 = vxpose.xlu0.b32.cont [10/16] 0.0, 128
    %2675 = vxpose.xlu0.b32.cont [11/16] 0.0, 128
    %2676 = vxpose.xlu0.b32.cont [12/16] 0.0, 128
    %2677 = vxpose.xlu0.b32.cont [13/16] 0.0, 128
    %2678 = vxpose.xlu0.b32.cont [14/16] 0.0, 128
    %2679 = vxpose.xlu0.b32.cont [15/16] 0.0, 128
    %2680 = vxpose.xlu0.b32.end [16/16] 0.0, 128
    %v2681 = vpop.trf.xlu0
    %v2682 = vpop.trf.xlu0
    %v2683 = vpop.trf.xlu0
    %v2684 = vpop.trf.xlu0
    %v2685 = vpop.trf.xlu0
    %v2686 = vpop.trf.xlu0
    %v2687 = vpop.trf.xlu0
    %v2688 = vpop.trf.xlu0
    %v2689 = vpop.trf.xlu0
    %v2690 = vpop.trf.xlu0
    %v2691 = vpop.trf.xlu0
    %v2692 = vpop.trf.xlu0
    %v2693 = vpop.trf.xlu0
    %v2694 = vpop.trf.xlu0
    %v2695 = vpop.trf.xlu0
    %v2696 = vpop.trf.xlu0
    %v2713 = vcombine.high %v2457, %v2457
    %v2715 = vunpack.c.l.s4 1983009808
    %v2716 = vunpack.c.0.s8 %v2715
    %v2717 = vlaneseq
    %v2718 = vshrl.u32 %v2717, 7
    %v2719 = vsub.s32 %v2716, %v2718
    %v2720 = vrot.slane %v2457, %v2719
    %v2722 = vunpack.c.l.s4 1983009808
    %v2723 = vunpack.c.0.s8 %v2722
    %v2724 = vlaneseq
    %v2725 = vshrl.u32 %v2724, 7
    %v2726 = vsub.s32 %v2723, %v2725
    %v2727 = vrot.slane %v2713, %v2726
    %v2728 = vcombine.high %v2720, %v2720
    %v2729 = vcombine.high %v2727, %v2727
    %v2730 = vcombine.high %v2458, %v2458
    %v2732 = vunpack.c.l.s4 1983009808
    %v2733 = vunpack.c.0.s8 %v2732
    %v2734 = vlaneseq
    %v2735 = vshrl.u32 %v2734, 7
    %v2736 = vsub.s32 %v2733, %v2735
    %v2737 = vrot.slane %v2458, %v2736
    %v2739 = vunpack.c.l.s4 1983009808
    %v2740 = vunpack.c.0.s8 %v2739
    %v2741 = vlaneseq
    %v2742 = vshrl.u32 %v2741, 7
    %v2743 = vsub.s32 %v2740, %v2742
    %v2744 = vrot.slane %v2730, %v2743
    %v2745 = vcombine.high %v2737, %v2737
    %v2746 = vcombine.high %v2744, %v2744
    %v2747 = vcombine.high %v2489, %v2489
    %v2749 = vunpack.c.l.s4 1983009808
    %v2750 = vunpack.c.0.s8 %v2749
    %v2751 = vlaneseq
    %v2752 = vshrl.u32 %v2751, 7
    %v2753 = vsub.s32 %v2750, %v2752
    %v2754 = vrot.slane %v2489, %v2753
    %v2756 = vunpack.c.l.s4 1983009808
    %v2757 = vunpack.c.0.s8 %v2756
    %v2758 = vlaneseq
    %v2759 = vshrl.u32 %v2758, 7
    %v2760 = vsub.s32 %v2757, %v2759
    %v2761 = vrot.slane %v2747, %v2760
    %v2762 = vcombine.high %v2754, %v2754
    %v2763 = vcombine.high %v2761, %v2761
    %v2764 = vcombine.high %v2490, %v2490
    %v2766 = vunpack.c.l.s4 1983009808
    %v2767 = vunpack.c.0.s8 %v2766
    %v2768 = vlaneseq
    %v2769 = vshrl.u32 %v2768, 7
    %v2770 = vsub.s32 %v2767, %v2769
    %v2771 = vrot.slane %v2490, %v2770
    %v2773 = vunpack.c.l.s4 1983009808
    %v2774 = vunpack.c.0.s8 %v2773
    %v2775 = vlaneseq
    %v2776 = vshrl.u32 %v2775, 7
    %v2777 = vsub.s32 %v2774, %v2776
    %v2778 = vrot.slane %v2764, %v2777
    %v2779 = vcombine.high %v2771, %v2771
    %v2780 = vcombine.high %v2778, %v2778
    %v2781 = vcombine.high %v2521, %v2521
    %v2783 = vunpack.c.l.s4 1983009808
    %v2784 = vunpack.c.0.s8 %v2783
    %v2785 = vlaneseq
    %v2786 = vshrl.u32 %v2785, 7
    %v2787 = vsub.s32 %v2784, %v2786
    %v2788 = vrot.slane %v2521, %v2787
    %v2790 = vunpack.c.l.s4 1983009808
    %v2791 = vunpack.c.0.s8 %v2790
    %v2792 = vlaneseq
    %v2793 = vshrl.u32 %v2792, 7
    %v2794 = vsub.s32 %v2791, %v2793
    %v2795 = vrot.slane %v2781, %v2794
    %v2796 = vcombine.high %v2788, %v2788
    %v2797 = vcombine.high %v2795, %v2795
    %v2798 = vcombine.high %v2522, %v2522
    %v2800 = vunpack.c.l.s4 1983009808
    %v2801 = vunpack.c.0.s8 %v2800
    %v2802 = vlaneseq
    %v2803 = vshrl.u32 %v2802, 7
    %v2804 = vsub.s32 %v2801, %v2803
    %v2805 = vrot.slane %v2522, %v2804
    %v2807 = vunpack.c.l.s4 1983009808
    %v2808 = vunpack.c.0.s8 %v2807
    %v2809 = vlaneseq
    %v2810 = vshrl.u32 %v2809, 7
    %v2811 = vsub.s32 %v2808, %v2810
    %v2812 = vrot.slane %v2798, %v2811
    %v2813 = vcombine.high %v2805, %v2805
    %v2814 = vcombine.high %v2812, %v2812
    %v2815 = vcombine.high %v2553, %v2553
    %v2817 = vunpack.c.l.s4 1983009808
    %v2818 = vunpack.c.0.s8 %v2817
    %v2819 = vlaneseq
    %v2820 = vshrl.u32 %v2819, 7
    %v2821 = vsub.s32 %v2818, %v2820
    %v2822 = vrot.slane %v2553, %v2821
    %v2824 = vunpack.c.l.s4 1983009808
    %v2825 = vunpack.c.0.s8 %v2824
    %v2826 = vlaneseq
    %v2827 = vshrl.u32 %v2826, 7
    %v2828 = vsub.s32 %v2825, %v2827
    %v2829 = vrot.slane %v2815, %v2828
    %v2830 = vcombine.high %v2822, %v2822
    %v2831 = vcombine.high %v2829, %v2829
    %v2832 = vcombine.high %v2554, %v2554
    %v2834 = vunpack.c.l.s4 1983009808
    %v2835 = vunpack.c.0.s8 %v2834
    %v2836 = vlaneseq
    %v2837 = vshrl.u32 %v2836, 7
    %v2838 = vsub.s32 %v2835, %v2837
    %v2839 = vrot.slane %v2554, %v2838
    %v2841 = vunpack.c.l.s4 1983009808
    %v2842 = vunpack.c.0.s8 %v2841
    %v2843 = vlaneseq
    %v2844 = vshrl.u32 %v2843, 7
    %v2845 = vsub.s32 %v2842, %v2844
    %v2846 = vrot.slane %v2832, %v2845
    %v2847 = vcombine.high %v2839, %v2839
    %v2848 = vcombine.high %v2846, %v2846
    %v2849 = vcombine.high %v2585, %v2585
    %v2851 = vunpack.c.l.s4 1983009808
    %v2852 = vunpack.c.0.s8 %v2851
    %v2853 = vlaneseq
    %v2854 = vshrl.u32 %v2853, 7
    %v2855 = vsub.s32 %v2852, %v2854
    %v2856 = vrot.slane %v2585, %v2855
    %v2858 = vunpack.c.l.s4 1983009808
    %v2859 = vunpack.c.0.s8 %v2858
    %v2860 = vlaneseq
    %v2861 = vshrl.u32 %v2860, 7
    %v2862 = vsub.s32 %v2859, %v2861
    %v2863 = vrot.slane %v2849, %v2862
    %v2864 = vcombine.high %v2856, %v2856
    %v2865 = vcombine.high %v2863, %v2863
    %v2866 = vcombine.high %v2586, %v2586
    %v2868 = vunpack.c.l.s4 1983009808
    %v2869 = vunpack.c.0.s8 %v2868
    %v2870 = vlaneseq
    %v2871 = vshrl.u32 %v2870, 7
    %v2872 = vsub.s32 %v2869, %v2871
    %v2873 = vrot.slane %v2586, %v2872
    %v2875 = vunpack.c.l.s4 1983009808
    %v2876 = vunpack.c.0.s8 %v2875
    %v2877 = vlaneseq
    %v2878 = vshrl.u32 %v2877, 7
    %v2879 = vsub.s32 %v2876, %v2878
    %v2880 = vrot.slane %v2866, %v2879
    %v2881 = vcombine.high %v2873, %v2873
    %v2882 = vcombine.high %v2880, %v2880
    %v2883 = vcombine.high %v2617, %v2617
    %v2885 = vunpack.c.l.s4 1983009808
    %v2886 = vunpack.c.0.s8 %v2885
    %v2887 = vlaneseq
    %v2888 = vshrl.u32 %v2887, 7
    %v2889 = vsub.s32 %v2886, %v2888
    %v2890 = vrot.slane %v2617, %v2889
    %v2892 = vunpack.c.l.s4 1983009808
    %v2893 = vunpack.c.0.s8 %v2892
    %v2894 = vlaneseq
    %v2895 = vshrl.u32 %v2894, 7
    %v2896 = vsub.s32 %v2893, %v2895
    %v2897 = vrot.slane %v2883, %v2896
    %v2898 = vcombine.high %v2890, %v2890
    %v2899 = vcombine.high %v2897, %v2897
    %v2900 = vcombine.high %v2618, %v2618
    %v2902 = vunpack.c.l.s4 1983009808
    %v2903 = vunpack.c.0.s8 %v2902
    %v2904 = vlaneseq
    %v2905 = vshrl.u32 %v2904, 7
    %v2906 = vsub.s32 %v2903, %v2905
    %v2907 = vrot.slane %v2618, %v2906
    %v2909 = vunpack.c.l.s4 1983009808
    %v2910 = vunpack.c.0.s8 %v2909
    %v2911 = vlaneseq
    %v2912 = vshrl.u32 %v2911, 7
    %v2913 = vsub.s32 %v2910, %v2912
    %v2914 = vrot.slane %v2900, %v2913
    %v2915 = vcombine.high %v2907, %v2907
    %v2916 = vcombine.high %v2914, %v2914
    %v2917 = vcombine.high %v2649, %v2649
    %v2919 = vunpack.c.l.s4 1983009808
    %v2920 = vunpack.c.0.s8 %v2919
    %v2921 = vlaneseq
    %v2922 = vshrl.u32 %v2921, 7
    %v2923 = vsub.s32 %v2920, %v2922
    %v2924 = vrot.slane %v2649, %v2923
    %v2926 = vunpack.c.l.s4 1983009808
    %v2927 = vunpack.c.0.s8 %v2926
    %v2928 = vlaneseq
    %v2929 = vshrl.u32 %v2928, 7
    %v2930 = vsub.s32 %v2927, %v2929
    %v2931 = vrot.slane %v2917, %v2930
    %v2932 = vcombine.high %v2924, %v2924
    %v2933 = vcombine.high %v2931, %v2931
    %v2934 = vcombine.high %v2650, %v2650
    %v2936 = vunpack.c.l.s4 1983009808
    %v2937 = vunpack.c.0.s8 %v2936
    %v2938 = vlaneseq
    %v2939 = vshrl.u32 %v2938, 7
    %v2940 = vsub.s32 %v2937, %v2939
    %v2941 = vrot.slane %v2650, %v2940
    %v2943 = vunpack.c.l.s4 1983009808
    %v2944 = vunpack.c.0.s8 %v2943
    %v2945 = vlaneseq
    %v2946 = vshrl.u32 %v2945, 7
    %v2947 = vsub.s32 %v2944, %v2946
    %v2948 = vrot.slane %v2934, %v2947
    %v2949 = vcombine.high %v2941, %v2941
    %v2950 = vcombine.high %v2948, %v2948
    %v2951 = vcombine.high %v2681, %v2681
    %v2953 = vunpack.c.l.s4 1983009808
    %v2954 = vunpack.c.0.s8 %v2953
    %v2955 = vlaneseq
    %v2956 = vshrl.u32 %v2955, 7
    %v2957 = vsub.s32 %v2954, %v2956
    %v2958 = vrot.slane %v2681, %v2957
    %v2960 = vunpack.c.l.s4 1983009808
    %v2961 = vunpack.c.0.s8 %v2960
    %v2962 = vlaneseq
    %v2963 = vshrl.u32 %v2962, 7
    %v2964 = vsub.s32 %v2961, %v2963
    %v2965 = vrot.slane %v2951, %v2964
    %v2966 = vcombine.high %v2958, %v2958
    %v2967 = vcombine.high %v2965, %v2965
    %v2968 = vcombine.high %v2682, %v2682
    %v2970 = vunpack.c.l.s4 1983009808
    %v2971 = vunpack.c.0.s8 %v2970
    %v2972 = vlaneseq
    %v2973 = vshrl.u32 %v2972, 7
    %v2974 = vsub.s32 %v2971, %v2973
    %v2975 = vrot.slane %v2682, %v2974
    %v2977 = vunpack.c.l.s4 1983009808
    %v2978 = vunpack.c.0.s8 %v2977
    %v2979 = vlaneseq
    %v2980 = vshrl.u32 %v2979, 7
    %v2981 = vsub.s32 %v2978, %v2980
    %v2982 = vrot.slane %v2968, %v2981
    %v2983 = vcombine.high %v2975, %v2975
    %v2984 = vcombine.high %v2982, %v2982
    %v2985 = vlaneseq
    %v2986 = vshrl.u32 %v2985, 7
    %v2987 = vsub.s32 0, %v2986
    %v2988 = vrot.slane %v2720, %v2987
    %v2989 = vlaneseq
    %v2990 = vshrl.u32 %v2989, 7
    %v2991 = vsub.s32 0, %v2990
    %v2992 = vrot.slane %v2728, %v2991
    %v2993 = vlaneseq
    %v2994 = vshrl.u32 %v2993, 7
    %v2995 = vsub.s32 0, %v2994
    %v2996 = vrot.slane %v2727, %v2995
    %v2997 = vlaneseq
    %v2998 = vshrl.u32 %v2997, 7
    %v2999 = vsub.s32 0, %v2998
    %v3000 = vrot.slane %v2729, %v2999
    %v3001 = vlaneseq
    %v3002 = vshrl.u32 %v3001, 7
    %v3003 = vsub.s32 0, %v3002
    %v3004 = vrot.slane %v2737, %v3003
    %v3005 = vlaneseq
    %v3006 = vshrl.u32 %v3005, 7
    %v3007 = vsub.s32 0, %v3006
    %v3008 = vrot.slane %v2745, %v3007
    %v3009 = vlaneseq
    %v3010 = vshrl.u32 %v3009, 7
    %v3011 = vsub.s32 0, %v3010
    %v3012 = vrot.slane %v2744, %v3011
    %v3013 = vlaneseq
    %v3014 = vshrl.u32 %v3013, 7
    %v3015 = vsub.s32 0, %v3014
    %v3016 = vrot.slane %v2746, %v3015
    %v3017 = vlaneseq
    %v3018 = vshrl.u32 %v3017, 7
    %v3019 = vsub.s32 0, %v3018
    %v3020 = vrot.slane %v2754, %v3019
    %v3021 = vlaneseq
    %v3022 = vshrl.u32 %v3021, 7
    %v3023 = vsub.s32 0, %v3022
    %v3024 = vrot.slane %v2762, %v3023
    %v3025 = vlaneseq
    %v3026 = vshrl.u32 %v3025, 7
    %v3027 = vsub.s32 0, %v3026
    %v3028 = vrot.slane %v2761, %v3027
    %v3029 = vlaneseq
    %v3030 = vshrl.u32 %v3029, 7
    %v3031 = vsub.s32 0, %v3030
    %v3032 = vrot.slane %v2763, %v3031
    %v3033 = vlaneseq
    %v3034 = vshrl.u32 %v3033, 7
    %v3035 = vsub.s32 0, %v3034
    %v3036 = vrot.slane %v2771, %v3035
    %v3037 = vlaneseq
    %v3038 = vshrl.u32 %v3037, 7
    %v3039 = vsub.s32 0, %v3038
    %v3040 = vrot.slane %v2779, %v3039
    %v3041 = vlaneseq
    %v3042 = vshrl.u32 %v3041, 7
    %v3043 = vsub.s32 0, %v3042
    %v3044 = vrot.slane %v2778, %v3043
    %v3045 = vlaneseq
    %v3046 = vshrl.u32 %v3045, 7
    %v3047 = vsub.s32 0, %v3046
    %v3048 = vrot.slane %v2780, %v3047
    %v3049 = vlaneseq
    %v3050 = vshrl.u32 %v3049, 7
    %v3051 = vsub.s32 0, %v3050
    %v3052 = vrot.slane %v2788, %v3051
    %v3053 = vlaneseq
    %v3054 = vshrl.u32 %v3053, 7
    %v3055 = vsub.s32 0, %v3054
    %v3056 = vrot.slane %v2796, %v3055
    %v3057 = vlaneseq
    %v3058 = vshrl.u32 %v3057, 7
    %v3059 = vsub.s32 0, %v3058
    %v3060 = vrot.slane %v2795, %v3059
    %v3061 = vlaneseq
    %v3062 = vshrl.u32 %v3061, 7
    %v3063 = vsub.s32 0, %v3062
    %v3064 = vrot.slane %v2797, %v3063
    %v3065 = vlaneseq
    %v3066 = vshrl.u32 %v3065, 7
    %v3067 = vsub.s32 0, %v3066
    %v3068 = vrot.slane %v2805, %v3067
    %v3069 = vlaneseq
    %v3070 = vshrl.u32 %v3069, 7
    %v3071 = vsub.s32 0, %v3070
    %v3072 = vrot.slane %v2813, %v3071
    %v3073 = vlaneseq
    %v3074 = vshrl.u32 %v3073, 7
    %v3075 = vsub.s32 0, %v3074
    %v3076 = vrot.slane %v2812, %v3075
    %v3077 = vlaneseq
    %v3078 = vshrl.u32 %v3077, 7
    %v3079 = vsub.s32 0, %v3078
    %v3080 = vrot.slane %v2814, %v3079
    %v3081 = vlaneseq
    %v3082 = vshrl.u32 %v3081, 7
    %v3083 = vsub.s32 0, %v3082
    %v3084 = vrot.slane %v2822, %v3083
    %v3085 = vlaneseq
    %v3086 = vshrl.u32 %v3085, 7
    %v3087 = vsub.s32 0, %v3086
    %v3088 = vrot.slane %v2830, %v3087
    %v3089 = vlaneseq
    %v3090 = vshrl.u32 %v3089, 7
    %v3091 = vsub.s32 0, %v3090
    %v3092 = vrot.slane %v2829, %v3091
    %v3093 = vlaneseq
    %v3094 = vshrl.u32 %v3093, 7
    %v3095 = vsub.s32 0, %v3094
    %v3096 = vrot.slane %v2831, %v3095
    %v3097 = vlaneseq
    %v3098 = vshrl.u32 %v3097, 7
    %v3099 = vsub.s32 0, %v3098
    %v3100 = vrot.slane %v2839, %v3099
    %v3101 = vlaneseq
    %v3102 = vshrl.u32 %v3101, 7
    %v3103 = vsub.s32 0, %v3102
    %v3104 = vrot.slane %v2847, %v3103
    %v3105 = vlaneseq
    %v3106 = vshrl.u32 %v3105, 7
    %v3107 = vsub.s32 0, %v3106
    %v3108 = vrot.slane %v2846, %v3107
    %v3109 = vlaneseq
    %v3110 = vshrl.u32 %v3109, 7
    %v3111 = vsub.s32 0, %v3110
    %v3112 = vrot.slane %v2848, %v3111
    %v3113 = vlaneseq
    %v3114 = vshrl.u32 %v3113, 7
    %v3115 = vsub.s32 0, %v3114
    %v3116 = vrot.slane %v2856, %v3115
    %v3117 = vlaneseq
    %v3118 = vshrl.u32 %v3117, 7
    %v3119 = vsub.s32 0, %v3118
    %v3120 = vrot.slane %v2864, %v3119
    %v3121 = vlaneseq
    %v3122 = vshrl.u32 %v3121, 7
    %v3123 = vsub.s32 0, %v3122
    %v3124 = vrot.slane %v2863, %v3123
    %v3125 = vlaneseq
    %v3126 = vshrl.u32 %v3125, 7
    %v3127 = vsub.s32 0, %v3126
    %v3128 = vrot.slane %v2865, %v3127
    %v3129 = vlaneseq
    %v3130 = vshrl.u32 %v3129, 7
    %v3131 = vsub.s32 0, %v3130
    %v3132 = vrot.slane %v2873, %v3131
    %v3133 = vlaneseq
    %v3134 = vshrl.u32 %v3133, 7
    %v3135 = vsub.s32 0, %v3134
    %v3136 = vrot.slane %v2881, %v3135
    %v3137 = vlaneseq
    %v3138 = vshrl.u32 %v3137, 7
    %v3139 = vsub.s32 0, %v3138
    %v3140 = vrot.slane %v2880, %v3139
    %v3141 = vlaneseq
    %v3142 = vshrl.u32 %v3141, 7
    %v3143 = vsub.s32 0, %v3142
    %v3144 = vrot.slane %v2882, %v3143
    %v3145 = vlaneseq
    %v3146 = vshrl.u32 %v3145, 7
    %v3147 = vsub.s32 0, %v3146
    %v3148 = vrot.slane %v2890, %v3147
    %v3149 = vlaneseq
    %v3150 = vshrl.u32 %v3149, 7
    %v3151 = vsub.s32 0, %v3150
    %v3152 = vrot.slane %v2898, %v3151
    %v3153 = vlaneseq
    %v3154 = vshrl.u32 %v3153, 7
    %v3155 = vsub.s32 0, %v3154
    %v3156 = vrot.slane %v2897, %v3155
    %v3157 = vlaneseq
    %v3158 = vshrl.u32 %v3157, 7
    %v3159 = vsub.s32 0, %v3158
    %v3160 = vrot.slane %v2899, %v3159
    %v3161 = vlaneseq
    %v3162 = vshrl.u32 %v3161, 7
    %v3163 = vsub.s32 0, %v3162
    %v3164 = vrot.slane %v2907, %v3163
    %v3165 = vlaneseq
    %v3166 = vshrl.u32 %v3165, 7
    %v3167 = vsub.s32 0, %v3166
    %v3168 = vrot.slane %v2915, %v3167
    %v3169 = vlaneseq
    %v3170 = vshrl.u32 %v3169, 7
    %v3171 = vsub.s32 0, %v3170
    %v3172 = vrot.slane %v2914, %v3171
    %v3173 = vlaneseq
    %v3174 = vshrl.u32 %v3173, 7
    %v3175 = vsub.s32 0, %v3174
    %v3176 = vrot.slane %v2916, %v3175
    %v3177 = vlaneseq
    %v3178 = vshrl.u32 %v3177, 7
    %v3179 = vsub.s32 0, %v3178
    %v3180 = vrot.slane %v2924, %v3179
    %v3181 = vlaneseq
    %v3182 = vshrl.u32 %v3181, 7
    %v3183 = vsub.s32 0, %v3182
    %v3184 = vrot.slane %v2932, %v3183
    %v3185 = vlaneseq
    %v3186 = vshrl.u32 %v3185, 7
    %v3187 = vsub.s32 0, %v3186
    %v3188 = vrot.slane %v2931, %v3187
    %v3189 = vlaneseq
    %v3190 = vshrl.u32 %v3189, 7
    %v3191 = vsub.s32 0, %v3190
    %v3192 = vrot.slane %v2933, %v3191
    %v3193 = vlaneseq
    %v3194 = vshrl.u32 %v3193, 7
    %v3195 = vsub.s32 0, %v3194
    %v3196 = vrot.slane %v2941, %v3195
    %v3197 = vlaneseq
    %v3198 = vshrl.u32 %v3197, 7
    %v3199 = vsub.s32 0, %v3198
    %v3200 = vrot.slane %v2949, %v3199
    %v3201 = vlaneseq
    %v3202 = vshrl.u32 %v3201, 7
    %v3203 = vsub.s32 0, %v3202
    %v3204 = vrot.slane %v2948, %v3203
    %v3205 = vlaneseq
    %v3206 = vshrl.u32 %v3205, 7
    %v3207 = vsub.s32 0, %v3206
    %v3208 = vrot.slane %v2950, %v3207
    %v3209 = vlaneseq
    %v3210 = vshrl.u32 %v3209, 7
    %v3211 = vsub.s32 0, %v3210
    %v3212 = vrot.slane %v2958, %v3211
    %v3213 = vlaneseq
    %v3214 = vshrl.u32 %v3213, 7
    %v3215 = vsub.s32 0, %v3214
    %v3216 = vrot.slane %v2966, %v3215
    %v3217 = vlaneseq
    %v3218 = vshrl.u32 %v3217, 7
    %v3219 = vsub.s32 0, %v3218
    %v3220 = vrot.slane %v2965, %v3219
    %v3221 = vlaneseq
    %v3222 = vshrl.u32 %v3221, 7
    %v3223 = vsub.s32 0, %v3222
    %v3224 = vrot.slane %v2967, %v3223
    %v3225 = vlaneseq
    %v3226 = vshrl.u32 %v3225, 7
    %v3227 = vsub.s32 0, %v3226
    %v3228 = vrot.slane %v2975, %v3227
    %v3229 = vlaneseq
    %v3230 = vshrl.u32 %v3229, 7
    %v3231 = vsub.s32 0, %v3230
    %v3232 = vrot.slane %v2983, %v3231
    %v3233 = vlaneseq
    %v3234 = vshrl.u32 %v3233, 7
    %v3235 = vsub.s32 0, %v3234
    %v3236 = vrot.slane %v2982, %v3235
    %v3237 = vlaneseq
    %v3238 = vshrl.u32 %v3237, 7
    %v3239 = vsub.s32 0, %v3238
    %v3240 = vrot.slane %v2984, %v3239
    %v3241 = vsel %vm838, %v2992, %v2988
    %v3242 = vsel %vm840, %v2996, %v3241
    %v3243 = vsel %vm842, %v3000, %v3242
    %v3244 = vsel %vm844, %v3004, %v3243
    %v3245 = vsel %vm846, %v3008, %v3244
    %v3246 = vsel %vm848, %v3012, %v3245
    %v3247 = vsel %vm850, %v3016, %v3246
    %v3248 = vsel %vm838, %v3024, %v3020
    %v3249 = vsel %vm840, %v3028, %v3248
    %v3250 = vsel %vm842, %v3032, %v3249
    %v3251 = vsel %vm844, %v3036, %v3250
    %v3252 = vsel %vm846, %v3040, %v3251
    %v3253 = vsel %vm848, %v3044, %v3252
    %v3254 = vsel %vm850, %v3048, %v3253
    %v3255 = vsel %vm838, %v3056, %v3052
    %v3256 = vsel %vm840, %v3060, %v3255
    %v3257 = vsel %vm842, %v3064, %v3256
    %v3258 = vsel %vm844, %v3068, %v3257
    %v3259 = vsel %vm846, %v3072, %v3258
    %v3260 = vsel %vm848, %v3076, %v3259
    %v3261 = vsel %vm850, %v3080, %v3260
    %v3262 = vsel %vm838, %v3088, %v3084
    %v3263 = vsel %vm840, %v3092, %v3262
    %v3264 = vsel %vm842, %v3096, %v3263
    %v3265 = vsel %vm844, %v3100, %v3264
    %v3266 = vsel %vm846, %v3104, %v3265
    %v3267 = vsel %vm848, %v3108, %v3266
    %v3268 = vsel %vm850, %v3112, %v3267
    %v3269 = vsel %vm838, %v3120, %v3116
    %v3270 = vsel %vm840, %v3124, %v3269
    %v3271 = vsel %vm842, %v3128, %v3270
    %v3272 = vsel %vm844, %v3132, %v3271
    %v3273 = vsel %vm846, %v3136, %v3272
    %v3274 = vsel %vm848, %v3140, %v3273
    %v3275 = vsel %vm850, %v3144, %v3274
    %v3276 = vsel %vm838, %v3152, %v3148
    %v3277 = vsel %vm840, %v3156, %v3276
    %v3278 = vsel %vm842, %v3160, %v3277
    %v3279 = vsel %vm844, %v3164, %v3278
    %v3280 = vsel %vm846, %v3168, %v3279
    %v3281 = vsel %vm848, %v3172, %v3280
    %v3282 = vsel %vm850, %v3176, %v3281
    %v3283 = vsel %vm838, %v3184, %v3180
    %v3284 = vsel %vm840, %v3188, %v3283
    %v3285 = vsel %vm842, %v3192, %v3284
    %v3286 = vsel %vm844, %v3196, %v3285
    %v3287 = vsel %vm846, %v3200, %v3286
    %v3288 = vsel %vm848, %v3204, %v3287
    %v3289 = vsel %vm850, %v3208, %v3288
    %v3290 = vsel %vm838, %v3216, %v3212
    %v3291 = vsel %vm840, %v3220, %v3290
    %v3292 = vsel %vm842, %v3224, %v3291
    %v3293 = vsel %vm844, %v3228, %v3292
    %v3294 = vsel %vm846, %v3232, %v3293
    %v3295 = vsel %vm848, %v3236, %v3294
    %v3296 = vsel %vm850, %v3240, %v3295
    %s3305 = scalar_lea.vmem %s1, 8
    %3306 = vst.msk [vmem:[%s3305] sm:$0xff] %vm1773, %v3247
    %3307 = vst.msk [vmem:[%s3305 + $0x20] sm:$0xff] %vm1773, %v3254
    %3308 = vst.msk [vmem:[%s3305 + $0x40] sm:$0xff] %vm1773, %v3261
    %3309 = vst.msk [vmem:[%s3305 + $0x60] sm:$0xff] %vm1773, %v3268
    %3310 = vst.msk [vmem:[%s3305 + $0x80] sm:$0xff] %vm1773, %v3275
    %3311 = vst.msk [vmem:[%s3305 + $0xa0] sm:$0xff] %vm1773, %v3282
    %3312 = vst.msk [vmem:[%s3305 + $0xc0] sm:$0xff] %vm1773, %v3289
    %3313 = vst.msk [vmem:[%s3305 + $0xe0] sm:$0xff] %vm1773, %v3296
    %v3314 = vlaneseq
    %v3315 = vshrl.u32 %v3314, 7
    %v3316 = vsub.s32 1, %v3315
    %v3317 = vrot.slane %v2720, %v3316
    %v3318 = vlaneseq
    %v3319 = vshrl.u32 %v3318, 7
    %v3320 = vsub.s32 1, %v3319
    %v3321 = vrot.slane %v2728, %v3320
    %v3322 = vlaneseq
    %v3323 = vshrl.u32 %v3322, 7
    %v3324 = vsub.s32 1, %v3323
    %v3325 = vrot.slane %v2727, %v3324
    %v3326 = vlaneseq
    %v3327 = vshrl.u32 %v3326, 7
    %v3328 = vsub.s32 1, %v3327
    %v3329 = vrot.slane %v2729, %v3328
    %v3330 = vlaneseq
    %v3331 = vshrl.u32 %v3330, 7
    %v3332 = vsub.s32 1, %v3331
    %v3333 = vrot.slane %v2737, %v3332
    %v3334 = vlaneseq
    %v3335 = vshrl.u32 %v3334, 7
    %v3336 = vsub.s32 1, %v3335
    %v3337 = vrot.slane %v2745, %v3336
    %v3338 = vlaneseq
    %v3339 = vshrl.u32 %v3338, 7
    %v3340 = vsub.s32 1, %v3339
    %v3341 = vrot.slane %v2744, %v3340
    %v3342 = vlaneseq
    %v3343 = vshrl.u32 %v3342, 7
    %v3344 = vsub.s32 1, %v3343
    %v3345 = vrot.slane %v2746, %v3344
    %v3346 = vlaneseq
    %v3347 = vshrl.u32 %v3346, 7
    %v3348 = vsub.s32 1, %v3347
    %v3349 = vrot.slane %v2754, %v3348
    %v3350 = vlaneseq
    %v3351 = vshrl.u32 %v3350, 7
    %v3352 = vsub.s32 1, %v3351
    %v3353 = vrot.slane %v2762, %v3352
    %v3354 = vlaneseq
    %v3355 = vshrl.u32 %v3354, 7
    %v3356 = vsub.s32 1, %v3355
    %v3357 = vrot.slane %v2761, %v3356
    %v3358 = vlaneseq
    %v3359 = vshrl.u32 %v3358, 7
    %v3360 = vsub.s32 1, %v3359
    %v3361 = vrot.slane %v2763, %v3360
    %v3362 = vlaneseq
    %v3363 = vshrl.u32 %v3362, 7
    %v3364 = vsub.s32 1, %v3363
    %v3365 = vrot.slane %v2771, %v3364
    %v3366 = vlaneseq
    %v3367 = vshrl.u32 %v3366, 7
    %v3368 = vsub.s32 1, %v3367
    %v3369 = vrot.slane %v2779, %v3368
    %v3370 = vlaneseq
    %v3371 = vshrl.u32 %v3370, 7
    %v3372 = vsub.s32 1, %v3371
    %v3373 = vrot.slane %v2778, %v3372
    %v3374 = vlaneseq
    %v3375 = vshrl.u32 %v3374, 7
    %v3376 = vsub.s32 1, %v3375
    %v3377 = vrot.slane %v2780, %v3376
    %v3378 = vlaneseq
    %v3379 = vshrl.u32 %v3378, 7
    %v3380 = vsub.s32 1, %v3379
    %v3381 = vrot.slane %v2788, %v3380
    %v3382 = vlaneseq
    %v3383 = vshrl.u32 %v3382, 7
    %v3384 = vsub.s32 1, %v3383
    %v3385 = vrot.slane %v2796, %v3384
    %v3386 = vlaneseq
    %v3387 = vshrl.u32 %v3386, 7
    %v3388 = vsub.s32 1, %v3387
    %v3389 = vrot.slane %v2795, %v3388
    %v3390 = vlaneseq
    %v3391 = vshrl.u32 %v3390, 7
    %v3392 = vsub.s32 1, %v3391
    %v3393 = vrot.slane %v2797, %v3392
    %v3394 = vlaneseq
    %v3395 = vshrl.u32 %v3394, 7
    %v3396 = vsub.s32 1, %v3395
    %v3397 = vrot.slane %v2805, %v3396
    %v3398 = vlaneseq
    %v3399 = vshrl.u32 %v3398, 7
    %v3400 = vsub.s32 1, %v3399
    %v3401 = vrot.slane %v2813, %v3400
    %v3402 = vlaneseq
    %v3403 = vshrl.u32 %v3402, 7
    %v3404 = vsub.s32 1, %v3403
    %v3405 = vrot.slane %v2812, %v3404
    %v3406 = vlaneseq
    %v3407 = vshrl.u32 %v3406, 7
    %v3408 = vsub.s32 1, %v3407
    %v3409 = vrot.slane %v2814, %v3408
    %v3410 = vlaneseq
    %v3411 = vshrl.u32 %v3410, 7
    %v3412 = vsub.s32 1, %v3411
    %v3413 = vrot.slane %v2822, %v3412
    %v3414 = vlaneseq
    %v3415 = vshrl.u32 %v3414, 7
    %v3416 = vsub.s32 1, %v3415
    %v3417 = vrot.slane %v2830, %v3416
    %v3418 = vlaneseq
    %v3419 = vshrl.u32 %v3418, 7
    %v3420 = vsub.s32 1, %v3419
    %v3421 = vrot.slane %v2829, %v3420
    %v3422 = vlaneseq
    %v3423 = vshrl.u32 %v3422, 7
    %v3424 = vsub.s32 1, %v3423
    %v3425 = vrot.slane %v2831, %v3424
    %v3426 = vlaneseq
    %v3427 = vshrl.u32 %v3426, 7
    %v3428 = vsub.s32 1, %v3427
    %v3429 = vrot.slane %v2839, %v3428
    %v3430 = vlaneseq
    %v3431 = vshrl.u32 %v3430, 7
    %v3432 = vsub.s32 1, %v3431
    %v3433 = vrot.slane %v2847, %v3432
    %v3434 = vlaneseq
    %v3435 = vshrl.u32 %v3434, 7
    %v3436 = vsub.s32 1, %v3435
    %v3437 = vrot.slane %v2846, %v3436
    %v3438 = vlaneseq
    %v3439 = vshrl.u32 %v3438, 7
    %v3440 = vsub.s32 1, %v3439
    %v3441 = vrot.slane %v2848, %v3440
    %v3442 = vlaneseq
    %v3443 = vshrl.u32 %v3442, 7
    %v3444 = vsub.s32 1, %v3443
    %v3445 = vrot.slane %v2856, %v3444
    %v3446 = vlaneseq
    %v3447 = vshrl.u32 %v3446, 7
    %v3448 = vsub.s32 1, %v3447
    %v3449 = vrot.slane %v2864, %v3448
    %v3450 = vlaneseq
    %v3451 = vshrl.u32 %v3450, 7
    %v3452 = vsub.s32 1, %v3451
    %v3453 = vrot.slane %v2863, %v3452
    %v3454 = vlaneseq
    %v3455 = vshrl.u32 %v3454, 7
    %v3456 = vsub.s32 1, %v3455
    %v3457 = vrot.slane %v2865, %v3456
    %v3458 = vlaneseq
    %v3459 = vshrl.u32 %v3458, 7
    %v3460 = vsub.s32 1, %v3459
    %v3461 = vrot.slane %v2873, %v3460
    %v3462 = vlaneseq
    %v3463 = vshrl.u32 %v3462, 7
    %v3464 = vsub.s32 1, %v3463
    %v3465 = vrot.slane %v2881, %v3464
    %v3466 = vlaneseq
    %v3467 = vshrl.u32 %v3466, 7
    %v3468 = vsub.s32 1, %v3467
    %v3469 = vrot.slane %v2880, %v3468
    %v3470 = vlaneseq
    %v3471 = vshrl.u32 %v3470, 7
    %v3472 = vsub.s32 1, %v3471
    %v3473 = vrot.slane %v2882, %v3472
    %v3474 = vlaneseq
    %v3475 = vshrl.u32 %v3474, 7
    %v3476 = vsub.s32 1, %v3475
    %v3477 = vrot.slane %v2890, %v3476
    %v3478 = vlaneseq
    %v3479 = vshrl.u32 %v3478, 7
    %v3480 = vsub.s32 1, %v3479
    %v3481 = vrot.slane %v2898, %v3480
    %v3482 = vlaneseq
    %v3483 = vshrl.u32 %v3482, 7
    %v3484 = vsub.s32 1, %v3483
    %v3485 = vrot.slane %v2897, %v3484
    %v3486 = vlaneseq
    %v3487 = vshrl.u32 %v3486, 7
    %v3488 = vsub.s32 1, %v3487
    %v3489 = vrot.slane %v2899, %v3488
    %v3490 = vlaneseq
    %v3491 = vshrl.u32 %v3490, 7
    %v3492 = vsub.s32 1, %v3491
    %v3493 = vrot.slane %v2907, %v3492
    %v3494 = vlaneseq
    %v3495 = vshrl.u32 %v3494, 7
    %v3496 = vsub.s32 1, %v3495
    %v3497 = vrot.slane %v2915, %v3496
    %v3498 = vlaneseq
    %v3499 = vshrl.u32 %v3498, 7
    %v3500 = vsub.s32 1, %v3499
    %v3501 = vrot.slane %v2914, %v3500
    %v3502 = vlaneseq
    %v3503 = vshrl.u32 %v3502, 7
    %v3504 = vsub.s32 1, %v3503
    %v3505 = vrot.slane %v2916, %v3504
    %v3506 = vlaneseq
    %v3507 = vshrl.u32 %v3506, 7
    %v3508 = vsub.s32 1, %v3507
    %v3509 = vrot.slane %v2924, %v3508
    %v3510 = vlaneseq
    %v3511 = vshrl.u32 %v3510, 7
    %v3512 = vsub.s32 1, %v3511
    %v3513 = vrot.slane %v2932, %v3512
    %v3514 = vlaneseq
    %v3515 = vshrl.u32 %v3514, 7
    %v3516 = vsub.s32 1, %v3515
    %v3517 = vrot.slane %v2931, %v3516
    %v3518 = vlaneseq
    %v3519 = vshrl.u32 %v3518, 7
    %v3520 = vsub.s32 1, %v3519
    %v3521 = vrot.slane %v2933, %v3520
    %v3522 = vlaneseq
    %v3523 = vshrl.u32 %v3522, 7
    %v3524 = vsub.s32 1, %v3523
    %v3525 = vrot.slane %v2941, %v3524
    %v3526 = vlaneseq
    %v3527 = vshrl.u32 %v3526, 7
    %v3528 = vsub.s32 1, %v3527
    %v3529 = vrot.slane %v2949, %v3528
    %v3530 = vlaneseq
    %v3531 = vshrl.u32 %v3530, 7
    %v3532 = vsub.s32 1, %v3531
    %v3533 = vrot.slane %v2948, %v3532
    %v3534 = vlaneseq
    %v3535 = vshrl.u32 %v3534, 7
    %v3536 = vsub.s32 1, %v3535
    %v3537 = vrot.slane %v2950, %v3536
    %v3538 = vlaneseq
    %v3539 = vshrl.u32 %v3538, 7
    %v3540 = vsub.s32 1, %v3539
    %v3541 = vrot.slane %v2958, %v3540
    %v3542 = vlaneseq
    %v3543 = vshrl.u32 %v3542, 7
    %v3544 = vsub.s32 1, %v3543
    %v3545 = vrot.slane %v2966, %v3544
    %v3546 = vlaneseq
    %v3547 = vshrl.u32 %v3546, 7
    %v3548 = vsub.s32 1, %v3547
    %v3549 = vrot.slane %v2965, %v3548
    %v3550 = vlaneseq
    %v3551 = vshrl.u32 %v3550, 7
    %v3552 = vsub.s32 1, %v3551
    %v3553 = vrot.slane %v2967, %v3552
    %v3554 = vlaneseq
    %v3555 = vshrl.u32 %v3554, 7
    %v3556 = vsub.s32 1, %v3555
    %v3557 = vrot.slane %v2975, %v3556
    %v3558 = vlaneseq
    %v3559 = vshrl.u32 %v3558, 7
    %v3560 = vsub.s32 1, %v3559
    %v3561 = vrot.slane %v2983, %v3560
    %v3562 = vlaneseq
    %v3563 = vshrl.u32 %v3562, 7
    %v3564 = vsub.s32 1, %v3563
    %v3565 = vrot.slane %v2982, %v3564
    %v3566 = vlaneseq
    %v3567 = vshrl.u32 %v3566, 7
    %v3568 = vsub.s32 1, %v3567
    %v3569 = vrot.slane %v2984, %v3568
    %v3570 = vsel %vm840, %v3321, %v3317
    %v3571 = vsel %vm842, %v3325, %v3570
    %v3572 = vsel %vm844, %v3329, %v3571
    %v3573 = vsel %vm846, %v3333, %v3572
    %v3574 = vsel %vm848, %v3337, %v3573
    %v3575 = vsel %vm850, %v3341, %v3574
    %v3576 = vsel %vm840, %v3353, %v3349
    %v3577 = vsel %vm842, %v3357, %v3576
    %v3578 = vsel %vm844, %v3361, %v3577
    %v3579 = vsel %vm846, %v3365, %v3578
    %v3580 = vsel %vm848, %v3369, %v3579
    %v3581 = vsel %vm850, %v3373, %v3580
    %v3582 = vsel %vm840, %v3385, %v3381
    %v3583 = vsel %vm842, %v3389, %v3582
    %v3584 = vsel %vm844, %v3393, %v3583
    %v3585 = vsel %vm846, %v3397, %v3584
    %v3586 = vsel %vm848, %v3401, %v3585
    %v3587 = vsel %vm850, %v3405, %v3586
    %v3588 = vsel %vm840, %v3417, %v3413
    %v3589 = vsel %vm842, %v3421, %v3588
    %v3590 = vsel %vm844, %v3425, %v3589
    %v3591 = vsel %vm846, %v3429, %v3590
    %v3592 = vsel %vm848, %v3433, %v3591
    %v3593 = vsel %vm850, %v3437, %v3592
    %v3594 = vsel %vm840, %v3449, %v3445
    %v3595 = vsel %vm842, %v3453, %v3594
    %v3596 = vsel %vm844, %v3457, %v3595
    %v3597 = vsel %vm846, %v3461, %v3596
    %v3598 = vsel %vm848, %v3465, %v3597
    %v3599 = vsel %vm850, %v3469, %v3598
    %v3600 = vsel %vm840, %v3481, %v3477
    %v3601 = vsel %vm842, %v3485, %v3600
    %v3602 = vsel %vm844, %v3489, %v3601
    %v3603 = vsel %vm846, %v3493, %v3602
    %v3604 = vsel %vm848, %v3497, %v3603
    %v3605 = vsel %vm850, %v3501, %v3604
    %v3606 = vsel %vm840, %v3513, %v3509
    %v3607 = vsel %vm842, %v3517, %v3606
    %v3608 = vsel %vm844, %v3521, %v3607
    %v3609 = vsel %vm846, %v3525, %v3608
    %v3610 = vsel %vm848, %v3529, %v3609
    %v3611 = vsel %vm850, %v3533, %v3610
    %v3612 = vsel %vm840, %v3545, %v3541
    %v3613 = vsel %vm842, %v3549, %v3612
    %v3614 = vsel %vm844, %v3553, %v3613
    %v3615 = vsel %vm846, %v3557, %v3614
    %v3616 = vsel %vm848, %v3561, %v3615
    %v3617 = vsel %vm850, %v3565, %v3616
    %s3634 = scalar_lea.vmem %s1, 24
    %3635 = vst.msk [vmem:[%s3634 - $0x1] sm:$0xfe] %vm2103, %v3575
    %3636 = vst.msk [vmem:[%s3634 + $0x7] sm:$0x1] %vm2105, %v3345
    %3637 = vst.msk [vmem:[%s3634 + $0x1f] sm:$0xfe] %vm2103, %v3581
    %3638 = vst.msk [vmem:[%s3634 + $0x27] sm:$0x1] %vm2105, %v3377
    %3639 = vst.msk [vmem:[%s3634 + $0x3f] sm:$0xfe] %vm2103, %v3587
    %3640 = vst.msk [vmem:[%s3634 + $0x47] sm:$0x1] %vm2105, %v3409
    %3641 = vst.msk [vmem:[%s3634 + $0x5f] sm:$0xfe] %vm2103, %v3593
    %3642 = vst.msk [vmem:[%s3634 + $0x67] sm:$0x1] %vm2105, %v3441
    %3643 = vst.msk [vmem:[%s3634 + $0x7f] sm:$0xfe] %vm2103, %v3599
    %3644 = vst.msk [vmem:[%s3634 + $0x87] sm:$0x1] %vm2105, %v3473
    %3645 = vst.msk [vmem:[%s3634 + $0x9f] sm:$0xfe] %vm2103, %v3605
    %3646 = vst.msk [vmem:[%s3634 + $0xa7] sm:$0x1] %vm2105, %v3505
    %3647 = vst.msk [vmem:[%s3634 + $0xbf] sm:$0xfe] %vm2103, %v3611
    %3648 = vst.msk [vmem:[%s3634 + $0xc7] sm:$0x1] %vm2105, %v3537
    %3649 = vst.msk [vmem:[%s3634 + $0xdf] sm:$0xfe] %vm2103, %v3617
    %3650 = vst.msk [vmem:[%s3634 + $0xe7] sm:$0x1] %vm2105, %v3569
    // Predicated region
    $region10: #{_pixel_unshuffle_fast.1} parent=1 // pred_check
      _
    $region11: #{_pixel_unshuffle_fast.1} parent=1 // pred_check_branch
      %3652 = sbr.rel (0) target = $region13
    $region12: #{_pixel_unshuffle_fast.1} parent=1 // pred_region
      _
    $region13: #{_pixel_unshuffle_fast.1} parent=1 // pred_fallthru
      _
    // Predicated region
    $region14: #{_pixel_unshuffle_fast.1} parent=1 // pred_check
      _
    $region15: #{_pixel_unshuffle_fast.1} parent=1 // pred_check_branch
      %3654 = sbr.rel (0) target = $region17
    $region16: #{_pixel_unshuffle_fast.1} parent=1 // pred_region
      _
    $region17: #{_pixel_unshuffle_fast.1} parent=1 // pred_fallthru
      _
    %3655 = vsyncpa [#allocation3], 1

// kernel: _pixel_unshuffle_safe.1
$region0: #{_pixel_unshuffle_safe.1}
  #allocation0 [shape = 'u32[]', space=smem, size = 0x4, offset = 0x4, fixed_abs, tag = 'smem constant byte address 0x4 - core index']
  #allocation1 [shape = 'u32[144,128]{1,0:T(1,128)}', space=vmem, size = 0x12000, scoped, tag = 'internal scratch']
  %s0 = inlined_call_operand.vmem [shape: f32[8,8,2,8,2], index: 0, kind: input, shape index: {}]
  %s1 = inlined_call_operand.vmem [shape: f32[8,4,8,8], index: 1, kind: output, shape index: {}]
  %s2 = sld [smem:[#allocation0]]
  $region14: #{_pixel_unshuffle_safe.1} parent=0
    _
  %s4 = ssub.s32 1, %s2
  %s5 = scalar_select 0, %s4, %s2
  // Predicated region
  $region2: #{_pixel_unshuffle_safe.1} parent=0 // pred_check
    _
  $region3: #{_pixel_unshuffle_safe.1} parent=0 // pred_check_branch
    %7 = sbr.rel (0) target = $region5
  $region4: #{_pixel_unshuffle_safe.1} parent=0 // pred_region
    _
  $region5: #{_pixel_unshuffle_safe.1} parent=0 // pred_fallthru
    _
  %v8 = vld [vmem:[%s0] sm:$0xff]
  %v9 = vld [vmem:[%s0 + $0x10] sm:$0xff]
  %v10 = vld [vmem:[%s0 + $0x20] sm:$0xff]
  %v11 = vld [vmem:[%s0 + $0x30] sm:$0xff]
  %v12 = vld [vmem:[%s0 + $0x40] sm:$0xff]
  %v13 = vld [vmem:[%s0 + $0x50] sm:$0xff]
  %v14 = vld [vmem:[%s0 + $0x60] sm:$0xff]
  %v15 = vld [vmem:[%s0 + $0x70] sm:$0xff]
  %v16 = vld [vmem:[%s0 + $0x80] sm:$0xff]
  %v17 = vld [vmem:[%s0 + $0x90] sm:$0xff]
  %v18 = vld [vmem:[%s0 + $0xa0] sm:$0xff]
  %v19 = vld [vmem:[%s0 + $0xb0] sm:$0xff]
  %v20 = vld [vmem:[%s0 + $0xc0] sm:$0xff]
  %v21 = vld [vmem:[%s0 + $0xd0] sm:$0xff]
  %v22 = vld [vmem:[%s0 + $0xe0] sm:$0xff]
  %v23 = vld [vmem:[%s0 + $0xf0] sm:$0xff]
  %v24 = vld [vmem:[%s0 + $0x100] sm:$0xff]
  %v25 = vld [vmem:[%s0 + $0x110] sm:$0xff]
  %v26 = vld [vmem:[%s0 + $0x120] sm:$0xff]
  %v27 = vld [vmem:[%s0 + $0x130] sm:$0xff]
  %v28 = vld [vmem:[%s0 + $0x140] sm:$0xff]
  %v29 = vld [vmem:[%s0 + $0x150] sm:$0xff]
  %v30 = vld [vmem:[%s0 + $0x160] sm:$0xff]
  %v31 = vld [vmem:[%s0 + $0x170] sm:$0xff]
  %v32 = vld [vmem:[%s0 + $0x180] sm:$0xff]
  %v33 = vld [vmem:[%s0 + $0x190] sm:$0xff]
  %v34 = vld [vmem:[%s0 + $0x1a0] sm:$0xff]
  %v35 = vld [vmem:[%s0 + $0x1b0] sm:$0xff]
  %v36 = vld [vmem:[%s0 + $0x1c0] sm:$0xff]
  %v37 = vld [vmem:[%s0 + $0x1d0] sm:$0xff]
  %v38 = vld [vmem:[%s0 + $0x1e0] sm:$0xff]
  %v39 = vld [vmem:[%s0 + $0x1f0] sm:$0xff]
  %v40 = vld [vmem:[%s0 + $0x200] sm:$0xff]
  %v41 = vld [vmem:[%s0 + $0x210] sm:$0xff]
  %v42 = vld [vmem:[%s0 + $0x220] sm:$0xff]
  %v43 = vld [vmem:[%s0 + $0x230] sm:$0xff]
  %v44 = vld [vmem:[%s0 + $0x240] sm:$0xff]
  %v45 = vld [vmem:[%s0 + $0x250] sm:$0xff]
  %v46 = vld [vmem:[%s0 + $0x260] sm:$0xff]
  %v47 = vld [vmem:[%s0 + $0x270] sm:$0xff]
  %v48 = vld [vmem:[%s0 + $0x280] sm:$0xff]
  %v49 = vld [vmem:[%s0 + $0x290] sm:$0xff]
  %v50 = vld [vmem:[%s0 + $0x2a0] sm:$0xff]
  %v51 = vld [vmem:[%s0 + $0x2b0] sm:$0xff]
  %v52 = vld [vmem:[%s0 + $0x2c0] sm:$0xff]
  %v53 = vld [vmem:[%s0 + $0x2d0] sm:$0xff]
  %v54 = vld [vmem:[%s0 + $0x2e0] sm:$0xff]
  %v55 = vld [vmem:[%s0 + $0x2f0] sm:$0xff]
  %v56 = vld [vmem:[%s0 + $0x300] sm:$0xff]
  %v57 = vld [vmem:[%s0 + $0x310] sm:$0xff]
  %v58 = vld [vmem:[%s0 + $0x320] sm:$0xff]
  %v59 = vld [vmem:[%s0 + $0x330] sm:$0xff]
  %v60 = vld [vmem:[%s0 + $0x340] sm:$0xff]
  %v61 = vld [vmem:[%s0 + $0x350] sm:$0xff]
  %v62 = vld [vmem:[%s0 + $0x360] sm:$0xff]
  %v63 = vld [vmem:[%s0 + $0x370] sm:$0xff]
  %v64 = vld [vmem:[%s0 + $0x380] sm:$0xff]
  %v65 = vld [vmem:[%s0 + $0x390] sm:$0xff]
  %v66 = vld [vmem:[%s0 + $0x3a0] sm:$0xff]
  %v67 = vld [vmem:[%s0 + $0x3b0] sm:$0xff]
  %v68 = vld [vmem:[%s0 + $0x3c0] sm:$0xff]
  %v69 = vld [vmem:[%s0 + $0x3d0] sm:$0xff]
  %v70 = vld [vmem:[%s0 + $0x3e0] sm:$0xff]
  %v71 = vld [vmem:[%s0 + $0x3f0] sm:$0xff]
  %136 = vset.pattern.permute.xlu0 0
  %137 = vperm.xlu0 %136, %v8
  %v138 = vpop.permute.xlu0 %137
  %139 = vset.pattern.permute.xlu0 0
  %140 = vperm.xlu0 %139, %v9
  %v141 = vpop.permute.xlu0 %140
  %142 = vset.pattern.permute.xlu0 0
  %143 = vperm.xlu0 %142, %v10
  %v144 = vpop.permute.xlu0 %143
  %145 = vset.pattern.permute.xlu0 0
  %146 = vperm.xlu0 %145, %v11
  %v147 = vpop.permute.xlu0 %146
  %148 = vset.pattern.permute.xlu0 0
  %149 = vperm.xlu0 %148, %v12
  %v150 = vpop.permute.xlu0 %149
  %151 = vset.pattern.permute.xlu0 0
  %152 = vperm.xlu0 %151, %v13
  %v153 = vpop.permute.xlu0 %152
  %154 = vset.pattern.permute.xlu0 0
  %155 = vperm.xlu0 %154, %v14
  %v156 = vpop.permute.xlu0 %155
  %157 = vset.pattern.permute.xlu0 0
  %158 = vperm.xlu0 %157, %v15
  %v159 = vpop.permute.xlu0 %158
  %160 = vset.pattern.permute.xlu0 0
  %161 = vperm.xlu0 %160, %v16
  %v162 = vpop.permute.xlu0 %161
  %163 = vset.pattern.permute.xlu0 0
  %164 = vperm.xlu0 %163, %v17
  %v165 = vpop.permute.xlu0 %164
  %166 = vset.pattern.permute.xlu0 0
  %167 = vperm.xlu0 %166, %v18
  %v168 = vpop.permute.xlu0 %167
  %169 = vset.pattern.permute.xlu0 0
  %170 = vperm.xlu0 %169, %v19
  %v171 = vpop.permute.xlu0 %170
  %172 = vset.pattern.permute.xlu0 0
  %173 = vperm.xlu0 %172, %v20
  %v174 = vpop.permute.xlu0 %173
  %175 = vset.pattern.permute.xlu0 0
  %176 = vperm.xlu0 %175, %v21
  %v177 = vpop.permute.xlu0 %176
  %178 = vset.pattern.permute.xlu0 0
  %179 = vperm.xlu0 %178, %v22
  %v180 = vpop.permute.xlu0 %179
  %181 = vset.pattern.permute.xlu0 0
  %182 = vperm.xlu0 %181, %v23
  %v183 = vpop.permute.xlu0 %182
  %184 = vset.pattern.permute.xlu0 0
  %185 = vperm.xlu0 %184, %v24
  %v186 = vpop.permute.xlu0 %185
  %187 = vset.pattern.permute.xlu0 0
  %188 = vperm.xlu0 %187, %v25
  %v189 = vpop.permute.xlu0 %188
  %190 = vset.pattern.permute.xlu0 0
  %191 = vperm.xlu0 %190, %v26
  %v192 = vpop.permute.xlu0 %191
  %193 = vset.pattern.permute.xlu0 0
  %194 = vperm.xlu0 %193, %v27
  %v195 = vpop.permute.xlu0 %194
  %196 = vset.pattern.permute.xlu0 0
  %197 = vperm.xlu0 %196, %v28
  %v198 = vpop.permute.xlu0 %197
  %199 = vset.pattern.permute.xlu0 0
  %200 = vperm.xlu0 %199, %v29
  %v201 = vpop.permute.xlu0 %200
  %202 = vset.pattern.permute.xlu0 0
  %203 = vperm.xlu0 %202, %v30
  %v204 = vpop.permute.xlu0 %203
  %205 = vset.pattern.permute.xlu0 0
  %206 = vperm.xlu0 %205, %v31
  %v207 = vpop.permute.xlu0 %206
  %208 = vset.pattern.permute.xlu0 0
  %209 = vperm.xlu0 %208, %v32
  %v210 = vpop.permute.xlu0 %209
  %211 = vset.pattern.permute.xlu0 0
  %212 = vperm.xlu0 %211, %v33
  %v213 = vpop.permute.xlu0 %212
  %214 = vset.pattern.permute.xlu0 0
  %215 = vperm.xlu0 %214, %v34
  %v216 = vpop.permute.xlu0 %215
  %217 = vset.pattern.permute.xlu0 0
  %218 = vperm.xlu0 %217, %v35
  %v219 = vpop.permute.xlu0 %218
  %220 = vset.pattern.permute.xlu0 0
  %221 = vperm.xlu0 %220, %v36
  %v222 = vpop.permute.xlu0 %221
  %223 = vset.pattern.permute.xlu0 0
  %224 = vperm.xlu0 %223, %v37
  %v225 = vpop.permute.xlu0 %224
  %226 = vset.pattern.permute.xlu0 0
  %227 = vperm.xlu0 %226, %v38
  %v228 = vpop.permute.xlu0 %227
  %229 = vset.pattern.permute.xlu0 0
  %230 = vperm.xlu0 %229, %v39
  %v231 = vpop.permute.xlu0 %230
  %232 = vset.pattern.permute.xlu0 0
  %233 = vperm.xlu0 %232, %v40
  %v234 = vpop.permute.xlu0 %233
  %235 = vset.pattern.permute.xlu0 0
  %236 = vperm.xlu0 %235, %v41
  %v237 = vpop.permute.xlu0 %236
  %238 = vset.pattern.permute.xlu0 0
  %239 = vperm.xlu0 %238, %v42
  %v240 = vpop.permute.xlu0 %239
  %241 = vset.pattern.permute.xlu0 0
  %242 = vperm.xlu0 %241, %v43
  %v243 = vpop.permute.xlu0 %242
  %244 = vset.pattern.permute.xlu0 0
  %245 = vperm.xlu0 %244, %v44
  %v246 = vpop.permute.xlu0 %245
  %247 = vset.pattern.permute.xlu0 0
  %248 = vperm.xlu0 %247, %v45
  %v249 = vpop.permute.xlu0 %248
  %250 = vset.pattern.permute.xlu0 0
  %251 = vperm.xlu0 %250, %v46
  %v252 = vpop.permute.xlu0 %251
  %253 = vset.pattern.permute.xlu0 0
  %254 = vperm.xlu0 %253, %v47
  %v255 = vpop.permute.xlu0 %254
  %256 = vset.pattern.permute.xlu0 0
  %257 = vperm.xlu0 %256, %v48
  %v258 = vpop.permute.xlu0 %257
  %259 = vset.pattern.permute.xlu0 0
  %260 = vperm.xlu0 %259, %v49
  %v261 = vpop.permute.xlu0 %260
  %262 = vset.pattern.permute.xlu0 0
  %263 = vperm.xlu0 %262, %v50
  %v264 = vpop.permute.xlu0 %263
  %265 = vset.pattern.permute.xlu0 0
  %266 = vperm.xlu0 %265, %v51
  %v267 = vpop.permute.xlu0 %266
  %268 = vset.pattern.permute.xlu0 0
  %269 = vperm.xlu0 %268, %v52
  %v270 = vpop.permute.xlu0 %269
  %271 = vset.pattern.permute.xlu0 0
  %272 = vperm.xlu0 %271, %v53
  %v273 = vpop.permute.xlu0 %272
  %274 = vset.pattern.permute.xlu0 0
  %275 = vperm.xlu0 %274, %v54
  %v276 = vpop.permute.xlu0 %275
  %277 = vset.pattern.permute.xlu0 0
  %278 = vperm.xlu0 %277, %v55
  %v279 = vpop.permute.xlu0 %278
  %280 = vset.pattern.permute.xlu0 0
  %281 = vperm.xlu0 %280, %v56
  %v282 = vpop.permute.xlu0 %281
  %283 = vset.pattern.permute.xlu0 0
  %284 = vperm.xlu0 %283, %v57
  %v285 = vpop.permute.xlu0 %284
  %286 = vset.pattern.permute.xlu0 0
  %287 = vperm.xlu0 %286, %v58
  %v288 = vpop.permute.xlu0 %287
  %289 = vset.pattern.permute.xlu0 0
  %290 = vperm.xlu0 %289, %v59
  %v291 = vpop.permute.xlu0 %290
  %292 = vset.pattern.permute.xlu0 0
  %293 = vperm.xlu0 %292, %v60
  %v294 = vpop.permute.xlu0 %293
  %295 = vset.pattern.permute.xlu0 0
  %296 = vperm.xlu0 %295, %v61
  %v297 = vpop.permute.xlu0 %296
  %298 = vset.pattern.permute.xlu0 0
  %299 = vperm.xlu0 %298, %v62
  %v300 = vpop.permute.xlu0 %299
  %301 = vset.pattern.permute.xlu0 0
  %302 = vperm.xlu0 %301, %v63
  %v303 = vpop.permute.xlu0 %302
  %304 = vset.pattern.permute.xlu0 0
  %305 = vperm.xlu0 %304, %v64
  %v306 = vpop.permute.xlu0 %305
  %307 = vset.pattern.permute.xlu0 0
  %308 = vperm.xlu0 %307, %v65
  %v309 = vpop.permute.xlu0 %308
  %310 = vset.pattern.permute.xlu0 0
  %311 = vperm.xlu0 %310, %v66
  %v312 = vpop.permute.xlu0 %311
  %313 = vset.pattern.permute.xlu0 0
  %314 = vperm.xlu0 %313, %v67
  %v315 = vpop.permute.xlu0 %314
  %316 = vset.pattern.permute.xlu0 0
  %317 = vperm.xlu0 %316, %v68
  %v318 = vpop.permute.xlu0 %317
  %319 = vset.pattern.permute.xlu0 0
  %320 = vperm.xlu0 %319, %v69
  %v321 = vpop.permute.xlu0 %320
  %322 = vset.pattern.permute.xlu0 0
  %323 = vperm.xlu0 %322, %v70
  %v324 = vpop.permute.xlu0 %323
  %325 = vset.pattern.permute.xlu0 0
  %326 = vperm.xlu0 %325, %v71
  %v327 = vpop.permute.xlu0 %326
  %v328 = vlaneseq
  %v329 = vand.u32 %v328, 127
  %v330 = vlaneseq
  %v331 = vshrl.u32 %v330, 7
  %v332 = vsub.s32 %v329, %v331
  %v333 = vrot.slane %v138, %v332
  %v334 = vlaneseq
  %v335 = vshrl.u32 %v334, 7
  %v336 = vsub.s32 %v329, %v335
  %v337 = vrot.slane %v141, %v336
  %v338 = vlaneseq
  %v339 = vshrl.u32 %v338, 7
  %v340 = vsub.s32 %v329, %v339
  %v341 = vrot.slane %v144, %v340
  %v342 = vlaneseq
  %v343 = vshrl.u32 %v342, 7
  %v344 = vsub.s32 %v329, %v343
  %v345 = vrot.slane %v147, %v344
  %v346 = vlaneseq
  %v347 = vshrl.u32 %v346, 7
  %v348 = vsub.s32 %v329, %v347
  %v349 = vrot.slane %v150, %v348
  %v350 = vlaneseq
  %v351 = vshrl.u32 %v350, 7
  %v352 = vsub.s32 %v329, %v351
  %v353 = vrot.slane %v153, %v352
  %v354 = vlaneseq
  %v355 = vshrl.u32 %v354, 7
  %v356 = vsub.s32 %v329, %v355
  %v357 = vrot.slane %v156, %v356
  %v358 = vlaneseq
  %v359 = vshrl.u32 %v358, 7
  %v360 = vsub.s32 %v329, %v359
  %v361 = vrot.slane %v159, %v360
  %v362 = vlaneseq
  %v363 = vshrl.u32 %v362, 7
  %v364 = vsub.s32 %v329, %v363
  %v365 = vrot.slane %v162, %v364
  %v366 = vlaneseq
  %v367 = vshrl.u32 %v366, 7
  %v368 = vsub.s32 %v329, %v367
  %v369 = vrot.slane %v165, %v368
  %v370 = vlaneseq
  %v371 = vshrl.u32 %v370, 7
  %v372 = vsub.s32 %v329, %v371
  %v373 = vrot.slane %v168, %v372
  %v374 = vlaneseq
  %v375 = vshrl.u32 %v374, 7
  %v376 = vsub.s32 %v329, %v375
  %v377 = vrot.slane %v171, %v376
  %v378 = vlaneseq
  %v379 = vshrl.u32 %v378, 7
  %v380 = vsub.s32 %v329, %v379
  %v381 = vrot.slane %v174, %v380
  %v382 = vlaneseq
  %v383 = vshrl.u32 %v382, 7
  %v384 = vsub.s32 %v329, %v383
  %v385 = vrot.slane %v177, %v384
  %v386 = vlaneseq
  %v387 = vshrl.u32 %v386, 7
  %v388 = vsub.s32 %v329, %v387
  %v389 = vrot.slane %v180, %v388
  %v390 = vlaneseq
  %v391 = vshrl.u32 %v390, 7
  %v392 = vsub.s32 %v329, %v391
  %v393 = vrot.slane %v183, %v392
  %v394 = vlaneseq
  %v395 = vshrl.u32 %v394, 7
  %v396 = vsub.s32 %v329, %v395
  %v397 = vrot.slane %v186, %v396
  %v398 = vlaneseq
  %v399 = vshrl.u32 %v398, 7
  %v400 = vsub.s32 %v329, %v399
  %v401 = vrot.slane %v189, %v400
  %v402 = vlaneseq
  %v403 = vshrl.u32 %v402, 7
  %v404 = vsub.s32 %v329, %v403
  %v405 = vrot.slane %v192, %v404
  %v406 = vlaneseq
  %v407 = vshrl.u32 %v406, 7
  %v408 = vsub.s32 %v329, %v407
  %v409 = vrot.slane %v195, %v408
  %v410 = vlaneseq
  %v411 = vshrl.u32 %v410, 7
  %v412 = vsub.s32 %v329, %v411
  %v413 = vrot.slane %v198, %v412
  %v414 = vlaneseq
  %v415 = vshrl.u32 %v414, 7
  %v416 = vsub.s32 %v329, %v415
  %v417 = vrot.slane %v201, %v416
  %v418 = vlaneseq
  %v419 = vshrl.u32 %v418, 7
  %v420 = vsub.s32 %v329, %v419
  %v421 = vrot.slane %v204, %v420
  %v422 = vlaneseq
  %v423 = vshrl.u32 %v422, 7
  %v424 = vsub.s32 %v329, %v423
  %v425 = vrot.slane %v207, %v424
  %v426 = vlaneseq
  %v427 = vshrl.u32 %v426, 7
  %v428 = vsub.s32 %v329, %v427
  %v429 = vrot.slane %v210, %v428
  %v430 = vlaneseq
  %v431 = vshrl.u32 %v430, 7
  %v432 = vsub.s32 %v329, %v431
  %v433 = vrot.slane %v213, %v432
  %v434 = vlaneseq
  %v435 = vshrl.u32 %v434, 7
  %v436 = vsub.s32 %v329, %v435
  %v437 = vrot.slane %v216, %v436
  %v438 = vlaneseq
  %v439 = vshrl.u32 %v438, 7
  %v440 = vsub.s32 %v329, %v439
  %v441 = vrot.slane %v219, %v440
  %v442 = vlaneseq
  %v443 = vshrl.u32 %v442, 7
  %v444 = vsub.s32 %v329, %v443
  %v445 = vrot.slane %v222, %v444
  %v446 = vlaneseq
  %v447 = vshrl.u32 %v446, 7
  %v448 = vsub.s32 %v329, %v447
  %v449 = vrot.slane %v225, %v448
  %v450 = vlaneseq
  %v451 = vshrl.u32 %v450, 7
  %v452 = vsub.s32 %v329, %v451
  %v453 = vrot.slane %v228, %v452
  %v454 = vlaneseq
  %v455 = vshrl.u32 %v454, 7
  %v456 = vsub.s32 %v329, %v455
  %v457 = vrot.slane %v231, %v456
  %v458 = vlaneseq
  %v459 = vshrl.u32 %v458, 7
  %v460 = vsub.s32 %v329, %v459
  %v461 = vrot.slane %v234, %v460
  %v462 = vlaneseq
  %v463 = vshrl.u32 %v462, 7
  %v464 = vsub.s32 %v329, %v463
  %v465 = vrot.slane %v237, %v464
  %v466 = vlaneseq
  %v467 = vshrl.u32 %v466, 7
  %v468 = vsub.s32 %v329, %v467
  %v469 = vrot.slane %v240, %v468
  %v470 = vlaneseq
  %v471 = vshrl.u32 %v470, 7
  %v472 = vsub.s32 %v329, %v471
  %v473 = vrot.slane %v243, %v472
  %v474 = vlaneseq
  %v475 = vshrl.u32 %v474, 7
  %v476 = vsub.s32 %v329, %v475
  %v477 = vrot.slane %v246, %v476
  %v478 = vlaneseq
  %v479 = vshrl.u32 %v478, 7
  %v480 = vsub.s32 %v329, %v479
  %v481 = vrot.slane %v249, %v480
  %v482 = vlaneseq
  %v483 = vshrl.u32 %v482, 7
  %v484 = vsub.s32 %v329, %v483
  %v485 = vrot.slane %v252, %v484
  %v486 = vlaneseq
  %v487 = vshrl.u32 %v486, 7
  %v488 = vsub.s32 %v329, %v487
  %v489 = vrot.slane %v255, %v488
  %v490 = vlaneseq
  %v491 = vshrl.u32 %v490, 7
  %v492 = vsub.s32 %v329, %v491
  %v493 = vrot.slane %v258, %v492
  %v494 = vlaneseq
  %v495 = vshrl.u32 %v494, 7
  %v496 = vsub.s32 %v329, %v495
  %v497 = vrot.slane %v261, %v496
  %v498 = vlaneseq
  %v499 = vshrl.u32 %v498, 7
  %v500 = vsub.s32 %v329, %v499
  %v501 = vrot.slane %v264, %v500
  %v502 = vlaneseq
  %v503 = vshrl.u32 %v502, 7
  %v504 = vsub.s32 %v329, %v503
  %v505 = vrot.slane %v267, %v504
  %v506 = vlaneseq
  %v507 = vshrl.u32 %v506, 7
  %v508 = vsub.s32 %v329, %v507
  %v509 = vrot.slane %v270, %v508
  %v510 = vlaneseq
  %v511 = vshrl.u32 %v510, 7
  %v512 = vsub.s32 %v329, %v511
  %v513 = vrot.slane %v273, %v512
  %v514 = vlaneseq
  %v515 = vshrl.u32 %v514, 7
  %v516 = vsub.s32 %v329, %v515
  %v517 = vrot.slane %v276, %v516
  %v518 = vlaneseq
  %v519 = vshrl.u32 %v518, 7
  %v520 = vsub.s32 %v329, %v519
  %v521 = vrot.slane %v279, %v520
  %v522 = vlaneseq
  %v523 = vshrl.u32 %v522, 7
  %v524 = vsub.s32 %v329, %v523
  %v525 = vrot.slane %v282, %v524
  %v526 = vlaneseq
  %v527 = vshrl.u32 %v526, 7
  %v528 = vsub.s32 %v329, %v527
  %v529 = vrot.slane %v285, %v528
  %v530 = vlaneseq
  %v531 = vshrl.u32 %v530, 7
  %v532 = vsub.s32 %v329, %v531
  %v533 = vrot.slane %v288, %v532
  %v534 = vlaneseq
  %v535 = vshrl.u32 %v534, 7
  %v536 = vsub.s32 %v329, %v535
  %v537 = vrot.slane %v291, %v536
  %v538 = vlaneseq
  %v539 = vshrl.u32 %v538, 7
  %v540 = vsub.s32 %v329, %v539
  %v541 = vrot.slane %v294, %v540
  %v542 = vlaneseq
  %v543 = vshrl.u32 %v542, 7
  %v544 = vsub.s32 %v329, %v543
  %v545 = vrot.slane %v297, %v544
  %v546 = vlaneseq
  %v547 = vshrl.u32 %v546, 7
  %v548 = vsub.s32 %v329, %v547
  %v549 = vrot.slane %v300, %v548
  %v550 = vlaneseq
  %v551 = vshrl.u32 %v550, 7
  %v552 = vsub.s32 %v329, %v551
  %v553 = vrot.slane %v303, %v552
  %v554 = vlaneseq
  %v555 = vshrl.u32 %v554, 7
  %v556 = vsub.s32 %v329, %v555
  %v557 = vrot.slane %v306, %v556
  %v558 = vlaneseq
  %v559 = vshrl.u32 %v558, 7
  %v560 = vsub.s32 %v329, %v559
  %v561 = vrot.slane %v309, %v560
  %v562 = vlaneseq
  %v563 = vshrl.u32 %v562, 7
  %v564 = vsub.s32 %v329, %v563
  %v565 = vrot.slane %v312, %v564
  %v566 = vlaneseq
  %v567 = vshrl.u32 %v566, 7
  %v568 = vsub.s32 %v329, %v567
  %v569 = vrot.slane %v315, %v568
  %v570 = vlaneseq
  %v571 = vshrl.u32 %v570, 7
  %v572 = vsub.s32 %v329, %v571
  %v573 = vrot.slane %v318, %v572
  %v574 = vlaneseq
  %v575 = vshrl.u32 %v574, 7
  %v576 = vsub.s32 %v329, %v575
  %v577 = vrot.slane %v321, %v576
  %v578 = vlaneseq
  %v579 = vshrl.u32 %v578, 7
  %v580 = vsub.s32 %v329, %v579
  %v581 = vrot.slane %v324, %v580
  %v582 = vlaneseq
  %v583 = vshrl.u32 %v582, 7
  %v584 = vsub.s32 %v329, %v583
  %v585 = vrot.slane %v327, %v584
  %vm586 = vcmask 1041409
  %v587 = vsel %vm586, %v337, %v333
  %vm588 = vcmask 1042434
  %v589 = vsel %vm588, %v341, %v587
  %vm590 = vcmask 1043459
  %v591 = vsel %vm590, %v345, %v589
  %vm592 = vcmask 1044484
  %v593 = vsel %vm592, %v349, %v591
  %vm594 = vcmask 1045509
  %v595 = vsel %vm594, %v353, %v593
  %vm596 = vcmask 1046534
  %v597 = vsel %vm596, %v357, %v595
  %vm598 = vcmask 1047559
  %v599 = vsel %vm598, %v361, %v597
  %v600 = vsel %vm586, %v369, %v365
  %v601 = vsel %vm588, %v373, %v600
  %v602 = vsel %vm590, %v377, %v601
  %v603 = vsel %vm592, %v381, %v602
  %v604 = vsel %vm594, %v385, %v603
  %v605 = vsel %vm596, %v389, %v604
  %v606 = vsel %vm598, %v393, %v605
  %v607 = vsel %vm586, %v401, %v397
  %v608 = vsel %vm588, %v405, %v607
  %v609 = vsel %vm590, %v409, %v608
  %v610 = vsel %vm592, %v413, %v609
  %v611 = vsel %vm594, %v417, %v610
  %v612 = vsel %vm596, %v421, %v611
  %v613 = vsel %vm598, %v425, %v612
  %v614 = vsel %vm586, %v433, %v429
  %v615 = vsel %vm588, %v437, %v614
  %v616 = vsel %vm590, %v441, %v615
  %v617 = vsel %vm592, %v445, %v616
  %v618 = vsel %vm594, %v449, %v617
  %v619 = vsel %vm596, %v453, %v618
  %v620 = vsel %vm598, %v457, %v619
  %v621 = vsel %vm586, %v465, %v461
  %v622 = vsel %vm588, %v469, %v621
  %v623 = vsel %vm590, %v473, %v622
  %v624 = vsel %vm592, %v477, %v623
  %v625 = vsel %vm594, %v481, %v624
  %v626 = vsel %vm596, %v485, %v625
  %v627 = vsel %vm598, %v489, %v626
  %v628 = vsel %vm586, %v497, %v493
  %v629 = vsel %vm588, %v501, %v628
  %v630 = vsel %vm590, %v505, %v629
  %v631 = vsel %vm592, %v509, %v630
  %v632 = vsel %vm594, %v513, %v631
  %v633 = vsel %vm596, %v517, %v632
  %v634 = vsel %vm598, %v521, %v633
  %v635 = vsel %vm586, %v529, %v525
  %v636 = vsel %vm588, %v533, %v635
  %v637 = vsel %vm590, %v537, %v636
  %v638 = vsel %vm592, %v541, %v637
  %v639 = vsel %vm594, %v545, %v638
  %v640 = vsel %vm596, %v549, %v639
  %v641 = vsel %vm598, %v553, %v640
  %v642 = vsel %vm586, %v561, %v557
  %v643 = vsel %vm588, %v565, %v642
  %v644 = vsel %vm590, %v569, %v643
  %v645 = vsel %vm592, %v573, %v644
  %v646 = vsel %vm594, %v577, %v645
  %v647 = vsel %vm596, %v581, %v646
  %v648 = vsel %vm598, %v585, %v647
  %vm657 = vcmask 64512
  %658 = vst.msk [vmem:[%s1] sm:$0xff] %vm657, %v599
  %659 = vst.msk [vmem:[%s1 + $0x20] sm:$0xff] %vm657, %v606
  %660 = vst.msk [vmem:[%s1 + $0x40] sm:$0xff] %vm657, %v613
  %661 = vst.msk [vmem:[%s1 + $0x60] sm:$0xff] %vm657, %v620
  %662 = vst.msk [vmem:[%s1 + $0x80] sm:$0xff] %vm657, %v627
  %663 = vst.msk [vmem:[%s1 + $0xa0] sm:$0xff] %vm657, %v634
  %664 = vst.msk [vmem:[%s1 + $0xc0] sm:$0xff] %vm657, %v641
  %665 = vst.msk [vmem:[%s1 + $0xe0] sm:$0xff] %vm657, %v648
  %v666 = vld [vmem:[%s0] sm:$0xff]
  %v667 = vld [vmem:[%s0 + $0x10] sm:$0xff]
  %v668 = vld [vmem:[%s0 + $0x20] sm:$0xff]
  %v669 = vld [vmem:[%s0 + $0x30] sm:$0xff]
  %v670 = vld [vmem:[%s0 + $0x40] sm:$0xff]
  %v671 = vld [vmem:[%s0 + $0x50] sm:$0xff]
  %v672 = vld [vmem:[%s0 + $0x60] sm:$0xff]
  %v673 = vld [vmem:[%s0 + $0x70] sm:$0xff]
  %v674 = vld [vmem:[%s0 + $0x80] sm:$0xff]
  %v675 = vld [vmem:[%s0 + $0x90] sm:$0xff]
  %v676 = vld [vmem:[%s0 + $0xa0] sm:$0xff]
  %v677 = vld [vmem:[%s0 + $0xb0] sm:$0xff]
  %v678 = vld [vmem:[%s0 + $0xc0] sm:$0xff]
  %v679 = vld [vmem:[%s0 + $0xd0] sm:$0xff]
  %v680 = vld [vmem:[%s0 + $0xe0] sm:$0xff]
  %v681 = vld [vmem:[%s0 + $0xf0] sm:$0xff]
  %v682 = vld [vmem:[%s0 + $0x100] sm:$0xff]
  %v683 = vld [vmem:[%s0 + $0x110] sm:$0xff]
  %v684 = vld [vmem:[%s0 + $0x120] sm:$0xff]
  %v685 = vld [vmem:[%s0 + $0x130] sm:$0xff]
  %v686 = vld [vmem:[%s0 + $0x140] sm:$0xff]
  %v687 = vld [vmem:[%s0 + $0x150] sm:$0xff]
  %v688 = vld [vmem:[%s0 + $0x160] sm:$0xff]
  %v689 = vld [vmem:[%s0 + $0x170] sm:$0xff]
  %v690 = vld [vmem:[%s0 + $0x180] sm:$0xff]
  %v691 = vld [vmem:[%s0 + $0x190] sm:$0xff]
  %v692 = vld [vmem:[%s0 + $0x1a0] sm:$0xff]
  %v693 = vld [vmem:[%s0 + $0x1b0] sm:$0xff]
  %v694 = vld [vmem:[%s0 + $0x1c0] sm:$0xff]
  %v695 = vld [vmem:[%s0 + $0x1d0] sm:$0xff]
  %v696 = vld [vmem:[%s0 + $0x1e0] sm:$0xff]
  %v697 = vld [vmem:[%s0 + $0x1f0] sm:$0xff]
  %v698 = vld [vmem:[%s0 + $0x200] sm:$0xff]
  %v699 = vld [vmem:[%s0 + $0x210] sm:$0xff]
  %v700 = vld [vmem:[%s0 + $0x220] sm:$0xff]
  %v701 = vld [vmem:[%s0 + $0x230] sm:$0xff]
  %v702 = vld [vmem:[%s0 + $0x240] sm:$0xff]
  %v703 = vld [vmem:[%s0 + $0x250] sm:$0xff]
  %v704 = vld [vmem:[%s0 + $0x260] sm:$0xff]
  %v705 = vld [vmem:[%s0 + $0x270] sm:$0xff]
  %v706 = vld [vmem:[%s0 + $0x280] sm:$0xff]
  %v707 = vld [vmem:[%s0 + $0x290] sm:$0xff]
  %v708 = vld [vmem:[%s0 + $0x2a0] sm:$0xff]
  %v709 = vld [vmem:[%s0 + $0x2b0] sm:$0xff]
  %v710 = vld [vmem:[%s0 + $0x2c0] sm:$0xff]
  %v711 = vld [vmem:[%s0 + $0x2d0] sm:$0xff]
  %v712 = vld [vmem:[%s0 + $0x2e0] sm:$0xff]
  %v713 = vld [vmem:[%s0 + $0x2f0] sm:$0xff]
  %v714 = vld [vmem:[%s0 + $0x300] sm:$0xff]
  %v715 = vld [vmem:[%s0 + $0x310] sm:$0xff]
  %v716 = vld [vmem:[%s0 + $0x320] sm:$0xff]
  %v717 = vld [vmem:[%s0 + $0x330] sm:$0xff]
  %v718 = vld [vmem:[%s0 + $0x340] sm:$0xff]
  %v719 = vld [vmem:[%s0 + $0x350] sm:$0xff]
  %v720 = vld [vmem:[%s0 + $0x360] sm:$0xff]
  %v721 = vld [vmem:[%s0 + $0x370] sm:$0xff]
  %v722 = vld [vmem:[%s0 + $0x380] sm:$0xff]
  %v723 = vld [vmem:[%s0 + $0x390] sm:$0xff]
  %v724 = vld [vmem:[%s0 + $0x3a0] sm:$0xff]
  %v725 = vld [vmem:[%s0 + $0x3b0] sm:$0xff]
  %v726 = vld [vmem:[%s0 + $0x3c0] sm:$0xff]
  %v727 = vld [vmem:[%s0 + $0x3d0] sm:$0xff]
  %v728 = vld [vmem:[%s0 + $0x3e0] sm:$0xff]
  %v729 = vld [vmem:[%s0 + $0x3f0] sm:$0xff]
  %794 = vset.pattern.permute.xlu0 1
  %795 = vperm.xlu0 %794, %v666
  %v796 = vpop.permute.xlu0 %795
  %797 = vset.pattern.permute.xlu0 1
  %798 = vperm.xlu0 %797, %v667
  %v799 = vpop.permute.xlu0 %798
  %800 = vset.pattern.permute.xlu0 1
  %801 = vperm.xlu0 %800, %v668
  %v802 = vpop.permute.xlu0 %801
  %803 = vset.pattern.permute.xlu0 1
  %804 = vperm.xlu0 %803, %v669
  %v805 = vpop.permute.xlu0 %804
  %806 = vset.pattern.permute.xlu0 1
  %807 = vperm.xlu0 %806, %v670
  %v808 = vpop.permute.xlu0 %807
  %809 = vset.pattern.permute.xlu0 1
  %810 = vperm.xlu0 %809, %v671
  %v811 = vpop.permute.xlu0 %810
  %812 = vset.pattern.permute.xlu0 1
  %813 = vperm.xlu0 %812, %v672
  %v814 = vpop.permute.xlu0 %813
  %815 = vset.pattern.permute.xlu0 1
  %816 = vperm.xlu0 %815, %v673
  %v817 = vpop.permute.xlu0 %816
  %818 = vset.pattern.permute.xlu0 1
  %819 = vperm.xlu0 %818, %v674
  %v820 = vpop.permute.xlu0 %819
  %821 = vset.pattern.permute.xlu0 1
  %822 = vperm.xlu0 %821, %v675
  %v823 = vpop.permute.xlu0 %822
  %824 = vset.pattern.permute.xlu0 1
  %825 = vperm.xlu0 %824, %v676
  %v826 = vpop.permute.xlu0 %825
  %827 = vset.pattern.permute.xlu0 1
  %828 = vperm.xlu0 %827, %v677
  %v829 = vpop.permute.xlu0 %828
  %830 = vset.pattern.permute.xlu0 1
  %831 = vperm.xlu0 %830, %v678
  %v832 = vpop.permute.xlu0 %831
  %833 = vset.pattern.permute.xlu0 1
  %834 = vperm.xlu0 %833, %v679
  %v835 = vpop.permute.xlu0 %834
  %836 = vset.pattern.permute.xlu0 1
  %837 = vperm.xlu0 %836, %v680
  %v838 = vpop.permute.xlu0 %837
  %839 = vset.pattern.permute.xlu0 1
  %840 = vperm.xlu0 %839, %v681
  %v841 = vpop.permute.xlu0 %840
  %842 = vset.pattern.permute.xlu0 1
  %843 = vperm.xlu0 %842, %v682
  %v844 = vpop.permute.xlu0 %843
  %845 = vset.pattern.permute.xlu0 1
  %846 = vperm.xlu0 %845, %v683
  %v847 = vpop.permute.xlu0 %846
  %848 = vset.pattern.permute.xlu0 1
  %849 = vperm.xlu0 %848, %v684
  %v850 = vpop.permute.xlu0 %849
  %851 = vset.pattern.permute.xlu0 1
  %852 = vperm.xlu0 %851, %v685
  %v853 = vpop.permute.xlu0 %852
  %854 = vset.pattern.permute.xlu0 1
  %855 = vperm.xlu0 %854, %v686
  %v856 = vpop.permute.xlu0 %855
  %857 = vset.pattern.permute.xlu0 1
  %858 = vperm.xlu0 %857, %v687
  %v859 = vpop.permute.xlu0 %858
  %860 = vset.pattern.permute.xlu0 1
  %861 = vperm.xlu0 %860, %v688
  %v862 = vpop.permute.xlu0 %861
  %863 = vset.pattern.permute.xlu0 1
  %864 = vperm.xlu0 %863, %v689
  %v865 = vpop.permute.xlu0 %864
  %866 = vset.pattern.permute.xlu0 1
  %867 = vperm.xlu0 %866, %v690
  %v868 = vpop.permute.xlu0 %867
  %869 = vset.pattern.permute.xlu0 1
  %870 = vperm.xlu0 %869, %v691
  %v871 = vpop.permute.xlu0 %870
  %872 = vset.pattern.permute.xlu0 1
  %873 = vperm.xlu0 %872, %v692
  %v874 = vpop.permute.xlu0 %873
  %875 = vset.pattern.permute.xlu0 1
  %876 = vperm.xlu0 %875, %v693
  %v877 = vpop.permute.xlu0 %876
  %878 = vset.pattern.permute.xlu0 1
  %879 = vperm.xlu0 %878, %v694
  %v880 = vpop.permute.xlu0 %879
  %881 = vset.pattern.permute.xlu0 1
  %882 = vperm.xlu0 %881, %v695
  %v883 = vpop.permute.xlu0 %882
  %884 = vset.pattern.permute.xlu0 1
  %885 = vperm.xlu0 %884, %v696
  %v886 = vpop.permute.xlu0 %885
  %887 = vset.pattern.permute.xlu0 1
  %888 = vperm.xlu0 %887, %v697
  %v889 = vpop.permute.xlu0 %888
  %890 = vset.pattern.permute.xlu0 1
  %891 = vperm.xlu0 %890, %v698
  %v892 = vpop.permute.xlu0 %891
  %893 = vset.pattern.permute.xlu0 1
  %894 = vperm.xlu0 %893, %v699
  %v895 = vpop.permute.xlu0 %894
  %896 = vset.pattern.permute.xlu0 1
  %897 = vperm.xlu0 %896, %v700
  %v898 = vpop.permute.xlu0 %897
  %899 = vset.pattern.permute.xlu0 1
  %900 = vperm.xlu0 %899, %v701
  %v901 = vpop.permute.xlu0 %900
  %902 = vset.pattern.permute.xlu0 1
  %903 = vperm.xlu0 %902, %v702
  %v904 = vpop.permute.xlu0 %903
  %905 = vset.pattern.permute.xlu0 1
  %906 = vperm.xlu0 %905, %v703
  %v907 = vpop.permute.xlu0 %906
  %908 = vset.pattern.permute.xlu0 1
  %909 = vperm.xlu0 %908, %v704
  %v910 = vpop.permute.xlu0 %909
  %911 = vset.pattern.permute.xlu0 1
  %912 = vperm.xlu0 %911, %v705
  %v913 = vpop.permute.xlu0 %912
  %914 = vset.pattern.permute.xlu0 1
  %915 = vperm.xlu0 %914, %v706
  %v916 = vpop.permute.xlu0 %915
  %917 = vset.pattern.permute.xlu0 1
  %918 = vperm.xlu0 %917, %v707
  %v919 = vpop.permute.xlu0 %918
  %920 = vset.pattern.permute.xlu0 1
  %921 = vperm.xlu0 %920, %v708
  %v922 = vpop.permute.xlu0 %921
  %923 = vset.pattern.permute.xlu0 1
  %924 = vperm.xlu0 %923, %v709
  %v925 = vpop.permute.xlu0 %924
  %926 = vset.pattern.permute.xlu0 1
  %927 = vperm.xlu0 %926, %v710
  %v928 = vpop.permute.xlu0 %927
  %929 = vset.pattern.permute.xlu0 1
  %930 = vperm.xlu0 %929, %v711
  %v931 = vpop.permute.xlu0 %930
  %932 = vset.pattern.permute.xlu0 1
  %933 = vperm.xlu0 %932, %v712
  %v934 = vpop.permute.xlu0 %933
  %935 = vset.pattern.permute.xlu0 1
  %936 = vperm.xlu0 %935, %v713
  %v937 = vpop.permute.xlu0 %936
  %938 = vset.pattern.permute.xlu0 1
  %939 = vperm.xlu0 %938, %v714
  %v940 = vpop.permute.xlu0 %939
  %941 = vset.pattern.permute.xlu0 1
  %942 = vperm.xlu0 %941, %v715
  %v943 = vpop.permute.xlu0 %942
  %944 = vset.pattern.permute.xlu0 1
  %945 = vperm.xlu0 %944, %v716
  %v946 = vpop.permute.xlu0 %945
  %947 = vset.pattern.permute.xlu0 1
  %948 = vperm.xlu0 %947, %v717
  %v949 = vpop.permute.xlu0 %948
  %950 = vset.pattern.permute.xlu0 1
  %951 = vperm.xlu0 %950, %v718
  %v952 = vpop.permute.xlu0 %951
  %953 = vset.pattern.permute.xlu0 1
  %954 = vperm.xlu0 %953, %v719
  %v955 = vpop.permute.xlu0 %954
  %956 = vset.pattern.permute.xlu0 1
  %957 = vperm.xlu0 %956, %v720
  %v958 = vpop.permute.xlu0 %957
  %959 = vset.pattern.permute.xlu0 1
  %960 = vperm.xlu0 %959, %v721
  %v961 = vpop.permute.xlu0 %960
  %962 = vset.pattern.permute.xlu0 1
  %963 = vperm.xlu0 %962, %v722
  %v964 = vpop.permute.xlu0 %963
  %965 = vset.pattern.permute.xlu0 1
  %966 = vperm.xlu0 %965, %v723
  %v967 = vpop.permute.xlu0 %966
  %968 = vset.pattern.permute.xlu0 1
  %969 = vperm.xlu0 %968, %v724
  %v970 = vpop.permute.xlu0 %969
  %971 = vset.pattern.permute.xlu0 1
  %972 = vperm.xlu0 %971, %v725
  %v973 = vpop.permute.xlu0 %972
  %974 = vset.pattern.permute.xlu0 1
  %975 = vperm.xlu0 %974, %v726
  %v976 = vpop.permute.xlu0 %975
  %977 = vset.pattern.permute.xlu0 1
  %978 = vperm.xlu0 %977, %v727
  %v979 = vpop.permute.xlu0 %978
  %980 = vset.pattern.permute.xlu0 1
  %981 = vperm.xlu0 %980, %v728
  %v982 = vpop.permute.xlu0 %981
  %983 = vset.pattern.permute.xlu0 1
  %984 = vperm.xlu0 %983, %v729
  %v985 = vpop.permute.xlu0 %984
  %v986 = vlaneseq
  %v987 = vshrl.u32 %v986, 7
  %v988 = vsub.s32 %v329, %v987
  %v989 = vrot.slane %v796, %v988
  %v990 = vlaneseq
  %v991 = vshrl.u32 %v990, 7
  %v992 = vsub.s32 %v329, %v991
  %v993 = vrot.slane %v799, %v992
  %v994 = vlaneseq
  %v995 = vshrl.u32 %v994, 7
  %v996 = vsub.s32 %v329, %v995
  %v997 = vrot.slane %v802, %v996
  %v998 = vlaneseq
  %v999 = vshrl.u32 %v998, 7
  %v1000 = vsub.s32 %v329, %v999
  %v1001 = vrot.slane %v805, %v1000
  %v1002 = vlaneseq
  %v1003 = vshrl.u32 %v1002, 7
  %v1004 = vsub.s32 %v329, %v1003
  %v1005 = vrot.slane %v808, %v1004
  %v1006 = vlaneseq
  %v1007 = vshrl.u32 %v1006, 7
  %v1008 = vsub.s32 %v329, %v1007
  %v1009 = vrot.slane %v811, %v1008
  %v1010 = vlaneseq
  %v1011 = vshrl.u32 %v1010, 7
  %v1012 = vsub.s32 %v329, %v1011
  %v1013 = vrot.slane %v814, %v1012
  %v1014 = vlaneseq
  %v1015 = vshrl.u32 %v1014, 7
  %v1016 = vsub.s32 %v329, %v1015
  %v1017 = vrot.slane %v817, %v1016
  %v1018 = vlaneseq
  %v1019 = vshrl.u32 %v1018, 7
  %v1020 = vsub.s32 %v329, %v1019
  %v1021 = vrot.slane %v820, %v1020
  %v1022 = vlaneseq
  %v1023 = vshrl.u32 %v1022, 7
  %v1024 = vsub.s32 %v329, %v1023
  %v1025 = vrot.slane %v823, %v1024
  %v1026 = vlaneseq
  %v1027 = vshrl.u32 %v1026, 7
  %v1028 = vsub.s32 %v329, %v1027
  %v1029 = vrot.slane %v826, %v1028
  %v1030 = vlaneseq
  %v1031 = vshrl.u32 %v1030, 7
  %v1032 = vsub.s32 %v329, %v1031
  %v1033 = vrot.slane %v829, %v1032
  %v1034 = vlaneseq
  %v1035 = vshrl.u32 %v1034, 7
  %v1036 = vsub.s32 %v329, %v1035
  %v1037 = vrot.slane %v832, %v1036
  %v1038 = vlaneseq
  %v1039 = vshrl.u32 %v1038, 7
  %v1040 = vsub.s32 %v329, %v1039
  %v1041 = vrot.slane %v835, %v1040
  %v1042 = vlaneseq
  %v1043 = vshrl.u32 %v1042, 7
  %v1044 = vsub.s32 %v329, %v1043
  %v1045 = vrot.slane %v838, %v1044
  %v1046 = vlaneseq
  %v1047 = vshrl.u32 %v1046, 7
  %v1048 = vsub.s32 %v329, %v1047
  %v1049 = vrot.slane %v841, %v1048
  %v1050 = vlaneseq
  %v1051 = vshrl.u32 %v1050, 7
  %v1052 = vsub.s32 %v329, %v1051
  %v1053 = vrot.slane %v844, %v1052
  %v1054 = vlaneseq
  %v1055 = vshrl.u32 %v1054, 7
  %v1056 = vsub.s32 %v329, %v1055
  %v1057 = vrot.slane %v847, %v1056
  %v1058 = vlaneseq
  %v1059 = vshrl.u32 %v1058, 7
  %v1060 = vsub.s32 %v329, %v1059
  %v1061 = vrot.slane %v850, %v1060
  %v1062 = vlaneseq
  %v1063 = vshrl.u32 %v1062, 7
  %v1064 = vsub.s32 %v329, %v1063
  %v1065 = vrot.slane %v853, %v1064
  %v1066 = vlaneseq
  %v1067 = vshrl.u32 %v1066, 7
  %v1068 = vsub.s32 %v329, %v1067
  %v1069 = vrot.slane %v856, %v1068
  %v1070 = vlaneseq
  %v1071 = vshrl.u32 %v1070, 7
  %v1072 = vsub.s32 %v329, %v1071
  %v1073 = vrot.slane %v859, %v1072
  %v1074 = vlaneseq
  %v1075 = vshrl.u32 %v1074, 7
  %v1076 = vsub.s32 %v329, %v1075
  %v1077 = vrot.slane %v862, %v1076
  %v1078 = vlaneseq
  %v1079 = vshrl.u32 %v1078, 7
  %v1080 = vsub.s32 %v329, %v1079
  %v1081 = vrot.slane %v865, %v1080
  %v1082 = vlaneseq
  %v1083 = vshrl.u32 %v1082, 7
  %v1084 = vsub.s32 %v329, %v1083
  %v1085 = vrot.slane %v868, %v1084
  %v1086 = vlaneseq
  %v1087 = vshrl.u32 %v1086, 7
  %v1088 = vsub.s32 %v329, %v1087
  %v1089 = vrot.slane %v871, %v1088
  %v1090 = vlaneseq
  %v1091 = vshrl.u32 %v1090, 7
  %v1092 = vsub.s32 %v329, %v1091
  %v1093 = vrot.slane %v874, %v1092
  %v1094 = vlaneseq
  %v1095 = vshrl.u32 %v1094, 7
  %v1096 = vsub.s32 %v329, %v1095
  %v1097 = vrot.slane %v877, %v1096
  %v1098 = vlaneseq
  %v1099 = vshrl.u32 %v1098, 7
  %v1100 = vsub.s32 %v329, %v1099
  %v1101 = vrot.slane %v880, %v1100
  %v1102 = vlaneseq
  %v1103 = vshrl.u32 %v1102, 7
  %v1104 = vsub.s32 %v329, %v1103
  %v1105 = vrot.slane %v883, %v1104
  %v1106 = vlaneseq
  %v1107 = vshrl.u32 %v1106, 7
  %v1108 = vsub.s32 %v329, %v1107
  %v1109 = vrot.slane %v886, %v1108
  %v1110 = vlaneseq
  %v1111 = vshrl.u32 %v1110, 7
  %v1112 = vsub.s32 %v329, %v1111
  %v1113 = vrot.slane %v889, %v1112
  %v1114 = vlaneseq
  %v1115 = vshrl.u32 %v1114, 7
  %v1116 = vsub.s32 %v329, %v1115
  %v1117 = vrot.slane %v892, %v1116
  %v1118 = vlaneseq
  %v1119 = vshrl.u32 %v1118, 7
  %v1120 = vsub.s32 %v329, %v1119
  %v1121 = vrot.slane %v895, %v1120
  %v1122 = vlaneseq
  %v1123 = vshrl.u32 %v1122, 7
  %v1124 = vsub.s32 %v329, %v1123
  %v1125 = vrot.slane %v898, %v1124
  %v1126 = vlaneseq
  %v1127 = vshrl.u32 %v1126, 7
  %v1128 = vsub.s32 %v329, %v1127
  %v1129 = vrot.slane %v901, %v1128
  %v1130 = vlaneseq
  %v1131 = vshrl.u32 %v1130, 7
  %v1132 = vsub.s32 %v329, %v1131
  %v1133 = vrot.slane %v904, %v1132
  %v1134 = vlaneseq
  %v1135 = vshrl.u32 %v1134, 7
  %v1136 = vsub.s32 %v329, %v1135
  %v1137 = vrot.slane %v907, %v1136
  %v1138 = vlaneseq
  %v1139 = vshrl.u32 %v1138, 7
  %v1140 = vsub.s32 %v329, %v1139
  %v1141 = vrot.slane %v910, %v1140
  %v1142 = vlaneseq
  %v1143 = vshrl.u32 %v1142, 7
  %v1144 = vsub.s32 %v329, %v1143
  %v1145 = vrot.slane %v913, %v1144
  %v1146 = vlaneseq
  %v1147 = vshrl.u32 %v1146, 7
  %v1148 = vsub.s32 %v329, %v1147
  %v1149 = vrot.slane %v916, %v1148
  %v1150 = vlaneseq
  %v1151 = vshrl.u32 %v1150, 7
  %v1152 = vsub.s32 %v329, %v1151
  %v1153 = vrot.slane %v919, %v1152
  %v1154 = vlaneseq
  %v1155 = vshrl.u32 %v1154, 7
  %v1156 = vsub.s32 %v329, %v1155
  %v1157 = vrot.slane %v922, %v1156
  %v1158 = vlaneseq
  %v1159 = vshrl.u32 %v1158, 7
  %v1160 = vsub.s32 %v329, %v1159
  %v1161 = vrot.slane %v925, %v1160
  %v1162 = vlaneseq
  %v1163 = vshrl.u32 %v1162, 7
  %v1164 = vsub.s32 %v329, %v1163
  %v1165 = vrot.slane %v928, %v1164
  %v1166 = vlaneseq
  %v1167 = vshrl.u32 %v1166, 7
  %v1168 = vsub.s32 %v329, %v1167
  %v1169 = vrot.slane %v931, %v1168
  %v1170 = vlaneseq
  %v1171 = vshrl.u32 %v1170, 7
  %v1172 = vsub.s32 %v329, %v1171
  %v1173 = vrot.slane %v934, %v1172
  %v1174 = vlaneseq
  %v1175 = vshrl.u32 %v1174, 7
  %v1176 = vsub.s32 %v329, %v1175
  %v1177 = vrot.slane %v937, %v1176
  %v1178 = vlaneseq
  %v1179 = vshrl.u32 %v1178, 7
  %v1180 = vsub.s32 %v329, %v1179
  %v1181 = vrot.slane %v940, %v1180
  %v1182 = vlaneseq
  %v1183 = vshrl.u32 %v1182, 7
  %v1184 = vsub.s32 %v329, %v1183
  %v1185 = vrot.slane %v943, %v1184
  %v1186 = vlaneseq
  %v1187 = vshrl.u32 %v1186, 7
  %v1188 = vsub.s32 %v329, %v1187
  %v1189 = vrot.slane %v946, %v1188
  %v1190 = vlaneseq
  %v1191 = vshrl.u32 %v1190, 7
  %v1192 = vsub.s32 %v329, %v1191
  %v1193 = vrot.slane %v949, %v1192
  %v1194 = vlaneseq
  %v1195 = vshrl.u32 %v1194, 7
  %v1196 = vsub.s32 %v329, %v1195
  %v1197 = vrot.slane %v952, %v1196
  %v1198 = vlaneseq
  %v1199 = vshrl.u32 %v1198, 7
  %v1200 = vsub.s32 %v329, %v1199
  %v1201 = vrot.slane %v955, %v1200
  %v1202 = vlaneseq
  %v1203 = vshrl.u32 %v1202, 7
  %v1204 = vsub.s32 %v329, %v1203
  %v1205 = vrot.slane %v958, %v1204
  %v1206 = vlaneseq
  %v1207 = vshrl.u32 %v1206, 7
  %v1208 = vsub.s32 %v329, %v1207
  %v1209 = vrot.slane %v961, %v1208
  %v1210 = vlaneseq
  %v1211 = vshrl.u32 %v1210, 7
  %v1212 = vsub.s32 %v329, %v1211
  %v1213 = vrot.slane %v964, %v1212
  %v1214 = vlaneseq
  %v1215 = vshrl.u32 %v1214, 7
  %v1216 = vsub.s32 %v329, %v1215
  %v1217 = vrot.slane %v967, %v1216
  %v1218 = vlaneseq
  %v1219 = vshrl.u32 %v1218, 7
  %v1220 = vsub.s32 %v329, %v1219
  %v1221 = vrot.slane %v970, %v1220
  %v1222 = vlaneseq
  %v1223 = vshrl.u32 %v1222, 7
  %v1224 = vsub.s32 %v329, %v1223
  %v1225 = vrot.slane %v973, %v1224
  %v1226 = vlaneseq
  %v1227 = vshrl.u32 %v1226, 7
  %v1228 = vsub.s32 %v329, %v1227
  %v1229 = vrot.slane %v976, %v1228
  %v1230 = vlaneseq
  %v1231 = vshrl.u32 %v1230, 7
  %v1232 = vsub.s32 %v329, %v1231
  %v1233 = vrot.slane %v979, %v1232
  %v1234 = vlaneseq
  %v1235 = vshrl.u32 %v1234, 7
  %v1236 = vsub.s32 %v329, %v1235
  %v1237 = vrot.slane %v982, %v1236
  %v1238 = vlaneseq
  %v1239 = vshrl.u32 %v1238, 7
  %v1240 = vsub.s32 %v329, %v1239
  %v1241 = vrot.slane %v985, %v1240
  %v1242 = vsel %vm586, %v993, %v989
  %v1243 = vsel %vm588, %v997, %v1242
  %v1244 = vsel %vm590, %v1001, %v1243
  %v1245 = vsel %vm592, %v1005, %v1244
  %v1246 = vsel %vm594, %v1009, %v1245
  %v1247 = vsel %vm596, %v1013, %v1246
  %v1248 = vsel %vm598, %v1017, %v1247
  %v1249 = vsel %vm586, %v1025, %v1021
  %v1250 = vsel %vm588, %v1029, %v1249
  %v1251 = vsel %vm590, %v1033, %v1250
  %v1252 = vsel %vm592, %v1037, %v1251
  %v1253 = vsel %vm594, %v1041, %v1252
  %v1254 = vsel %vm596, %v1045, %v1253
  %v1255 = vsel %vm598, %v1049, %v1254
  %v1256 = vsel %vm586, %v1057, %v1053
  %v1257 = vsel %vm588, %v1061, %v1256
  %v1258 = vsel %vm590, %v1065, %v1257
  %v1259 = vsel %vm592, %v1069, %v1258
  %v1260 = vsel %vm594, %v1073, %v1259
  %v1261 = vsel %vm596, %v1077, %v1260
  %v1262 = vsel %vm598, %v1081, %v1261
  %v1263 = vsel %vm586, %v1089, %v1085
  %v1264 = vsel %vm588, %v1093, %v1263
  %v1265 = vsel %vm590, %v1097, %v1264
  %v1266 = vsel %vm592, %v1101, %v1265
  %v1267 = vsel %vm594, %v1105, %v1266
  %v1268 = vsel %vm596, %v1109, %v1267
  %v1269 = vsel %vm598, %v1113, %v1268
  %v1270 = vsel %vm586, %v1121, %v1117
  %v1271 = vsel %vm588, %v1125, %v1270
  %v1272 = vsel %vm590, %v1129, %v1271
  %v1273 = vsel %vm592, %v1133, %v1272
  %v1274 = vsel %vm594, %v1137, %v1273
  %v1275 = vsel %vm596, %v1141, %v1274
  %v1276 = vsel %vm598, %v1145, %v1275
  %v1277 = vsel %vm586, %v1153, %v1149
  %v1278 = vsel %vm588, %v1157, %v1277
  %v1279 = vsel %vm590, %v1161, %v1278
  %v1280 = vsel %vm592, %v1165, %v1279
  %v1281 = vsel %vm594, %v1169, %v1280
  %v1282 = vsel %vm596, %v1173, %v1281
  %v1283 = vsel %vm598, %v1177, %v1282
  %v1284 = vsel %vm586, %v1185, %v1181
  %v1285 = vsel %vm588, %v1189, %v1284
  %v1286 = vsel %vm590, %v1193, %v1285
  %v1287 = vsel %vm592, %v1197, %v1286
  %v1288 = vsel %vm594, %v1201, %v1287
  %v1289 = vsel %vm596, %v1205, %v1288
  %v1290 = vsel %vm598, %v1209, %v1289
  %v1291 = vsel %vm586, %v1217, %v1213
  %v1292 = vsel %vm588, %v1221, %v1291
  %v1293 = vsel %vm590, %v1225, %v1292
  %v1294 = vsel %vm592, %v1229, %v1293
  %v1295 = vsel %vm594, %v1233, %v1294
  %v1296 = vsel %vm596, %v1237, %v1295
  %v1297 = vsel %vm598, %v1241, %v1296
  %s1306 = scalar_lea.vmem %s1, 8
  %1307 = vst.msk [vmem:[%s1306] sm:$0xff] %vm657, %v1248
  %1308 = vst.msk [vmem:[%s1306 + $0x20] sm:$0xff] %vm657, %v1255
  %1309 = vst.msk [vmem:[%s1306 + $0x40] sm:$0xff] %vm657, %v1262
  %1310 = vst.msk [vmem:[%s1306 + $0x60] sm:$0xff] %vm657, %v1269
  %1311 = vst.msk [vmem:[%s1306 + $0x80] sm:$0xff] %vm657, %v1276
  %1312 = vst.msk [vmem:[%s1306 + $0xa0] sm:$0xff] %vm657, %v1283
  %1313 = vst.msk [vmem:[%s1306 + $0xc0] sm:$0xff] %vm657, %v1290
  %1314 = vst.msk [vmem:[%s1306 + $0xe0] sm:$0xff] %vm657, %v1297
  %s1315 = scalar_lea.vmem %s0, 8
  %v1316 = vld [vmem:[%s1315] sm:$0xff]
  %v1317 = vld [vmem:[%s1315 + $0x10] sm:$0xff]
  %v1318 = vld [vmem:[%s1315 + $0x20] sm:$0xff]
  %v1319 = vld [vmem:[%s1315 + $0x30] sm:$0xff]
  %v1320 = vld [vmem:[%s1315 + $0x40] sm:$0xff]
  %v1321 = vld [vmem:[%s1315 + $0x50] sm:$0xff]
  %v1322 = vld [vmem:[%s1315 + $0x60] sm:$0xff]
  %v1323 = vld [vmem:[%s1315 + $0x70] sm:$0xff]
  %v1324 = vld [vmem:[%s1315 + $0x80] sm:$0xff]
  %v1325 = vld [vmem:[%s1315 + $0x90] sm:$0xff]
  %v1326 = vld [vmem:[%s1315 + $0xa0] sm:$0xff]
  %v1327 = vld [vmem:[%s1315 + $0xb0] sm:$0xff]
  %v1328 = vld [vmem:[%s1315 + $0xc0] sm:$0xff]
  %v1329 = vld [vmem:[%s1315 + $0xd0] sm:$0xff]
  %v1330 = vld [vmem:[%s1315 + $0xe0] sm:$0xff]
  %v1331 = vld [vmem:[%s1315 + $0xf0] sm:$0xff]
  %v1332 = vld [vmem:[%s1315 + $0x100] sm:$0xff]
  %v1333 = vld [vmem:[%s1315 + $0x110] sm:$0xff]
  %v1334 = vld [vmem:[%s1315 + $0x120] sm:$0xff]
  %v1335 = vld [vmem:[%s1315 + $0x130] sm:$0xff]
  %v1336 = vld [vmem:[%s1315 + $0x140] sm:$0xff]
  %v1337 = vld [vmem:[%s1315 + $0x150] sm:$0xff]
  %v1338 = vld [vmem:[%s1315 + $0x160] sm:$0xff]
  %v1339 = vld [vmem:[%s1315 + $0x170] sm:$0xff]
  %v1340 = vld [vmem:[%s1315 + $0x180] sm:$0xff]
  %v1341 = vld [vmem:[%s1315 + $0x190] sm:$0xff]
  %v1342 = vld [vmem:[%s1315 + $0x1a0] sm:$0xff]
  %v1343 = vld [vmem:[%s1315 + $0x1b0] sm:$0xff]
  %v1344 = vld [vmem:[%s1315 + $0x1c0] sm:$0xff]
  %v1345 = vld [vmem:[%s1315 + $0x1d0] sm:$0xff]
  %v1346 = vld [vmem:[%s1315 + $0x1e0] sm:$0xff]
  %v1347 = vld [vmem:[%s1315 + $0x1f0] sm:$0xff]
  %v1348 = vld [vmem:[%s1315 + $0x200] sm:$0xff]
  %v1349 = vld [vmem:[%s1315 + $0x210] sm:$0xff]
  %v1350 = vld [vmem:[%s1315 + $0x220] sm:$0xff]
  %v1351 = vld [vmem:[%s1315 + $0x230] sm:$0xff]
  %v1352 = vld [vmem:[%s1315 + $0x240] sm:$0xff]
  %v1353 = vld [vmem:[%s1315 + $0x250] sm:$0xff]
  %v1354 = vld [vmem:[%s1315 + $0x260] sm:$0xff]
  %v1355 = vld [vmem:[%s1315 + $0x270] sm:$0xff]
  %v1356 = vld [vmem:[%s1315 + $0x280] sm:$0xff]
  %v1357 = vld [vmem:[%s1315 + $0x290] sm:$0xff]
  %v1358 = vld [vmem:[%s1315 + $0x2a0] sm:$0xff]
  %v1359 = vld [vmem:[%s1315 + $0x2b0] sm:$0xff]
  %v1360 = vld [vmem:[%s1315 + $0x2c0] sm:$0xff]
  %v1361 = vld [vmem:[%s1315 + $0x2d0] sm:$0xff]
  %v1362 = vld [vmem:[%s1315 + $0x2e0] sm:$0xff]
  %v1363 = vld [vmem:[%s1315 + $0x2f0] sm:$0xff]
  %v1364 = vld [vmem:[%s1315 + $0x300] sm:$0xff]
  %v1365 = vld [vmem:[%s1315 + $0x310] sm:$0xff]
  %v1366 = vld [vmem:[%s1315 + $0x320] sm:$0xff]
  %v1367 = vld [vmem:[%s1315 + $0x330] sm:$0xff]
  %v1368 = vld [vmem:[%s1315 + $0x340] sm:$0xff]
  %v1369 = vld [vmem:[%s1315 + $0x350] sm:$0xff]
  %v1370 = vld [vmem:[%s1315 + $0x360] sm:$0xff]
  %v1371 = vld [vmem:[%s1315 + $0x370] sm:$0xff]
  %v1372 = vld [vmem:[%s1315 + $0x380] sm:$0xff]
  %v1373 = vld [vmem:[%s1315 + $0x390] sm:$0xff]
  %v1374 = vld [vmem:[%s1315 + $0x3a0] sm:$0xff]
  %v1375 = vld [vmem:[%s1315 + $0x3b0] sm:$0xff]
  %v1376 = vld [vmem:[%s1315 + $0x3c0] sm:$0xff]
  %v1377 = vld [vmem:[%s1315 + $0x3d0] sm:$0xff]
  %v1378 = vld [vmem:[%s1315 + $0x3e0] sm:$0xff]
  %v1379 = vld [vmem:[%s1315 + $0x3f0] sm:$0xff]
  %1444 = vset.pattern.permute.xlu0 0
  %1445 = vperm.xlu0 %1444, %v1316
  %v1446 = vpop.permute.xlu0 %1445
  %1447 = vset.pattern.permute.xlu0 0
  %1448 = vperm.xlu0 %1447, %v1317
  %v1449 = vpop.permute.xlu0 %1448
  %1450 = vset.pattern.permute.xlu0 0
  %1451 = vperm.xlu0 %1450, %v1318
  %v1452 = vpop.permute.xlu0 %1451
  %1453 = vset.pattern.permute.xlu0 0
  %1454 = vperm.xlu0 %1453, %v1319
  %v1455 = vpop.permute.xlu0 %1454
  %1456 = vset.pattern.permute.xlu0 0
  %1457 = vperm.xlu0 %1456, %v1320
  %v1458 = vpop.permute.xlu0 %1457
  %1459 = vset.pattern.permute.xlu0 0
  %1460 = vperm.xlu0 %1459, %v1321
  %v1461 = vpop.permute.xlu0 %1460
  %1462 = vset.pattern.permute.xlu0 0
  %1463 = vperm.xlu0 %1462, %v1322
  %v1464 = vpop.permute.xlu0 %1463
  %1465 = vset.pattern.permute.xlu0 0
  %1466 = vperm.xlu0 %1465, %v1323
  %v1467 = vpop.permute.xlu0 %1466
  %1468 = vset.pattern.permute.xlu0 0
  %1469 = vperm.xlu0 %1468, %v1324
  %v1470 = vpop.permute.xlu0 %1469
  %1471 = vset.pattern.permute.xlu0 0
  %1472 = vperm.xlu0 %1471, %v1325
  %v1473 = vpop.permute.xlu0 %1472
  %1474 = vset.pattern.permute.xlu0 0
  %1475 = vperm.xlu0 %1474, %v1326
  %v1476 = vpop.permute.xlu0 %1475
  %1477 = vset.pattern.permute.xlu0 0
  %1478 = vperm.xlu0 %1477, %v1327
  %v1479 = vpop.permute.xlu0 %1478
  %1480 = vset.pattern.permute.xlu0 0
  %1481 = vperm.xlu0 %1480, %v1328
  %v1482 = vpop.permute.xlu0 %1481
  %1483 = vset.pattern.permute.xlu0 0
  %1484 = vperm.xlu0 %1483, %v1329
  %v1485 = vpop.permute.xlu0 %1484
  %1486 = vset.pattern.permute.xlu0 0
  %1487 = vperm.xlu0 %1486, %v1330
  %v1488 = vpop.permute.xlu0 %1487
  %1489 = vset.pattern.permute.xlu0 0
  %1490 = vperm.xlu0 %1489, %v1331
  %v1491 = vpop.permute.xlu0 %1490
  %1492 = vset.pattern.permute.xlu0 0
  %1493 = vperm.xlu0 %1492, %v1332
  %v1494 = vpop.permute.xlu0 %1493
  %1495 = vset.pattern.permute.xlu0 0
  %1496 = vperm.xlu0 %1495, %v1333
  %v1497 = vpop.permute.xlu0 %1496
  %1498 = vset.pattern.permute.xlu0 0
  %1499 = vperm.xlu0 %1498, %v1334
  %v1500 = vpop.permute.xlu0 %1499
  %1501 = vset.pattern.permute.xlu0 0
  %1502 = vperm.xlu0 %1501, %v1335
  %v1503 = vpop.permute.xlu0 %1502
  %1504 = vset.pattern.permute.xlu0 0
  %1505 = vperm.xlu0 %1504, %v1336
  %v1506 = vpop.permute.xlu0 %1505
  %1507 = vset.pattern.permute.xlu0 0
  %1508 = vperm.xlu0 %1507, %v1337
  %v1509 = vpop.permute.xlu0 %1508
  %1510 = vset.pattern.permute.xlu0 0
  %1511 = vperm.xlu0 %1510, %v1338
  %v1512 = vpop.permute.xlu0 %1511
  %1513 = vset.pattern.permute.xlu0 0
  %1514 = vperm.xlu0 %1513, %v1339
  %v1515 = vpop.permute.xlu0 %1514
  %1516 = vset.pattern.permute.xlu0 0
  %1517 = vperm.xlu0 %1516, %v1340
  %v1518 = vpop.permute.xlu0 %1517
  %1519 = vset.pattern.permute.xlu0 0
  %1520 = vperm.xlu0 %1519, %v1341
  %v1521 = vpop.permute.xlu0 %1520
  %1522 = vset.pattern.permute.xlu0 0
  %1523 = vperm.xlu0 %1522, %v1342
  %v1524 = vpop.permute.xlu0 %1523
  %1525 = vset.pattern.permute.xlu0 0
  %1526 = vperm.xlu0 %1525, %v1343
  %v1527 = vpop.permute.xlu0 %1526
  %1528 = vset.pattern.permute.xlu0 0
  %1529 = vperm.xlu0 %1528, %v1344
  %v1530 = vpop.permute.xlu0 %1529
  %1531 = vset.pattern.permute.xlu0 0
  %1532 = vperm.xlu0 %1531, %v1345
  %v1533 = vpop.permute.xlu0 %1532
  %1534 = vset.pattern.permute.xlu0 0
  %1535 = vperm.xlu0 %1534, %v1346
  %v1536 = vpop.permute.xlu0 %1535
  %1537 = vset.pattern.permute.xlu0 0
  %1538 = vperm.xlu0 %1537, %v1347
  %v1539 = vpop.permute.xlu0 %1538
  %1540 = vset.pattern.permute.xlu0 0
  %1541 = vperm.xlu0 %1540, %v1348
  %v1542 = vpop.permute.xlu0 %1541
  %1543 = vset.pattern.permute.xlu0 0
  %1544 = vperm.xlu0 %1543, %v1349
  %v1545 = vpop.permute.xlu0 %1544
  %1546 = vset.pattern.permute.xlu0 0
  %1547 = vperm.xlu0 %1546, %v1350
  %v1548 = vpop.permute.xlu0 %1547
  %1549 = vset.pattern.permute.xlu0 0
  %1550 = vperm.xlu0 %1549, %v1351
  %v1551 = vpop.permute.xlu0 %1550
  %1552 = vset.pattern.permute.xlu0 0
  %1553 = vperm.xlu0 %1552, %v1352
  %v1554 = vpop.permute.xlu0 %1553
  %1555 = vset.pattern.permute.xlu0 0
  %1556 = vperm.xlu0 %1555, %v1353
  %v1557 = vpop.permute.xlu0 %1556
  %1558 = vset.pattern.permute.xlu0 0
  %1559 = vperm.xlu0 %1558, %v1354
  %v1560 = vpop.permute.xlu0 %1559
  %1561 = vset.pattern.permute.xlu0 0
  %1562 = vperm.xlu0 %1561, %v1355
  %v1563 = vpop.permute.xlu0 %1562
  %1564 = vset.pattern.permute.xlu0 0
  %1565 = vperm.xlu0 %1564, %v1356
  %v1566 = vpop.permute.xlu0 %1565
  %1567 = vset.pattern.permute.xlu0 0
  %1568 = vperm.xlu0 %1567, %v1357
  %v1569 = vpop.permute.xlu0 %1568
  %1570 = vset.pattern.permute.xlu0 0
  %1571 = vperm.xlu0 %1570, %v1358
  %v1572 = vpop.permute.xlu0 %1571
  %1573 = vset.pattern.permute.xlu0 0
  %1574 = vperm.xlu0 %1573, %v1359
  %v1575 = vpop.permute.xlu0 %1574
  %1576 = vset.pattern.permute.xlu0 0
  %1577 = vperm.xlu0 %1576, %v1360
  %v1578 = vpop.permute.xlu0 %1577
  %1579 = vset.pattern.permute.xlu0 0
  %1580 = vperm.xlu0 %1579, %v1361
  %v1581 = vpop.permute.xlu0 %1580
  %1582 = vset.pattern.permute.xlu0 0
  %1583 = vperm.xlu0 %1582, %v1362
  %v1584 = vpop.permute.xlu0 %1583
  %1585 = vset.pattern.permute.xlu0 0
  %1586 = vperm.xlu0 %1585, %v1363
  %v1587 = vpop.permute.xlu0 %1586
  %1588 = vset.pattern.permute.xlu0 0
  %1589 = vperm.xlu0 %1588, %v1364
  %v1590 = vpop.permute.xlu0 %1589
  %1591 = vset.pattern.permute.xlu0 0
  %1592 = vperm.xlu0 %1591, %v1365
  %v1593 = vpop.permute.xlu0 %1592
  %1594 = vset.pattern.permute.xlu0 0
  %1595 = vperm.xlu0 %1594, %v1366
  %v1596 = vpop.permute.xlu0 %1595
  %1597 = vset.pattern.permute.xlu0 0
  %1598 = vperm.xlu0 %1597, %v1367
  %v1599 = vpop.permute.xlu0 %1598
  %1600 = vset.pattern.permute.xlu0 0
  %1601 = vperm.xlu0 %1600, %v1368
  %v1602 = vpop.permute.xlu0 %1601
  %1603 = vset.pattern.permute.xlu0 0
  %1604 = vperm.xlu0 %1603, %v1369
  %v1605 = vpop.permute.xlu0 %1604
  %1606 = vset.pattern.permute.xlu0 0
  %1607 = vperm.xlu0 %1606, %v1370
  %v1608 = vpop.permute.xlu0 %1607
  %1609 = vset.pattern.permute.xlu0 0
  %1610 = vperm.xlu0 %1609, %v1371
  %v1611 = vpop.permute.xlu0 %1610
  %1612 = vset.pattern.permute.xlu0 0
  %1613 = vperm.xlu0 %1612, %v1372
  %v1614 = vpop.permute.xlu0 %1613
  %1615 = vset.pattern.permute.xlu0 0
  %1616 = vperm.xlu0 %1615, %v1373
  %v1617 = vpop.permute.xlu0 %1616
  %1618 = vset.pattern.permute.xlu0 0
  %1619 = vperm.xlu0 %1618, %v1374
  %v1620 = vpop.permute.xlu0 %1619
  %1621 = vset.pattern.permute.xlu0 0
  %1622 = vperm.xlu0 %1621, %v1375
  %v1623 = vpop.permute.xlu0 %1622
  %1624 = vset.pattern.permute.xlu0 0
  %1625 = vperm.xlu0 %1624, %v1376
  %v1626 = vpop.permute.xlu0 %1625
  %1627 = vset.pattern.permute.xlu0 0
  %1628 = vperm.xlu0 %1627, %v1377
  %v1629 = vpop.permute.xlu0 %1628
  %1630 = vset.pattern.permute.xlu0 0
  %1631 = vperm.xlu0 %1630, %v1378
  %v1632 = vpop.permute.xlu0 %1631
  %1633 = vset.pattern.permute.xlu0 0
  %1634 = vperm.xlu0 %1633, %v1379
  %v1635 = vpop.permute.xlu0 %1634
  %v1636 = vlaneseq
  %v1637 = vshrl.u32 %v1636, 7
  %v1638 = vsub.s32 %v329, %v1637
  %v1639 = vrot.slane %v1446, %v1638
  %v1640 = vlaneseq
  %v1641 = vshrl.u32 %v1640, 7
  %v1642 = vsub.s32 %v329, %v1641
  %v1643 = vrot.slane %v1449, %v1642
  %v1644 = vlaneseq
  %v1645 = vshrl.u32 %v1644, 7
  %v1646 = vsub.s32 %v329, %v1645
  %v1647 = vrot.slane %v1452, %v1646
  %v1648 = vlaneseq
  %v1649 = vshrl.u32 %v1648, 7
  %v1650 = vsub.s32 %v329, %v1649
  %v1651 = vrot.slane %v1455, %v1650
  %v1652 = vlaneseq
  %v1653 = vshrl.u32 %v1652, 7
  %v1654 = vsub.s32 %v329, %v1653
  %v1655 = vrot.slane %v1458, %v1654
  %v1656 = vlaneseq
  %v1657 = vshrl.u32 %v1656, 7
  %v1658 = vsub.s32 %v329, %v1657
  %v1659 = vrot.slane %v1461, %v1658
  %v1660 = vlaneseq
  %v1661 = vshrl.u32 %v1660, 7
  %v1662 = vsub.s32 %v329, %v1661
  %v1663 = vrot.slane %v1464, %v1662
  %v1664 = vlaneseq
  %v1665 = vshrl.u32 %v1664, 7
  %v1666 = vsub.s32 %v329, %v1665
  %v1667 = vrot.slane %v1467, %v1666
  %v1668 = vlaneseq
  %v1669 = vshrl.u32 %v1668, 7
  %v1670 = vsub.s32 %v329, %v1669
  %v1671 = vrot.slane %v1470, %v1670
  %v1672 = vlaneseq
  %v1673 = vshrl.u32 %v1672, 7
  %v1674 = vsub.s32 %v329, %v1673
  %v1675 = vrot.slane %v1473, %v1674
  %v1676 = vlaneseq
  %v1677 = vshrl.u32 %v1676, 7
  %v1678 = vsub.s32 %v329, %v1677
  %v1679 = vrot.slane %v1476, %v1678
  %v1680 = vlaneseq
  %v1681 = vshrl.u32 %v1680, 7
  %v1682 = vsub.s32 %v329, %v1681
  %v1683 = vrot.slane %v1479, %v1682
  %v1684 = vlaneseq
  %v1685 = vshrl.u32 %v1684, 7
  %v1686 = vsub.s32 %v329, %v1685
  %v1687 = vrot.slane %v1482, %v1686
  %v1688 = vlaneseq
  %v1689 = vshrl.u32 %v1688, 7
  %v1690 = vsub.s32 %v329, %v1689
  %v1691 = vrot.slane %v1485, %v1690
  %v1692 = vlaneseq
  %v1693 = vshrl.u32 %v1692, 7
  %v1694 = vsub.s32 %v329, %v1693
  %v1695 = vrot.slane %v1488, %v1694
  %v1696 = vlaneseq
  %v1697 = vshrl.u32 %v1696, 7
  %v1698 = vsub.s32 %v329, %v1697
  %v1699 = vrot.slane %v1491, %v1698
  %v1700 = vlaneseq
  %v1701 = vshrl.u32 %v1700, 7
  %v1702 = vsub.s32 %v329, %v1701
  %v1703 = vrot.slane %v1494, %v1702
  %v1704 = vlaneseq
  %v1705 = vshrl.u32 %v1704, 7
  %v1706 = vsub.s32 %v329, %v1705
  %v1707 = vrot.slane %v1497, %v1706
  %v1708 = vlaneseq
  %v1709 = vshrl.u32 %v1708, 7
  %v1710 = vsub.s32 %v329, %v1709
  %v1711 = vrot.slane %v1500, %v1710
  %v1712 = vlaneseq
  %v1713 = vshrl.u32 %v1712, 7
  %v1714 = vsub.s32 %v329, %v1713
  %v1715 = vrot.slane %v1503, %v1714
  %v1716 = vlaneseq
  %v1717 = vshrl.u32 %v1716, 7
  %v1718 = vsub.s32 %v329, %v1717
  %v1719 = vrot.slane %v1506, %v1718
  %v1720 = vlaneseq
  %v1721 = vshrl.u32 %v1720, 7
  %v1722 = vsub.s32 %v329, %v1721
  %v1723 = vrot.slane %v1509, %v1722
  %v1724 = vlaneseq
  %v1725 = vshrl.u32 %v1724, 7
  %v1726 = vsub.s32 %v329, %v1725
  %v1727 = vrot.slane %v1512, %v1726
  %v1728 = vlaneseq
  %v1729 = vshrl.u32 %v1728, 7
  %v1730 = vsub.s32 %v329, %v1729
  %v1731 = vrot.slane %v1515, %v1730
  %v1732 = vlaneseq
  %v1733 = vshrl.u32 %v1732, 7
  %v1734 = vsub.s32 %v329, %v1733
  %v1735 = vrot.slane %v1518, %v1734
  %v1736 = vlaneseq
  %v1737 = vshrl.u32 %v1736, 7
  %v1738 = vsub.s32 %v329, %v1737
  %v1739 = vrot.slane %v1521, %v1738
  %v1740 = vlaneseq
  %v1741 = vshrl.u32 %v1740, 7
  %v1742 = vsub.s32 %v329, %v1741
  %v1743 = vrot.slane %v1524, %v1742
  %v1744 = vlaneseq
  %v1745 = vshrl.u32 %v1744, 7
  %v1746 = vsub.s32 %v329, %v1745
  %v1747 = vrot.slane %v1527, %v1746
  %v1748 = vlaneseq
  %v1749 = vshrl.u32 %v1748, 7
  %v1750 = vsub.s32 %v329, %v1749
  %v1751 = vrot.slane %v1530, %v1750
  %v1752 = vlaneseq
  %v1753 = vshrl.u32 %v1752, 7
  %v1754 = vsub.s32 %v329, %v1753
  %v1755 = vrot.slane %v1533, %v1754
  %v1756 = vlaneseq
  %v1757 = vshrl.u32 %v1756, 7
  %v1758 = vsub.s32 %v329, %v1757
  %v1759 = vrot.slane %v1536, %v1758
  %v1760 = vlaneseq
  %v1761 = vshrl.u32 %v1760, 7
  %v1762 = vsub.s32 %v329, %v1761
  %v1763 = vrot.slane %v1539, %v1762
  %v1764 = vlaneseq
  %v1765 = vshrl.u32 %v1764, 7
  %v1766 = vsub.s32 %v329, %v1765
  %v1767 = vrot.slane %v1542, %v1766
  %v1768 = vlaneseq
  %v1769 = vshrl.u32 %v1768, 7
  %v1770 = vsub.s32 %v329, %v1769
  %v1771 = vrot.slane %v1545, %v1770
  %v1772 = vlaneseq
  %v1773 = vshrl.u32 %v1772, 7
  %v1774 = vsub.s32 %v329, %v1773
  %v1775 = vrot.slane %v1548, %v1774
  %v1776 = vlaneseq
  %v1777 = vshrl.u32 %v1776, 7
  %v1778 = vsub.s32 %v329, %v1777
  %v1779 = vrot.slane %v1551, %v1778
  %v1780 = vlaneseq
  %v1781 = vshrl.u32 %v1780, 7
  %v1782 = vsub.s32 %v329, %v1781
  %v1783 = vrot.slane %v1554, %v1782
  %v1784 = vlaneseq
  %v1785 = vshrl.u32 %v1784, 7
  %v1786 = vsub.s32 %v329, %v1785
  %v1787 = vrot.slane %v1557, %v1786
  %v1788 = vlaneseq
  %v1789 = vshrl.u32 %v1788, 7
  %v1790 = vsub.s32 %v329, %v1789
  %v1791 = vrot.slane %v1560, %v1790
  %v1792 = vlaneseq
  %v1793 = vshrl.u32 %v1792, 7
  %v1794 = vsub.s32 %v329, %v1793
  %v1795 = vrot.slane %v1563, %v1794
  %v1796 = vlaneseq
  %v1797 = vshrl.u32 %v1796, 7
  %v1798 = vsub.s32 %v329, %v1797
  %v1799 = vrot.slane %v1566, %v1798
  %v1800 = vlaneseq
  %v1801 = vshrl.u32 %v1800, 7
  %v1802 = vsub.s32 %v329, %v1801
  %v1803 = vrot.slane %v1569, %v1802
  %v1804 = vlaneseq
  %v1805 = vshrl.u32 %v1804, 7
  %v1806 = vsub.s32 %v329, %v1805
  %v1807 = vrot.slane %v1572, %v1806
  %v1808 = vlaneseq
  %v1809 = vshrl.u32 %v1808, 7
  %v1810 = vsub.s32 %v329, %v1809
  %v1811 = vrot.slane %v1575, %v1810
  %v1812 = vlaneseq
  %v1813 = vshrl.u32 %v1812, 7
  %v1814 = vsub.s32 %v329, %v1813
  %v1815 = vrot.slane %v1578, %v1814
  %v1816 = vlaneseq
  %v1817 = vshrl.u32 %v1816, 7
  %v1818 = vsub.s32 %v329, %v1817
  %v1819 = vrot.slane %v1581, %v1818
  %v1820 = vlaneseq
  %v1821 = vshrl.u32 %v1820, 7
  %v1822 = vsub.s32 %v329, %v1821
  %v1823 = vrot.slane %v1584, %v1822
  %v1824 = vlaneseq
  %v1825 = vshrl.u32 %v1824, 7
  %v1826 = vsub.s32 %v329, %v1825
  %v1827 = vrot.slane %v1587, %v1826
  %v1828 = vlaneseq
  %v1829 = vshrl.u32 %v1828, 7
  %v1830 = vsub.s32 %v329, %v1829
  %v1831 = vrot.slane %v1590, %v1830
  %v1832 = vlaneseq
  %v1833 = vshrl.u32 %v1832, 7
  %v1834 = vsub.s32 %v329, %v1833
  %v1835 = vrot.slane %v1593, %v1834
  %v1836 = vlaneseq
  %v1837 = vshrl.u32 %v1836, 7
  %v1838 = vsub.s32 %v329, %v1837
  %v1839 = vrot.slane %v1596, %v1838
  %v1840 = vlaneseq
  %v1841 = vshrl.u32 %v1840, 7
  %v1842 = vsub.s32 %v329, %v1841
  %v1843 = vrot.slane %v1599, %v1842
  %v1844 = vlaneseq
  %v1845 = vshrl.u32 %v1844, 7
  %v1846 = vsub.s32 %v329, %v1845
  %v1847 = vrot.slane %v1602, %v1846
  %v1848 = vlaneseq
  %v1849 = vshrl.u32 %v1848, 7
  %v1850 = vsub.s32 %v329, %v1849
  %v1851 = vrot.slane %v1605, %v1850
  %v1852 = vlaneseq
  %v1853 = vshrl.u32 %v1852, 7
  %v1854 = vsub.s32 %v329, %v1853
  %v1855 = vrot.slane %v1608, %v1854
  %v1856 = vlaneseq
  %v1857 = vshrl.u32 %v1856, 7
  %v1858 = vsub.s32 %v329, %v1857
  %v1859 = vrot.slane %v1611, %v1858
  %v1860 = vlaneseq
  %v1861 = vshrl.u32 %v1860, 7
  %v1862 = vsub.s32 %v329, %v1861
  %v1863 = vrot.slane %v1614, %v1862
  %v1864 = vlaneseq
  %v1865 = vshrl.u32 %v1864, 7
  %v1866 = vsub.s32 %v329, %v1865
  %v1867 = vrot.slane %v1617, %v1866
  %v1868 = vlaneseq
  %v1869 = vshrl.u32 %v1868, 7
  %v1870 = vsub.s32 %v329, %v1869
  %v1871 = vrot.slane %v1620, %v1870
  %v1872 = vlaneseq
  %v1873 = vshrl.u32 %v1872, 7
  %v1874 = vsub.s32 %v329, %v1873
  %v1875 = vrot.slane %v1623, %v1874
  %v1876 = vlaneseq
  %v1877 = vshrl.u32 %v1876, 7
  %v1878 = vsub.s32 %v329, %v1877
  %v1879 = vrot.slane %v1626, %v1878
  %v1880 = vlaneseq
  %v1881 = vshrl.u32 %v1880, 7
  %v1882 = vsub.s32 %v329, %v1881
  %v1883 = vrot.slane %v1629, %v1882
  %v1884 = vlaneseq
  %v1885 = vshrl.u32 %v1884, 7
  %v1886 = vsub.s32 %v329, %v1885
  %v1887 = vrot.slane %v1632, %v1886
  %v1888 = vlaneseq
  %v1889 = vshrl.u32 %v1888, 7
  %v1890 = vsub.s32 %v329, %v1889
  %v1891 = vrot.slane %v1635, %v1890
  %v1892 = vsel %vm586, %v1643, %v1639
  %v1893 = vsel %vm588, %v1647, %v1892
  %v1894 = vsel %vm590, %v1651, %v1893
  %v1895 = vsel %vm592, %v1655, %v1894
  %v1896 = vsel %vm594, %v1659, %v1895
  %v1897 = vsel %vm596, %v1663, %v1896
  %v1898 = vsel %vm598, %v1667, %v1897
  %v1899 = vsel %vm586, %v1675, %v1671
  %v1900 = vsel %vm588, %v1679, %v1899
  %v1901 = vsel %vm590, %v1683, %v1900
  %v1902 = vsel %vm592, %v1687, %v1901
  %v1903 = vsel %vm594, %v1691, %v1902
  %v1904 = vsel %vm596, %v1695, %v1903
  %v1905 = vsel %vm598, %v1699, %v1904
  %v1906 = vsel %vm586, %v1707, %v1703
  %v1907 = vsel %vm588, %v1711, %v1906
  %v1908 = vsel %vm590, %v1715, %v1907
  %v1909 = vsel %vm592, %v1719, %v1908
  %v1910 = vsel %vm594, %v1723, %v1909
  %v1911 = vsel %vm596, %v1727, %v1910
  %v1912 = vsel %vm598, %v1731, %v1911
  %v1913 = vsel %vm586, %v1739, %v1735
  %v1914 = vsel %vm588, %v1743, %v1913
  %v1915 = vsel %vm590, %v1747, %v1914
  %v1916 = vsel %vm592, %v1751, %v1915
  %v1917 = vsel %vm594, %v1755, %v1916
  %v1918 = vsel %vm596, %v1759, %v1917
  %v1919 = vsel %vm598, %v1763, %v1918
  %v1920 = vsel %vm586, %v1771, %v1767
  %v1921 = vsel %vm588, %v1775, %v1920
  %v1922 = vsel %vm590, %v1779, %v1921
  %v1923 = vsel %vm592, %v1783, %v1922
  %v1924 = vsel %vm594, %v1787, %v1923
  %v1925 = vsel %vm596, %v1791, %v1924
  %v1926 = vsel %vm598, %v1795, %v1925
  %v1927 = vsel %vm586, %v1803, %v1799
  %v1928 = vsel %vm588, %v1807, %v1927
  %v1929 = vsel %vm590, %v1811, %v1928
  %v1930 = vsel %vm592, %v1815, %v1929
  %v1931 = vsel %vm594, %v1819, %v1930
  %v1932 = vsel %vm596, %v1823, %v1931
  %v1933 = vsel %vm598, %v1827, %v1932
  %v1934 = vsel %vm586, %v1835, %v1831
  %v1935 = vsel %vm588, %v1839, %v1934
  %v1936 = vsel %vm590, %v1843, %v1935
  %v1937 = vsel %vm592, %v1847, %v1936
  %v1938 = vsel %vm594, %v1851, %v1937
  %v1939 = vsel %vm596, %v1855, %v1938
  %v1940 = vsel %vm598, %v1859, %v1939
  %v1941 = vsel %vm586, %v1867, %v1863
  %v1942 = vsel %vm588, %v1871, %v1941
  %v1943 = vsel %vm590, %v1875, %v1942
  %v1944 = vsel %vm592, %v1879, %v1943
  %v1945 = vsel %vm594, %v1883, %v1944
  %v1946 = vsel %vm596, %v1887, %v1945
  %v1947 = vsel %vm598, %v1891, %v1946
  %s1956 = scalar_lea.vmem %s1, 16
  %1957 = vst.msk [vmem:[%s1956] sm:$0xff] %vm657, %v1898
  %1958 = vst.msk [vmem:[%s1956 + $0x20] sm:$0xff] %vm657, %v1905
  %1959 = vst.msk [vmem:[%s1956 + $0x40] sm:$0xff] %vm657, %v1912
  %1960 = vst.msk [vmem:[%s1956 + $0x60] sm:$0xff] %vm657, %v1919
  %1961 = vst.msk [vmem:[%s1956 + $0x80] sm:$0xff] %vm657, %v1926
  %1962 = vst.msk [vmem:[%s1956 + $0xa0] sm:$0xff] %vm657, %v1933
  %1963 = vst.msk [vmem:[%s1956 + $0xc0] sm:$0xff] %vm657, %v1940
  %1964 = vst.msk [vmem:[%s1956 + $0xe0] sm:$0xff] %vm657, %v1947
  %v1965 = vld [vmem:[%s1315] sm:$0xff]
  %v1966 = vld [vmem:[%s1315 + $0x10] sm:$0xff]
  %v1967 = vld [vmem:[%s1315 + $0x20] sm:$0xff]
  %v1968 = vld [vmem:[%s1315 + $0x30] sm:$0xff]
  %v1969 = vld [vmem:[%s1315 + $0x40] sm:$0xff]
  %v1970 = vld [vmem:[%s1315 + $0x50] sm:$0xff]
  %v1971 = vld [vmem:[%s1315 + $0x60] sm:$0xff]
  %v1972 = vld [vmem:[%s1315 + $0x70] sm:$0xff]
  %v1973 = vld [vmem:[%s1315 + $0x80] sm:$0xff]
  %v1974 = vld [vmem:[%s1315 + $0x90] sm:$0xff]
  %v1975 = vld [vmem:[%s1315 + $0xa0] sm:$0xff]
  %v1976 = vld [vmem:[%s1315 + $0xb0] sm:$0xff]
  %v1977 = vld [vmem:[%s1315 + $0xc0] sm:$0xff]
  %v1978 = vld [vmem:[%s1315 + $0xd0] sm:$0xff]
  %v1979 = vld [vmem:[%s1315 + $0xe0] sm:$0xff]
  %v1980 = vld [vmem:[%s1315 + $0xf0] sm:$0xff]
  %v1981 = vld [vmem:[%s1315 + $0x100] sm:$0xff]
  %v1982 = vld [vmem:[%s1315 + $0x110] sm:$0xff]
  %v1983 = vld [vmem:[%s1315 + $0x120] sm:$0xff]
  %v1984 = vld [vmem:[%s1315 + $0x130] sm:$0xff]
  %v1985 = vld [vmem:[%s1315 + $0x140] sm:$0xff]
  %v1986 = vld [vmem:[%s1315 + $0x150] sm:$0xff]
  %v1987 = vld [vmem:[%s1315 + $0x160] sm:$0xff]
  %v1988 = vld [vmem:[%s1315 + $0x170] sm:$0xff]
  %v1989 = vld [vmem:[%s1315 + $0x180] sm:$0xff]
  %v1990 = vld [vmem:[%s1315 + $0x190] sm:$0xff]
  %v1991 = vld [vmem:[%s1315 + $0x1a0] sm:$0xff]
  %v1992 = vld [vmem:[%s1315 + $0x1b0] sm:$0xff]
  %v1993 = vld [vmem:[%s1315 + $0x1c0] sm:$0xff]
  %v1994 = vld [vmem:[%s1315 + $0x1d0] sm:$0xff]
  %v1995 = vld [vmem:[%s1315 + $0x1e0] sm:$0xff]
  %v1996 = vld [vmem:[%s1315 + $0x1f0] sm:$0xff]
  %v1997 = vld [vmem:[%s1315 + $0x200] sm:$0xff]
  %v1998 = vld [vmem:[%s1315 + $0x210] sm:$0xff]
  %v1999 = vld [vmem:[%s1315 + $0x220] sm:$0xff]
  %v2000 = vld [vmem:[%s1315 + $0x230] sm:$0xff]
  %v2001 = vld [vmem:[%s1315 + $0x240] sm:$0xff]
  %v2002 = vld [vmem:[%s1315 + $0x250] sm:$0xff]
  %v2003 = vld [vmem:[%s1315 + $0x260] sm:$0xff]
  %v2004 = vld [vmem:[%s1315 + $0x270] sm:$0xff]
  %v2005 = vld [vmem:[%s1315 + $0x280] sm:$0xff]
  %v2006 = vld [vmem:[%s1315 + $0x290] sm:$0xff]
  %v2007 = vld [vmem:[%s1315 + $0x2a0] sm:$0xff]
  %v2008 = vld [vmem:[%s1315 + $0x2b0] sm:$0xff]
  %v2009 = vld [vmem:[%s1315 + $0x2c0] sm:$0xff]
  %v2010 = vld [vmem:[%s1315 + $0x2d0] sm:$0xff]
  %v2011 = vld [vmem:[%s1315 + $0x2e0] sm:$0xff]
  %v2012 = vld [vmem:[%s1315 + $0x2f0] sm:$0xff]
  %v2013 = vld [vmem:[%s1315 + $0x300] sm:$0xff]
  %v2014 = vld [vmem:[%s1315 + $0x310] sm:$0xff]
  %v2015 = vld [vmem:[%s1315 + $0x320] sm:$0xff]
  %v2016 = vld [vmem:[%s1315 + $0x330] sm:$0xff]
  %v2017 = vld [vmem:[%s1315 + $0x340] sm:$0xff]
  %v2018 = vld [vmem:[%s1315 + $0x350] sm:$0xff]
  %v2019 = vld [vmem:[%s1315 + $0x360] sm:$0xff]
  %v2020 = vld [vmem:[%s1315 + $0x370] sm:$0xff]
  %v2021 = vld [vmem:[%s1315 + $0x380] sm:$0xff]
  %v2022 = vld [vmem:[%s1315 + $0x390] sm:$0xff]
  %v2023 = vld [vmem:[%s1315 + $0x3a0] sm:$0xff]
  %v2024 = vld [vmem:[%s1315 + $0x3b0] sm:$0xff]
  %v2025 = vld [vmem:[%s1315 + $0x3c0] sm:$0xff]
  %v2026 = vld [vmem:[%s1315 + $0x3d0] sm:$0xff]
  %v2027 = vld [vmem:[%s1315 + $0x3e0] sm:$0xff]
  %v2028 = vld [vmem:[%s1315 + $0x3f0] sm:$0xff]
  %2093 = vset.pattern.permute.xlu0 1
  %2094 = vperm.xlu0 %2093, %v1965
  %v2095 = vpop.permute.xlu0 %2094
  %2096 = vset.pattern.permute.xlu0 1
  %2097 = vperm.xlu0 %2096, %v1966
  %v2098 = vpop.permute.xlu0 %2097
  %2099 = vset.pattern.permute.xlu0 1
  %2100 = vperm.xlu0 %2099, %v1967
  %v2101 = vpop.permute.xlu0 %2100
  %2102 = vset.pattern.permute.xlu0 1
  %2103 = vperm.xlu0 %2102, %v1968
  %v2104 = vpop.permute.xlu0 %2103
  %2105 = vset.pattern.permute.xlu0 1
  %2106 = vperm.xlu0 %2105, %v1969
  %v2107 = vpop.permute.xlu0 %2106
  %2108 = vset.pattern.permute.xlu0 1
  %2109 = vperm.xlu0 %2108, %v1970
  %v2110 = vpop.permute.xlu0 %2109
  %2111 = vset.pattern.permute.xlu0 1
  %2112 = vperm.xlu0 %2111, %v1971
  %v2113 = vpop.permute.xlu0 %2112
  %2114 = vset.pattern.permute.xlu0 1
  %2115 = vperm.xlu0 %2114, %v1972
  %v2116 = vpop.permute.xlu0 %2115
  %2117 = vset.pattern.permute.xlu0 1
  %2118 = vperm.xlu0 %2117, %v1973
  %v2119 = vpop.permute.xlu0 %2118
  %2120 = vset.pattern.permute.xlu0 1
  %2121 = vperm.xlu0 %2120, %v1974
  %v2122 = vpop.permute.xlu0 %2121
  %2123 = vset.pattern.permute.xlu0 1
  %2124 = vperm.xlu0 %2123, %v1975
  %v2125 = vpop.permute.xlu0 %2124
  %2126 = vset.pattern.permute.xlu0 1
  %2127 = vperm.xlu0 %2126, %v1976
  %v2128 = vpop.permute.xlu0 %2127
  %2129 = vset.pattern.permute.xlu0 1
  %2130 = vperm.xlu0 %2129, %v1977
  %v2131 = vpop.permute.xlu0 %2130
  %2132 = vset.pattern.permute.xlu0 1
  %2133 = vperm.xlu0 %2132, %v1978
  %v2134 = vpop.permute.xlu0 %2133
  %2135 = vset.pattern.permute.xlu0 1
  %2136 = vperm.xlu0 %2135, %v1979
  %v2137 = vpop.permute.xlu0 %2136
  %2138 = vset.pattern.permute.xlu0 1
  %2139 = vperm.xlu0 %2138, %v1980
  %v2140 = vpop.permute.xlu0 %2139
  %2141 = vset.pattern.permute.xlu0 1
  %2142 = vperm.xlu0 %2141, %v1981
  %v2143 = vpop.permute.xlu0 %2142
  %2144 = vset.pattern.permute.xlu0 1
  %2145 = vperm.xlu0 %2144, %v1982
  %v2146 = vpop.permute.xlu0 %2145
  %2147 = vset.pattern.permute.xlu0 1
  %2148 = vperm.xlu0 %2147, %v1983
  %v2149 = vpop.permute.xlu0 %2148
  %2150 = vset.pattern.permute.xlu0 1
  %2151 = vperm.xlu0 %2150, %v1984
  %v2152 = vpop.permute.xlu0 %2151
  %2153 = vset.pattern.permute.xlu0 1
  %2154 = vperm.xlu0 %2153, %v1985
  %v2155 = vpop.permute.xlu0 %2154
  %2156 = vset.pattern.permute.xlu0 1
  %2157 = vperm.xlu0 %2156, %v1986
  %v2158 = vpop.permute.xlu0 %2157
  %2159 = vset.pattern.permute.xlu0 1
  %2160 = vperm.xlu0 %2159, %v1987
  %v2161 = vpop.permute.xlu0 %2160
  %2162 = vset.pattern.permute.xlu0 1
  %2163 = vperm.xlu0 %2162, %v1988
  %v2164 = vpop.permute.xlu0 %2163
  %2165 = vset.pattern.permute.xlu0 1
  %2166 = vperm.xlu0 %2165, %v1989
  %v2167 = vpop.permute.xlu0 %2166
  %2168 = vset.pattern.permute.xlu0 1
  %2169 = vperm.xlu0 %2168, %v1990
  %v2170 = vpop.permute.xlu0 %2169
  %2171 = vset.pattern.permute.xlu0 1
  %2172 = vperm.xlu0 %2171, %v1991
  %v2173 = vpop.permute.xlu0 %2172
  %2174 = vset.pattern.permute.xlu0 1
  %2175 = vperm.xlu0 %2174, %v1992
  %v2176 = vpop.permute.xlu0 %2175
  %2177 = vset.pattern.permute.xlu0 1
  %2178 = vperm.xlu0 %2177, %v1993
  %v2179 = vpop.permute.xlu0 %2178
  %2180 = vset.pattern.permute.xlu0 1
  %2181 = vperm.xlu0 %2180, %v1994
  %v2182 = vpop.permute.xlu0 %2181
  %2183 = vset.pattern.permute.xlu0 1
  %2184 = vperm.xlu0 %2183, %v1995
  %v2185 = vpop.permute.xlu0 %2184
  %2186 = vset.pattern.permute.xlu0 1
  %2187 = vperm.xlu0 %2186, %v1996
  %v2188 = vpop.permute.xlu0 %2187
  %2189 = vset.pattern.permute.xlu0 1
  %2190 = vperm.xlu0 %2189, %v1997
  %v2191 = vpop.permute.xlu0 %2190
  %2192 = vset.pattern.permute.xlu0 1
  %2193 = vperm.xlu0 %2192, %v1998
  %v2194 = vpop.permute.xlu0 %2193
  %2195 = vset.pattern.permute.xlu0 1
  %2196 = vperm.xlu0 %2195, %v1999
  %v2197 = vpop.permute.xlu0 %2196
  %2198 = vset.pattern.permute.xlu0 1
  %2199 = vperm.xlu0 %2198, %v2000
  %v2200 = vpop.permute.xlu0 %2199
  %2201 = vset.pattern.permute.xlu0 1
  %2202 = vperm.xlu0 %2201, %v2001
  %v2203 = vpop.permute.xlu0 %2202
  %2204 = vset.pattern.permute.xlu0 1
  %2205 = vperm.xlu0 %2204, %v2002
  %v2206 = vpop.permute.xlu0 %2205
  %2207 = vset.pattern.permute.xlu0 1
  %2208 = vperm.xlu0 %2207, %v2003
  %v2209 = vpop.permute.xlu0 %2208
  %2210 = vset.pattern.permute.xlu0 1
  %2211 = vperm.xlu0 %2210, %v2004
  %v2212 = vpop.permute.xlu0 %2211
  %2213 = vset.pattern.permute.xlu0 1
  %2214 = vperm.xlu0 %2213, %v2005
  %v2215 = vpop.permute.xlu0 %2214
  %2216 = vset.pattern.permute.xlu0 1
  %2217 = vperm.xlu0 %2216, %v2006
  %v2218 = vpop.permute.xlu0 %2217
  %2219 = vset.pattern.permute.xlu0 1
  %2220 = vperm.xlu0 %2219, %v2007
  %v2221 = vpop.permute.xlu0 %2220
  %2222 = vset.pattern.permute.xlu0 1
  %2223 = vperm.xlu0 %2222, %v2008
  %v2224 = vpop.permute.xlu0 %2223
  %2225 = vset.pattern.permute.xlu0 1
  %2226 = vperm.xlu0 %2225, %v2009
  %v2227 = vpop.permute.xlu0 %2226
  %2228 = vset.pattern.permute.xlu0 1
  %2229 = vperm.xlu0 %2228, %v2010
  %v2230 = vpop.permute.xlu0 %2229
  %2231 = vset.pattern.permute.xlu0 1
  %2232 = vperm.xlu0 %2231, %v2011
  %v2233 = vpop.permute.xlu0 %2232
  %2234 = vset.pattern.permute.xlu0 1
  %2235 = vperm.xlu0 %2234, %v2012
  %v2236 = vpop.permute.xlu0 %2235
  %2237 = vset.pattern.permute.xlu0 1
  %2238 = vperm.xlu0 %2237, %v2013
  %v2239 = vpop.permute.xlu0 %2238
  %2240 = vset.pattern.permute.xlu0 1
  %2241 = vperm.xlu0 %2240, %v2014
  %v2242 = vpop.permute.xlu0 %2241
  %2243 = vset.pattern.permute.xlu0 1
  %2244 = vperm.xlu0 %2243, %v2015
  %v2245 = vpop.permute.xlu0 %2244
  %2246 = vset.pattern.permute.xlu0 1
  %2247 = vperm.xlu0 %2246, %v2016
  %v2248 = vpop.permute.xlu0 %2247
  %2249 = vset.pattern.permute.xlu0 1
  %2250 = vperm.xlu0 %2249, %v2017
  %v2251 = vpop.permute.xlu0 %2250
  %2252 = vset.pattern.permute.xlu0 1
  %2253 = vperm.xlu0 %2252, %v2018
  %v2254 = vpop.permute.xlu0 %2253
  %2255 = vset.pattern.permute.xlu0 1
  %2256 = vperm.xlu0 %2255, %v2019
  %v2257 = vpop.permute.xlu0 %2256
  %2258 = vset.pattern.permute.xlu0 1
  %2259 = vperm.xlu0 %2258, %v2020
  %v2260 = vpop.permute.xlu0 %2259
  %2261 = vset.pattern.permute.xlu0 1
  %2262 = vperm.xlu0 %2261, %v2021
  %v2263 = vpop.permute.xlu0 %2262
  %2264 = vset.pattern.permute.xlu0 1
  %2265 = vperm.xlu0 %2264, %v2022
  %v2266 = vpop.permute.xlu0 %2265
  %2267 = vset.pattern.permute.xlu0 1
  %2268 = vperm.xlu0 %2267, %v2023
  %v2269 = vpop.permute.xlu0 %2268
  %2270 = vset.pattern.permute.xlu0 1
  %2271 = vperm.xlu0 %2270, %v2024
  %v2272 = vpop.permute.xlu0 %2271
  %2273 = vset.pattern.permute.xlu0 1
  %2274 = vperm.xlu0 %2273, %v2025
  %v2275 = vpop.permute.xlu0 %2274
  %2276 = vset.pattern.permute.xlu0 1
  %2277 = vperm.xlu0 %2276, %v2026
  %v2278 = vpop.permute.xlu0 %2277
  %2279 = vset.pattern.permute.xlu0 1
  %2280 = vperm.xlu0 %2279, %v2027
  %v2281 = vpop.permute.xlu0 %2280
  %2282 = vset.pattern.permute.xlu0 1
  %2283 = vperm.xlu0 %2282, %v2028
  %v2284 = vpop.permute.xlu0 %2283
  %v2285 = vlaneseq
  %v2286 = vshrl.u32 %v2285, 7
  %v2287 = vsub.s32 %v329, %v2286
  %v2288 = vrot.slane %v2095, %v2287
  %v2289 = vlaneseq
  %v2290 = vshrl.u32 %v2289, 7
  %v2291 = vsub.s32 %v329, %v2290
  %v2292 = vrot.slane %v2098, %v2291
  %v2293 = vlaneseq
  %v2294 = vshrl.u32 %v2293, 7
  %v2295 = vsub.s32 %v329, %v2294
  %v2296 = vrot.slane %v2101, %v2295
  %v2297 = vlaneseq
  %v2298 = vshrl.u32 %v2297, 7
  %v2299 = vsub.s32 %v329, %v2298
  %v2300 = vrot.slane %v2104, %v2299
  %v2301 = vlaneseq
  %v2302 = vshrl.u32 %v2301, 7
  %v2303 = vsub.s32 %v329, %v2302
  %v2304 = vrot.slane %v2107, %v2303
  %v2305 = vlaneseq
  %v2306 = vshrl.u32 %v2305, 7
  %v2307 = vsub.s32 %v329, %v2306
  %v2308 = vrot.slane %v2110, %v2307
  %v2309 = vlaneseq
  %v2310 = vshrl.u32 %v2309, 7
  %v2311 = vsub.s32 %v329, %v2310
  %v2312 = vrot.slane %v2113, %v2311
  %v2313 = vlaneseq
  %v2314 = vshrl.u32 %v2313, 7
  %v2315 = vsub.s32 %v329, %v2314
  %v2316 = vrot.slane %v2116, %v2315
  %v2317 = vlaneseq
  %v2318 = vshrl.u32 %v2317, 7
  %v2319 = vsub.s32 %v329, %v2318
  %v2320 = vrot.slane %v2119, %v2319
  %v2321 = vlaneseq
  %v2322 = vshrl.u32 %v2321, 7
  %v2323 = vsub.s32 %v329, %v2322
  %v2324 = vrot.slane %v2122, %v2323
  %v2325 = vlaneseq
  %v2326 = vshrl.u32 %v2325, 7
  %v2327 = vsub.s32 %v329, %v2326
  %v2328 = vrot.slane %v2125, %v2327
  %v2329 = vlaneseq
  %v2330 = vshrl.u32 %v2329, 7
  %v2331 = vsub.s32 %v329, %v2330
  %v2332 = vrot.slane %v2128, %v2331
  %v2333 = vlaneseq
  %v2334 = vshrl.u32 %v2333, 7
  %v2335 = vsub.s32 %v329, %v2334
  %v2336 = vrot.slane %v2131, %v2335
  %v2337 = vlaneseq
  %v2338 = vshrl.u32 %v2337, 7
  %v2339 = vsub.s32 %v329, %v2338
  %v2340 = vrot.slane %v2134, %v2339
  %v2341 = vlaneseq
  %v2342 = vshrl.u32 %v2341, 7
  %v2343 = vsub.s32 %v329, %v2342
  %v2344 = vrot.slane %v2137, %v2343
  %v2345 = vlaneseq
  %v2346 = vshrl.u32 %v2345, 7
  %v2347 = vsub.s32 %v329, %v2346
  %v2348 = vrot.slane %v2140, %v2347
  %v2349 = vlaneseq
  %v2350 = vshrl.u32 %v2349, 7
  %v2351 = vsub.s32 %v329, %v2350
  %v2352 = vrot.slane %v2143, %v2351
  %v2353 = vlaneseq
  %v2354 = vshrl.u32 %v2353, 7
  %v2355 = vsub.s32 %v329, %v2354
  %v2356 = vrot.slane %v2146, %v2355
  %v2357 = vlaneseq
  %v2358 = vshrl.u32 %v2357, 7
  %v2359 = vsub.s32 %v329, %v2358
  %v2360 = vrot.slane %v2149, %v2359
  %v2361 = vlaneseq
  %v2362 = vshrl.u32 %v2361, 7
  %v2363 = vsub.s32 %v329, %v2362
  %v2364 = vrot.slane %v2152, %v2363
  %v2365 = vlaneseq
  %v2366 = vshrl.u32 %v2365, 7
  %v2367 = vsub.s32 %v329, %v2366
  %v2368 = vrot.slane %v2155, %v2367
  %v2369 = vlaneseq
  %v2370 = vshrl.u32 %v2369, 7
  %v2371 = vsub.s32 %v329, %v2370
  %v2372 = vrot.slane %v2158, %v2371
  %v2373 = vlaneseq
  %v2374 = vshrl.u32 %v2373, 7
  %v2375 = vsub.s32 %v329, %v2374
  %v2376 = vrot.slane %v2161, %v2375
  %v2377 = vlaneseq
  %v2378 = vshrl.u32 %v2377, 7
  %v2379 = vsub.s32 %v329, %v2378
  %v2380 = vrot.slane %v2164, %v2379
  %v2381 = vlaneseq
  %v2382 = vshrl.u32 %v2381, 7
  %v2383 = vsub.s32 %v329, %v2382
  %v2384 = vrot.slane %v2167, %v2383
  %v2385 = vlaneseq
  %v2386 = vshrl.u32 %v2385, 7
  %v2387 = vsub.s32 %v329, %v2386
  %v2388 = vrot.slane %v2170, %v2387
  %v2389 = vlaneseq
  %v2390 = vshrl.u32 %v2389, 7
  %v2391 = vsub.s32 %v329, %v2390
  %v2392 = vrot.slane %v2173, %v2391
  %v2393 = vlaneseq
  %v2394 = vshrl.u32 %v2393, 7
  %v2395 = vsub.s32 %v329, %v2394
  %v2396 = vrot.slane %v2176, %v2395
  %v2397 = vlaneseq
  %v2398 = vshrl.u32 %v2397, 7
  %v2399 = vsub.s32 %v329, %v2398
  %v2400 = vrot.slane %v2179, %v2399
  %v2401 = vlaneseq
  %v2402 = vshrl.u32 %v2401, 7
  %v2403 = vsub.s32 %v329, %v2402
  %v2404 = vrot.slane %v2182, %v2403
  %v2405 = vlaneseq
  %v2406 = vshrl.u32 %v2405, 7
  %v2407 = vsub.s32 %v329, %v2406
  %v2408 = vrot.slane %v2185, %v2407
  %v2409 = vlaneseq
  %v2410 = vshrl.u32 %v2409, 7
  %v2411 = vsub.s32 %v329, %v2410
  %v2412 = vrot.slane %v2188, %v2411
  %v2413 = vlaneseq
  %v2414 = vshrl.u32 %v2413, 7
  %v2415 = vsub.s32 %v329, %v2414
  %v2416 = vrot.slane %v2191, %v2415
  %v2417 = vlaneseq
  %v2418 = vshrl.u32 %v2417, 7
  %v2419 = vsub.s32 %v329, %v2418
  %v2420 = vrot.slane %v2194, %v2419
  %v2421 = vlaneseq
  %v2422 = vshrl.u32 %v2421, 7
  %v2423 = vsub.s32 %v329, %v2422
  %v2424 = vrot.slane %v2197, %v2423
  %v2425 = vlaneseq
  %v2426 = vshrl.u32 %v2425, 7
  %v2427 = vsub.s32 %v329, %v2426
  %v2428 = vrot.slane %v2200, %v2427
  %v2429 = vlaneseq
  %v2430 = vshrl.u32 %v2429, 7
  %v2431 = vsub.s32 %v329, %v2430
  %v2432 = vrot.slane %v2203, %v2431
  %v2433 = vlaneseq
  %v2434 = vshrl.u32 %v2433, 7
  %v2435 = vsub.s32 %v329, %v2434
  %v2436 = vrot.slane %v2206, %v2435
  %v2437 = vlaneseq
  %v2438 = vshrl.u32 %v2437, 7
  %v2439 = vsub.s32 %v329, %v2438
  %v2440 = vrot.slane %v2209, %v2439
  %v2441 = vlaneseq
  %v2442 = vshrl.u32 %v2441, 7
  %v2443 = vsub.s32 %v329, %v2442
  %v2444 = vrot.slane %v2212, %v2443
  %v2445 = vlaneseq
  %v2446 = vshrl.u32 %v2445, 7
  %v2447 = vsub.s32 %v329, %v2446
  %v2448 = vrot.slane %v2215, %v2447
  %v2449 = vlaneseq
  %v2450 = vshrl.u32 %v2449, 7
  %v2451 = vsub.s32 %v329, %v2450
  %v2452 = vrot.slane %v2218, %v2451
  %v2453 = vlaneseq
  %v2454 = vshrl.u32 %v2453, 7
  %v2455 = vsub.s32 %v329, %v2454
  %v2456 = vrot.slane %v2221, %v2455
  %v2457 = vlaneseq
  %v2458 = vshrl.u32 %v2457, 7
  %v2459 = vsub.s32 %v329, %v2458
  %v2460 = vrot.slane %v2224, %v2459
  %v2461 = vlaneseq
  %v2462 = vshrl.u32 %v2461, 7
  %v2463 = vsub.s32 %v329, %v2462
  %v2464 = vrot.slane %v2227, %v2463
  %v2465 = vlaneseq
  %v2466 = vshrl.u32 %v2465, 7
  %v2467 = vsub.s32 %v329, %v2466
  %v2468 = vrot.slane %v2230, %v2467
  %v2469 = vlaneseq
  %v2470 = vshrl.u32 %v2469, 7
  %v2471 = vsub.s32 %v329, %v2470
  %v2472 = vrot.slane %v2233, %v2471
  %v2473 = vlaneseq
  %v2474 = vshrl.u32 %v2473, 7
  %v2475 = vsub.s32 %v329, %v2474
  %v2476 = vrot.slane %v2236, %v2475
  %v2477 = vlaneseq
  %v2478 = vshrl.u32 %v2477, 7
  %v2479 = vsub.s32 %v329, %v2478
  %v2480 = vrot.slane %v2239, %v2479
  %v2481 = vlaneseq
  %v2482 = vshrl.u32 %v2481, 7
  %v2483 = vsub.s32 %v329, %v2482
  %v2484 = vrot.slane %v2242, %v2483
  %v2485 = vlaneseq
  %v2486 = vshrl.u32 %v2485, 7
  %v2487 = vsub.s32 %v329, %v2486
  %v2488 = vrot.slane %v2245, %v2487
  %v2489 = vlaneseq
  %v2490 = vshrl.u32 %v2489, 7
  %v2491 = vsub.s32 %v329, %v2490
  %v2492 = vrot.slane %v2248, %v2491
  %v2493 = vlaneseq
  %v2494 = vshrl.u32 %v2493, 7
  %v2495 = vsub.s32 %v329, %v2494
  %v2496 = vrot.slane %v2251, %v2495
  %v2497 = vlaneseq
  %v2498 = vshrl.u32 %v2497, 7
  %v2499 = vsub.s32 %v329, %v2498
  %v2500 = vrot.slane %v2254, %v2499
  %v2501 = vlaneseq
  %v2502 = vshrl.u32 %v2501, 7
  %v2503 = vsub.s32 %v329, %v2502
  %v2504 = vrot.slane %v2257, %v2503
  %v2505 = vlaneseq
  %v2506 = vshrl.u32 %v2505, 7
  %v2507 = vsub.s32 %v329, %v2506
  %v2508 = vrot.slane %v2260, %v2507
  %v2509 = vlaneseq
  %v2510 = vshrl.u32 %v2509, 7
  %v2511 = vsub.s32 %v329, %v2510
  %v2512 = vrot.slane %v2263, %v2511
  %v2513 = vlaneseq
  %v2514 = vshrl.u32 %v2513, 7
  %v2515 = vsub.s32 %v329, %v2514
  %v2516 = vrot.slane %v2266, %v2515
  %v2517 = vlaneseq
  %v2518 = vshrl.u32 %v2517, 7
  %v2519 = vsub.s32 %v329, %v2518
  %v2520 = vrot.slane %v2269, %v2519
  %v2521 = vlaneseq
  %v2522 = vshrl.u32 %v2521, 7
  %v2523 = vsub.s32 %v329, %v2522
  %v2524 = vrot.slane %v2272, %v2523
  %v2525 = vlaneseq
  %v2526 = vshrl.u32 %v2525, 7
  %v2527 = vsub.s32 %v329, %v2526
  %v2528 = vrot.slane %v2275, %v2527
  %v2529 = vlaneseq
  %v2530 = vshrl.u32 %v2529, 7
  %v2531 = vsub.s32 %v329, %v2530
  %v2532 = vrot.slane %v2278, %v2531
  %v2533 = vlaneseq
  %v2534 = vshrl.u32 %v2533, 7
  %v2535 = vsub.s32 %v329, %v2534
  %v2536 = vrot.slane %v2281, %v2535
  %v2537 = vlaneseq
  %v2538 = vshrl.u32 %v2537, 7
  %v2539 = vsub.s32 %v329, %v2538
  %v2540 = vrot.slane %v2284, %v2539
  %v2541 = vsel %vm586, %v2292, %v2288
  %v2542 = vsel %vm588, %v2296, %v2541
  %v2543 = vsel %vm590, %v2300, %v2542
  %v2544 = vsel %vm592, %v2304, %v2543
  %v2545 = vsel %vm594, %v2308, %v2544
  %v2546 = vsel %vm596, %v2312, %v2545
  %v2547 = vsel %vm598, %v2316, %v2546
  %v2548 = vsel %vm586, %v2324, %v2320
  %v2549 = vsel %vm588, %v2328, %v2548
  %v2550 = vsel %vm590, %v2332, %v2549
  %v2551 = vsel %vm592, %v2336, %v2550
  %v2552 = vsel %vm594, %v2340, %v2551
  %v2553 = vsel %vm596, %v2344, %v2552
  %v2554 = vsel %vm598, %v2348, %v2553
  %v2555 = vsel %vm586, %v2356, %v2352
  %v2556 = vsel %vm588, %v2360, %v2555
  %v2557 = vsel %vm590, %v2364, %v2556
  %v2558 = vsel %vm592, %v2368, %v2557
  %v2559 = vsel %vm594, %v2372, %v2558
  %v2560 = vsel %vm596, %v2376, %v2559
  %v2561 = vsel %vm598, %v2380, %v2560
  %v2562 = vsel %vm586, %v2388, %v2384
  %v2563 = vsel %vm588, %v2392, %v2562
  %v2564 = vsel %vm590, %v2396, %v2563
  %v2565 = vsel %vm592, %v2400, %v2564
  %v2566 = vsel %vm594, %v2404, %v2565
  %v2567 = vsel %vm596, %v2408, %v2566
  %v2568 = vsel %vm598, %v2412, %v2567
  %v2569 = vsel %vm586, %v2420, %v2416
  %v2570 = vsel %vm588, %v2424, %v2569
  %v2571 = vsel %vm590, %v2428, %v2570
  %v2572 = vsel %vm592, %v2432, %v2571
  %v2573 = vsel %vm594, %v2436, %v2572
  %v2574 = vsel %vm596, %v2440, %v2573
  %v2575 = vsel %vm598, %v2444, %v2574
  %v2576 = vsel %vm586, %v2452, %v2448
  %v2577 = vsel %vm588, %v2456, %v2576
  %v2578 = vsel %vm590, %v2460, %v2577
  %v2579 = vsel %vm592, %v2464, %v2578
  %v2580 = vsel %vm594, %v2468, %v2579
  %v2581 = vsel %vm596, %v2472, %v2580
  %v2582 = vsel %vm598, %v2476, %v2581
  %v2583 = vsel %vm586, %v2484, %v2480
  %v2584 = vsel %vm588, %v2488, %v2583
  %v2585 = vsel %vm590, %v2492, %v2584
  %v2586 = vsel %vm592, %v2496, %v2585
  %v2587 = vsel %vm594, %v2500, %v2586
  %v2588 = vsel %vm596, %v2504, %v2587
  %v2589 = vsel %vm598, %v2508, %v2588
  %v2590 = vsel %vm586, %v2516, %v2512
  %v2591 = vsel %vm588, %v2520, %v2590
  %v2592 = vsel %vm590, %v2524, %v2591
  %v2593 = vsel %vm592, %v2528, %v2592
  %v2594 = vsel %vm594, %v2532, %v2593
  %v2595 = vsel %vm596, %v2536, %v2594
  %v2596 = vsel %vm598, %v2540, %v2595
  %s2605 = scalar_lea.vmem %s1, 24
  %2606 = vst.msk [vmem:[%s2605] sm:$0xff] %vm657, %v2547
  %2607 = vst.msk [vmem:[%s2605 + $0x20] sm:$0xff] %vm657, %v2554
  %2608 = vst.msk [vmem:[%s2605 + $0x40] sm:$0xff] %vm657, %v2561
  %2609 = vst.msk [vmem:[%s2605 + $0x60] sm:$0xff] %vm657, %v2568
  %2610 = vst.msk [vmem:[%s2605 + $0x80] sm:$0xff] %vm657, %v2575
  %2611 = vst.msk [vmem:[%s2605 + $0xa0] sm:$0xff] %vm657, %v2582
  %2612 = vst.msk [vmem:[%s2605 + $0xc0] sm:$0xff] %vm657, %v2589
  %2613 = vst.msk [vmem:[%s2605 + $0xe0] sm:$0xff] %vm657, %v2596
  // Predicated region
  $region6: #{_pixel_unshuffle_safe.1} parent=0 // pred_check
    _
  $region7: #{_pixel_unshuffle_safe.1} parent=0 // pred_check_branch
    %2615 = sbr.rel (0) target = $region9
  $region8: #{_pixel_unshuffle_safe.1} parent=0 // pred_region
    _
  $region9: #{_pixel_unshuffle_safe.1} parent=0 // pred_fallthru
    _
  // Predicated region
  $region10: #{_pixel_unshuffle_safe.1} parent=0 // pred_check
    _
  $region11: #{_pixel_unshuffle_safe.1} parent=0 // pred_check_branch
    %2617 = sbr.rel (0) target = $region13
  $region12: #{_pixel_unshuffle_safe.1} parent=0 // pred_region
    _
  $region13: #{_pixel_unshuffle_safe.1} parent=0 // pred_fallthru
    _

</llo_original>
